<compile_context>
chip_gen: v5e
topology: v5e:2x2
jax: 0.10.0
libtpu: 0.0.40
codegen_flags: <defaults>
</compile_context>

<pallas_src>
import functools
import numpy as np
import jax
import jax.numpy as jnp
from jax.experimental import pallas as pl
from jax.experimental.pallas import tpu as pltpu


# ---------------------------------------------------------------------------
# Fused Pallas kernel: whole TNT forward for B_blk batch elements per step.
# ---------------------------------------------------------------------------

def _tnt_fused_kernel(x_ref, wc_ref, bc_ref, w3_ref, wfc2_ref, bh_ref, o_ref,
                      *, K, L, T, B_blk, layers):
    f32 = jnp.float32
    bf16 = jnp.bfloat16
    BL = L * B_blk

    # Time-major slab: row r = l*B_blk + b  holds  x[batch b of block, pos l].
    h = x_ref[0]                                             # (BL, D) f32

    def shift_down(v, rows):
        # v[r] -> v[r - rows], zero-filled at the top.  `rows` is a multiple
        # of B_blk (=8), so the slice/concat is sublane-tile aligned (cheap).
        if rows == 0:
            return v
        if rows >= BL:
            return jnp.zeros_like(v)
        pad = jnp.zeros((rows, v.shape[1]), v.dtype)
        return jnp.concatenate([pad, v[:BL - rows, :]], axis=0)

    def cconv(v, cin, w_off, b_row, d):
        # Causal dilated conv as K shifted-slab matmuls accumulated in f32.
        acc = None
        for k in range(K):
            s = (K - 1 - k) * d * B_blk                      # rows to shift
            tap = shift_down(v, s).astype(bf16)              # (BL, cin)
            wk = wc_ref[w_off + k * cin: w_off + (k + 1) * cin, :]
            y = jnp.dot(tap, wk, preferred_element_type=f32)
            acc = y if acc is None else acc + y
        return acc + bc_ref[b_row:b_row + 1, :]

    # ---- TemporalConvNet stack (dropout = eval identity) --------------------
    for (cin, d, w1_off, w2_off, wd_off, b1_row, b2_row, bd_row) in layers:
        h1 = jnp.maximum(cconv(h, cin, w1_off, b1_row, d), 0.0)
        h2 = jnp.maximum(cconv(h1, h1.shape[1], w2_off, b2_row, d), 0.0)
        if wd_off >= 0:                                      # 1x1 downsample
            res = jnp.dot(h.astype(bf16), wc_ref[wd_off:wd_off + cin, :],
                          preferred_element_type=f32)
            res = res + bc_ref[bd_row:bd_row + 1, :]
        else:
            res = h
        h = jnp.maximum(h2 + res, 0.0)                       # (BL, C)

    # ---- MLP head: hid[b, t] = sum_{l, c} h[l*B_blk + b, c] * W3[l, c, t] ----
    # Exact contraction: L contiguous (B_blk, C) @ (C, T) dots, f32 accumulate.
    acc = jnp.zeros((B_blk, T), f32)
    for l in range(L):
        chunk = h[l * B_blk:(l + 1) * B_blk, :].astype(bf16)
        acc = acc + jnp.dot(chunk, w3_ref[l], preferred_element_type=f32)
    hid = jnp.maximum(acc + bh_ref[0:1, :T], 0.0)            # (B_blk, T)
    out = jnp.dot(hid, wfc2_ref[...], preferred_element_type=f32)
    out = out + bh_ref[1:2, :]                               # (B_blk, OUT_PAD)
    o_ref[...] = out.astype(o_ref.dtype)


# ---------------------------------------------------------------------------
# Wrapper
# ---------------------------------------------------------------------------

def tnt_forward(params, inputs, lens, *, block_b=8):
    K = params["kernel_size"]
    B, L = inputs.shape

    # Embedding lookup + positional encoding (gather glue stays in JAX).
    x = params["emb"][inputs] + params["pe"][lens]           # (B, L, D) f32
    D = x.shape[2]

    blocks = params["blocks"]
    C = blocks[0]["w1"].shape[2]
    T = params["fc1_b"].shape[1]
    out_dim = params["fc2_w"].shape[1]
    OUT_PAD = 128                                            # lane-dense output

    B_blk = block_b
    nb = -(-B // B_blk)
    Bp = nb * B_blk

    # Time-major, batch-padded, pre-blocked input: (nb, L*B_blk, D);
    # row r of block i is (batch i*B_blk + r % B_blk, position r // B_blk).
    x_t = jnp.transpose(x, (1, 0, 2))                        # (L, B, D)
    if Bp != B:
        x_t = jnp.pad(x_t, ((0, 0), (0, Bp - B), (0, 0)))
    x_blk = (x_t.reshape(L, nb, B_blk, D)
                .transpose(1, 0, 2, 3)
                .reshape(nb, L * B_blk, D))

    # ---- pack conv weights (bf16) and biases (f32) into lane-dense slabs ----
    w_rows, b_rows, layers = [], [], []
    row = brow = 0
    for lvl, blk in enumerate(blocks):
        cin = D if lvl == 0 else C
        w1_off = row; w_rows.append(blk["w1"].reshape(K * cin, C)); row += K * cin
        w2_off = row; w_rows.append(blk["w2"].reshape(K * C, C));   row += K * C
        b1_row = brow; b_rows.append(blk["b1"]); brow += 1
        b2_row = brow; b_rows.append(blk["b2"]); brow += 1
        if blk["wd"] is not None:
            wd_off = row; w_rows.append(blk["wd"]); row += cin
            bd_row = brow; b_rows.append(blk["bd"]); brow += 1
        else:
            wd_off = bd_row = -1
        layers.append((cin, blk["dilation"], w1_off, w2_off, wd_off,
                       b1_row, b2_row, bd_row))
    w_conv = jnp.concatenate(w_rows, axis=0).astype(jnp.bfloat16)
    b_conv = jnp.concatenate(b_rows, axis=0).astype(jnp.float32)

    # Head weights: fc1 as (L, C, T) bf16; fc2 zero-padded to 128 out lanes.
    w3 = params["fc1_w"].reshape(L, C, T).astype(jnp.bfloat16)
    w_fc2 = jnp.zeros((T, OUT_PAD), jnp.float32).at[:, :out_dim].set(
        params["fc2_w"])
    b_head = jnp.zeros((2, OUT_PAD), jnp.float32)
    b_head = b_head.at[0, :T].set(params["fc1_b"][0])
    b_head = b_head.at[1, :out_dim].set(params["fc2_b"][0])

    kernel = functools.partial(_tnt_fused_kernel, K=K, L=L, T=T,
                               B_blk=B_blk, layers=tuple(layers))

    def const_spec(a):
        nd = a.ndim
        return pl.BlockSpec(a.shape, lambda i, _nd=nd: (0,) * _nd)

    out = pl.pallas_call(
        kernel,
        out_shape=jax.ShapeDtypeStruct((Bp, OUT_PAD), jnp.float32),
        grid=(nb,),
        in_specs=[pl.BlockSpec((1, L * B_blk, D), lambda i: (i, 0, 0)),
                  const_spec(w_conv), const_spec(b_conv), const_spec(w3),
                  const_spec(w_fc2), const_spec(b_head)],
        out_specs=pl.BlockSpec((B_blk, OUT_PAD), lambda i: (i, 0)),
        compiler_params=pltpu.CompilerParams(
            dimension_semantics=("parallel",)),
    )(x_blk, w_conv, b_conv, w3, w_fc2, b_head)

    return out[:B, :out_dim]


# ---------------------------------------------------------------------------
# Parameter init (weight_norm folded; dropout = eval identity)
# ---------------------------------------------------------------------------

def position_encoding_init(n_position, d_pos_vec):
    """Same math as the PyTorch helper."""
    position_enc = np.array(
        [[pos / np.power(10000, 2 * (j // 2) / d_pos_vec)
          for j in range(d_pos_vec)]
         if pos != 0 else np.zeros(d_pos_vec)
         for pos in range(n_position)])
    position_enc[1:, 0::2] = np.sin(position_enc[1:, 0::2])
    position_enc[1:, 1::2] = np.cos(position_enc[1:, 1::2])
    return jnp.asarray(position_enc, dtype=jnp.float32)


def init_params(key, *, embedding_dim, max_length, channel, T_size, level,
                kernel_size, character_size=252, out_dim=5):
    keys = jax.random.split(key, 4 + 3 * level)
    ki = iter(range(len(keys)))

    # nn.Embedding(character_size, D, padding_idx=0): N(0,1), row 0 zeroed.
    emb = jax.random.normal(keys[next(ki)], (character_size, embedding_dim),
                            jnp.float32)
    emb = emb.at[0].set(0.0)

    pe = position_encoding_init(max_length, embedding_dim)

    blocks = []
    for lvl in range(level):
        cin = embedding_dim if lvl == 0 else channel
        w1 = 0.01 * jax.random.normal(keys[next(ki)],
                                      (kernel_size, cin, channel), jnp.float32)
        w2 = 0.01 * jax.random.normal(keys[next(ki)],
                                      (kernel_size, channel, channel),
                                      jnp.float32)
        b1 = jnp.zeros((1, channel), jnp.float32)
        b2 = jnp.zeros((1, channel), jnp.float32)
        if cin != channel:
            wd = 0.01 * jax.random.normal(keys[next(ki)], (cin, channel),
                                          jnp.float32)
            bd = jnp.zeros((1, channel), jnp.float32)
        else:
            _ = keys[next(ki)]
            wd, bd = None, None
        blocks.append(dict(w1=w1, b1=b1, w2=w2, b2=b2, wd=wd, bd=bd,
                           dilation=2 ** lvl))

    # xavier_uniform with gain sqrt(2); stored already transposed (in, out).
    def xavier(k, fan_in, fan_out):
        bound = np.sqrt(2.0) * np.sqrt(6.0 / (fan_in + fan_out))
        return jax.random.uniform(k, (fan_in, fan_out), jnp.float32,
                                  -bound, bound)

    fc1_w = xavier(keys[next(ki)], max_length * channel, T_size)
    fc1_b = jnp.zeros((1, T_size), jnp.float32)
    fc2_w = xavier(keys[next(ki)], T_size, out_dim)
    fc2_b = jnp.zeros((1, out_dim), jnp.float32)

    return dict(emb=emb, pe=pe, blocks=blocks,
                fc1_w=fc1_w, fc1_b=fc1_b, fc2_w=fc2_w, fc2_b=fc2_b,
                kernel_size=kernel_size)


# ---------------------------------------------------------------------------
# Pure-JAX reference for a numerical sanity check.
# ---------------------------------------------------------------------------

def tnt_reference(params, inputs, lens):
    K = params["kernel_size"]
    B, L = inputs.shape
    x = params["emb"][inputs] + params["pe"][lens]

    def cconv(h, w, b, d):
        pad = (K - 1) * d
        hp = jnp.pad(h, ((0, 0), (pad, 0), (0, 0)))
        out = sum(jnp.einsum("blc,cd->bld", hp[:, k * d:k * d + L, :], w[k],
                             precision=jax.lax.Precision.HIGHEST)
                  for k in range(K))
        return out + b[None]

    h = x
    for blk in params["blocks"]:
        d = blk["dilation"]
        h1 = jnp.maximum(cconv(h, blk["w1"], blk["b1"], d), 0.0)
        h2 = jnp.maximum(cconv(h1, blk["w2"], blk["b2"], d), 0.0)
        if blk["wd"] is not None:
            res = jnp.einsum("blc,cd->bld", h, blk["wd"],
                             precision=jax.lax.Precision.HIGHEST) + blk["bd"][None]
        else:
            res = h
        h = jnp.maximum(h2 + res, 0.0)
    sent = h.reshape(B, -1)
    hid = jnp.maximum(sent @ params["fc1_w"] + params["fc1_b"], 0.0)
    return hid @ params["fc2_w"] + params["fc2_b"]


# ---------------------------------------------------------------------------
# Main
# ---------------------------------------------------------------------------

if __name__ == "__main__":
    B = 12                      # not a multiple of B_blk=8: exercises padding
    embedding_dim = 32
    max_length = 16
    channel_size = 64
    T_size = 16
    level = 3
    kernel_size = 3

    key = jax.random.PRNGKey(0)
    k_param, k_tok = jax.random.split(key)

    params = init_params(k_param,
                         embedding_dim=embedding_dim,
                         max_length=max_length,
                         channel=channel_size,
                         T_size=T_size,
                         level=level,
                         kernel_size=kernel_size)

    # inputs: token ids (B, L); lens: per-token position indices (B, L),
    # looked up in the positional-encoding embedding (padding_idx=0 row is 0).
    inputs = jax.random.randint(k_tok, (B, max_length), 1, 252, jnp.int32)
    lens = jnp.tile(jnp.arange(max_length, dtype=jnp.int32)[None, :], (B, 1))

    out = tnt_forward(params, inputs, lens)
    out = jax.block_until_ready(out)

    ref = tnt_reference(params, inputs, lens)
    # bf16 matmul operands (per perf review) -> slightly looser tolerance than
    # the f32 HIGHEST-precision reference.
    np.testing.assert_allclose(np.asarray(out), np.asarray(ref),
                               rtol=5e-2, atol=5e-3)

    assert out.shape == (B, 5)
    print("KERNEL_OK")
</pallas_src>

<mosaic_0001>
module attributes {stable_mosaic.version = 11 : i64} {
  func.func @_tnt_fused_kernel(%arg0: i32, %arg1: memref<1x128x32xf32, #tpu.memory_space<vmem>>, %arg2: memref<1088x64xbf16, #tpu.memory_space<vmem>>, %arg3: memref<7x64xf32, #tpu.memory_space<vmem>>, %arg4: memref<16x64x16xbf16, #tpu.memory_space<vmem>>, %arg5: memref<16x128xf32, #tpu.memory_space<vmem>>, %arg6: memref<2x128xf32, #tpu.memory_space<vmem>>, %arg7: memref<8x128xf32, #tpu.memory_space<vmem>>) attributes {dimension_semantics = [#tpu.dimension_semantics<parallel>], iteration_bounds = array<i64: 2>, scalar_prefetch = 0 : i64, scratch_operands = 0 : i64, tpu.core_type = #tpu.core_type<tc>, window_params = [{transform_indices = @transform_0, window_bounds = array<i64: 1, 128, 32>}, {pipeline_mode = #tpu.pipeline_mode<synchronous>, transform_indices = @transform_1, window_bounds = array<i64: 1088, 64>}, {pipeline_mode = #tpu.pipeline_mode<synchronous>, transform_indices = @transform_2, window_bounds = array<i64: 7, 64>}, {pipeline_mode = #tpu.pipeline_mode<synchronous>, transform_indices = @transform_3, window_bounds = array<i64: 16, 64, 16>}, {pipeline_mode = #tpu.pipeline_mode<synchronous>, transform_indices = @transform_4, window_bounds = array<i64: 16, 128>}, {pipeline_mode = #tpu.pipeline_mode<synchronous>, transform_indices = @transform_5, window_bounds = array<i64: 2, 128>}, {transform_indices = @transform_6, window_bounds = array<i64: 8, 128>}]} {
    %c0 = arith.constant 0 : index
    %c0_0 = arith.constant 0 : index
    %c0_1 = arith.constant 0 : index
    %0 = vector.load %arg1[%c0, %c0_0, %c0_1] : memref<1x128x32xf32, #tpu.memory_space<vmem>>, vector<1x128x32xf32>
    %1 = vector.shape_cast %0 : vector<1x128x32xf32> to vector<128x32xf32>
    %cst = arith.constant 0.000000e+00 : f32
    %2 = vector.broadcast %cst : f32 to vector<16x32xf32>
    %3 = vector.extract_strided_slice %1 {offsets = [0, 0], sizes = [112, 32], strides = [1, 1]} : vector<128x32xf32> to vector<112x32xf32>
    %4 = tpu.concatenate %2, %3 in 0 : vector<16x32xf32>, vector<112x32xf32> -> vector<128x32xf32>
    %5 = arith.truncf %4 : vector<128x32xf32> to vector<128x32xbf16>
    %c0_2 = arith.constant 0 : index
    %c0_3 = arith.constant 0 : index
    %6 = vector.load %arg2[%c0_2, %c0_3] : memref<1088x64xbf16, #tpu.memory_space<vmem>>, vector<32x64xbf16>
    %cst_4 = arith.constant dense<0.000000e+00> : vector<128x64xf32>
    %7 = tpu.matmul %5, %6, %cst_4 {dimension_numbers = #tpu.dot_dimension_numbers<[1], [0], [0], [1], [0, 0, 1, 1], [], []>} : vector<128x32xbf16>, vector<32x64xbf16>, vector<128x64xf32> -> vector<128x64xf32>
    %cst_5 = arith.constant 0.000000e+00 : f32
    %8 = vector.broadcast %cst_5 : f32 to vector<8x32xf32>
    %9 = vector.extract_strided_slice %1 {offsets = [0, 0], sizes = [120, 32], strides = [1, 1]} : vector<128x32xf32> to vector<120x32xf32>
    %10 = tpu.concatenate %8, %9 in 0 : vector<8x32xf32>, vector<120x32xf32> -> vector<128x32xf32>
    %11 = arith.truncf %10 : vector<128x32xf32> to vector<128x32xbf16>
    %c32 = arith.constant 32 : index
    %c0_6 = arith.constant 0 : index
    %12 = vector.load %arg2[%c32, %c0_6] : memref<1088x64xbf16, #tpu.memory_space<vmem>>, vector<32x64xbf16>
    %cst_7 = arith.constant dense<0.000000e+00> : vector<128x64xf32>
    %13 = tpu.matmul %11, %12, %cst_7 {dimension_numbers = #tpu.dot_dimension_numbers<[1], [0], [0], [1], [0, 0, 1, 1], [], []>} : vector<128x32xbf16>, vector<32x64xbf16>, vector<128x64xf32> -> vector<128x64xf32>
    %14 = arith.addf %7, %13 : vector<128x64xf32>
    %15 = arith.truncf %1 : vector<128x32xf32> to vector<128x32xbf16>
    %c64 = arith.constant 64 : index
    %c0_8 = arith.constant 0 : index
    %16 = vector.load %arg2[%c64, %c0_8] : memref<1088x64xbf16, #tpu.memory_space<vmem>>, vector<32x64xbf16>
    %cst_9 = arith.constant dense<0.000000e+00> : vector<128x64xf32>
    %17 = tpu.matmul %15, %16, %cst_9 {dimension_numbers = #tpu.dot_dimension_numbers<[1], [0], [0], [1], [0, 0, 1, 1], [], []>} : vector<128x32xbf16>, vector<32x64xbf16>, vector<128x64xf32> -> vector<128x64xf32>
    %18 = arith.addf %14, %17 : vector<128x64xf32>
    %c0_10 = arith.constant 0 : index
    %c0_11 = arith.constant 0 : index
    %19 = vector.load %arg3[%c0_10, %c0_11] : memref<7x64xf32, #tpu.memory_space<vmem>>, vector<1x64xf32>
    %20 = vector.broadcast %19 : vector<1x64xf32> to vector<128x64xf32>
    %21 = arith.addf %18, %20 : vector<128x64xf32>
    %cst_12 = arith.constant 0.000000e+00 : f32
    %22 = vector.broadcast %cst_12 : f32 to vector<128x64xf32>
    %23 = arith.maximumf %21, %22 : vector<128x64xf32>
    %cst_13 = arith.constant 0.000000e+00 : f32
    %24 = vector.broadcast %cst_13 : f32 to vector<16x64xf32>
    %25 = vector.extract_strided_slice %23 {offsets = [0, 0], sizes = [112, 64], strides = [1, 1]} : vector<128x64xf32> to vector<112x64xf32>
    %26 = tpu.concatenate %24, %25 in 0 : vector<16x64xf32>, vector<112x64xf32> -> vector<128x64xf32>
    %27 = arith.truncf %26 : vector<128x64xf32> to vector<128x64xbf16>
    %c96 = arith.constant 96 : index
    %c0_14 = arith.constant 0 : index
    %28 = vector.load %arg2[%c96, %c0_14] : memref<1088x64xbf16, #tpu.memory_space<vmem>>, vector<64x64xbf16>
    %cst_15 = arith.constant dense<0.000000e+00> : vector<128x64xf32>
    %29 = tpu.matmul %27, %28, %cst_15 {dimension_numbers = #tpu.dot_dimension_numbers<[1], [0], [0], [1], [0, 0, 1, 1], [], []>} : vector<128x64xbf16>, vector<64x64xbf16>, vector<128x64xf32> -> vector<128x64xf32>
    %cst_16 = arith.constant 0.000000e+00 : f32
    %30 = vector.broadcast %cst_16 : f32 to vector<8x64xf32>
    %31 = vector.extract_strided_slice %23 {offsets = [0, 0], sizes = [120, 64], strides = [1, 1]} : vector<128x64xf32> to vector<120x64xf32>
    %32 = tpu.concatenate %30, %31 in 0 : vector<8x64xf32>, vector<120x64xf32> -> vector<128x64xf32>
    %33 = arith.truncf %32 : vector<128x64xf32> to vector<128x64xbf16>
    %c160 = arith.constant 160 : index
    %c0_17 = arith.constant 0 : index
    %34 = vector.load %arg2[%c160, %c0_17] : memref<1088x64xbf16, #tpu.memory_space<vmem>>, vector<64x64xbf16>
    %cst_18 = arith.constant dense<0.000000e+00> : vector<128x64xf32>
    %35 = tpu.matmul %33, %34, %cst_18 {dimension_numbers = #tpu.dot_dimension_numbers<[1], [0], [0], [1], [0, 0, 1, 1], [], []>} : vector<128x64xbf16>, vector<64x64xbf16>, vector<128x64xf32> -> vector<128x64xf32>
    %36 = arith.addf %29, %35 : vector<128x64xf32>
    %37 = arith.truncf %23 : vector<128x64xf32> to vector<128x64xbf16>
    %c224 = arith.constant 224 : index
    %c0_19 = arith.constant 0 : index
    %38 = vector.load %arg2[%c224, %c0_19] : memref<1088x64xbf16, #tpu.memory_space<vmem>>, vector<64x64xbf16>
    %cst_20 = arith.constant dense<0.000000e+00> : vector<128x64xf32>
    %39 = tpu.matmul %37, %38, %cst_20 {dimension_numbers = #tpu.dot_dimension_numbers<[1], [0], [0], [1], [0, 0, 1, 1], [], []>} : vector<128x64xbf16>, vector<64x64xbf16>, vector<128x64xf32> -> vector<128x64xf32>
    %40 = arith.addf %36, %39 : vector<128x64xf32>
    %c1 = arith.constant 1 : index
    %c0_21 = arith.constant 0 : index
    %41 = vector.load %arg3[%c1, %c0_21] : memref<7x64xf32, #tpu.memory_space<vmem>>, vector<1x64xf32>
    %42 = vector.broadcast %41 : vector<1x64xf32> to vector<128x64xf32>
    %43 = arith.addf %40, %42 : vector<128x64xf32>
    %cst_22 = arith.constant 0.000000e+00 : f32
    %44 = vector.broadcast %cst_22 : f32 to vector<128x64xf32>
    %45 = arith.maximumf %43, %44 : vector<128x64xf32>
    %46 = arith.truncf %1 : vector<128x32xf32> to vector<128x32xbf16>
    %c288 = arith.constant 288 : index
    %c0_23 = arith.constant 0 : index
    %47 = vector.load %arg2[%c288, %c0_23] : memref<1088x64xbf16, #tpu.memory_space<vmem>>, vector<32x64xbf16>
    %cst_24 = arith.constant dense<0.000000e+00> : vector<128x64xf32>
    %48 = tpu.matmul %46, %47, %cst_24 {dimension_numbers = #tpu.dot_dimension_numbers<[1], [0], [0], [1], [0, 0, 1, 1], [], []>} : vector<128x32xbf16>, vector<32x64xbf16>, vector<128x64xf32> -> vector<128x64xf32>
    %c2 = arith.constant 2 : index
    %c0_25 = arith.constant 0 : index
    %49 = vector.load %arg3[%c2, %c0_25] : memref<7x64xf32, #tpu.memory_space<vmem>>, vector<1x64xf32>
    %50 = vector.broadcast %49 : vector<1x64xf32> to vector<128x64xf32>
    %51 = arith.addf %48, %50 : vector<128x64xf32>
    %52 = arith.addf %45, %51 : vector<128x64xf32>
    %cst_26 = arith.constant 0.000000e+00 : f32
    %53 = vector.broadcast %cst_26 : f32 to vector<128x64xf32>
    %54 = arith.maximumf %52, %53 : vector<128x64xf32>
    %cst_27 = arith.constant 0.000000e+00 : f32
    %55 = vector.broadcast %cst_27 : f32 to vector<32x64xf32>
    %56 = vector.extract_strided_slice %54 {offsets = [0, 0], sizes = [96, 64], strides = [1, 1]} : vector<128x64xf32> to vector<96x64xf32>
    %57 = tpu.concatenate %55, %56 in 0 : vector<32x64xf32>, vector<96x64xf32> -> vector<128x64xf32>
    %58 = arith.truncf %57 : vector<128x64xf32> to vector<128x64xbf16>
    %c320 = arith.constant 320 : index
    %c0_28 = arith.constant 0 : index
    %59 = vector.load %arg2[%c320, %c0_28] : memref<1088x64xbf16, #tpu.memory_space<vmem>>, vector<64x64xbf16>
    %cst_29 = arith.constant dense<0.000000e+00> : vector<128x64xf32>
    %60 = tpu.matmul %58, %59, %cst_29 {dimension_numbers = #tpu.dot_dimension_numbers<[1], [0], [0], [1], [0, 0, 1, 1], [], []>} : vector<128x64xbf16>, vector<64x64xbf16>, vector<128x64xf32> -> vector<128x64xf32>
    %cst_30 = arith.constant 0.000000e+00 : f32
    %61 = vector.broadcast %cst_30 : f32 to vector<16x64xf32>
    %62 = vector.extract_strided_slice %54 {offsets = [0, 0], sizes = [112, 64], strides = [1, 1]} : vector<128x64xf32> to vector<112x64xf32>
    %63 = tpu.concatenate %61, %62 in 0 : vector<16x64xf32>, vector<112x64xf32> -> vector<128x64xf32>
    %64 = arith.truncf %63 : vector<128x64xf32> to vector<128x64xbf16>
    %c384 = arith.constant 384 : index
    %c0_31 = arith.constant 0 : index
    %65 = vector.load %arg2[%c384, %c0_31] : memref<1088x64xbf16, #tpu.memory_space<vmem>>, vector<64x64xbf16>
    %cst_32 = arith.constant dense<0.000000e+00> : vector<128x64xf32>
    %66 = tpu.matmul %64, %65, %cst_32 {dimension_numbers = #tpu.dot_dimension_numbers<[1], [0], [0], [1], [0, 0, 1, 1], [], []>} : vector<128x64xbf16>, vector<64x64xbf16>, vector<128x64xf32> -> vector<128x64xf32>
    %67 = arith.addf %60, %66 : vector<128x64xf32>
    %68 = arith.truncf %54 : vector<128x64xf32> to vector<128x64xbf16>
    %c448 = arith.constant 448 : index
    %c0_33 = arith.constant 0 : index
    %69 = vector.load %arg2[%c448, %c0_33] : memref<1088x64xbf16, #tpu.memory_space<vmem>>, vector<64x64xbf16>
    %cst_34 = arith.constant dense<0.000000e+00> : vector<128x64xf32>
    %70 = tpu.matmul %68, %69, %cst_34 {dimension_numbers = #tpu.dot_dimension_numbers<[1], [0], [0], [1], [0, 0, 1, 1], [], []>} : vector<128x64xbf16>, vector<64x64xbf16>, vector<128x64xf32> -> vector<128x64xf32>
    %71 = arith.addf %67, %70 : vector<128x64xf32>
    %c3 = arith.constant 3 : index
    %c0_35 = arith.constant 0 : index
    %72 = vector.load %arg3[%c3, %c0_35] : memref<7x64xf32, #tpu.memory_space<vmem>>, vector<1x64xf32>
    %73 = vector.broadcast %72 : vector<1x64xf32> to vector<128x64xf32>
    %74 = arith.addf %71, %73 : vector<128x64xf32>
    %cst_36 = arith.constant 0.000000e+00 : f32
    %75 = vector.broadcast %cst_36 : f32 to vector<128x64xf32>
    %76 = arith.maximumf %74, %75 : vector<128x64xf32>
    %cst_37 = arith.constant 0.000000e+00 : f32
    %77 = vector.broadcast %cst_37 : f32 to vector<32x64xf32>
    %78 = vector.extract_strided_slice %76 {offsets = [0, 0], sizes = [96, 64], strides = [1, 1]} : vector<128x64xf32> to vector<96x64xf32>
    %79 = tpu.concatenate %77, %78 in 0 : vector<32x64xf32>, vector<96x64xf32> -> vector<128x64xf32>
    %80 = arith.truncf %79 : vector<128x64xf32> to vector<128x64xbf16>
    %c512 = arith.constant 512 : index
    %c0_38 = arith.constant 0 : index
    %81 = vector.load %arg2[%c512, %c0_38] : memref<1088x64xbf16, #tpu.memory_space<vmem>>, vector<64x64xbf16>
    %cst_39 = arith.constant dense<0.000000e+00> : vector<128x64xf32>
    %82 = tpu.matmul %80, %81, %cst_39 {dimension_numbers = #tpu.dot_dimension_numbers<[1], [0], [0], [1], [0, 0, 1, 1], [], []>} : vector<128x64xbf16>, vector<64x64xbf16>, vector<128x64xf32> -> vector<128x64xf32>
    %cst_40 = arith.constant 0.000000e+00 : f32
    %83 = vector.broadcast %cst_40 : f32 to vector<16x64xf32>
    %84 = vector.extract_strided_slice %76 {offsets = [0, 0], sizes = [112, 64], strides = [1, 1]} : vector<128x64xf32> to vector<112x64xf32>
    %85 = tpu.concatenate %83, %84 in 0 : vector<16x64xf32>, vector<112x64xf32> -> vector<128x64xf32>
    %86 = arith.truncf %85 : vector<128x64xf32> to vector<128x64xbf16>
    %c576 = arith.constant 576 : index
    %c0_41 = arith.constant 0 : index
    %87 = vector.load %arg2[%c576, %c0_41] : memref<1088x64xbf16, #tpu.memory_space<vmem>>, vector<64x64xbf16>
    %cst_42 = arith.constant dense<0.000000e+00> : vector<128x64xf32>
    %88 = tpu.matmul %86, %87, %cst_42 {dimension_numbers = #tpu.dot_dimension_numbers<[1], [0], [0], [1], [0, 0, 1, 1], [], []>} : vector<128x64xbf16>, vector<64x64xbf16>, vector<128x64xf32> -> vector<128x64xf32>
    %89 = arith.addf %82, %88 : vector<128x64xf32>
    %90 = arith.truncf %76 : vector<128x64xf32> to vector<128x64xbf16>
    %c640 = arith.constant 640 : index
    %c0_43 = arith.constant 0 : index
    %91 = vector.load %arg2[%c640, %c0_43] : memref<1088x64xbf16, #tpu.memory_space<vmem>>, vector<64x64xbf16>
    %cst_44 = arith.constant dense<0.000000e+00> : vector<128x64xf32>
    %92 = tpu.matmul %90, %91, %cst_44 {dimension_numbers = #tpu.dot_dimension_numbers<[1], [0], [0], [1], [0, 0, 1, 1], [], []>} : vector<128x64xbf16>, vector<64x64xbf16>, vector<128x64xf32> -> vector<128x64xf32>
    %93 = arith.addf %89, %92 : vector<128x64xf32>
    %c4 = arith.constant 4 : index
    %c0_45 = arith.constant 0 : index
    %94 = vector.load %arg3[%c4, %c0_45] : memref<7x64xf32, #tpu.memory_space<vmem>>, vector<1x64xf32>
    %95 = vector.broadcast %94 : vector<1x64xf32> to vector<128x64xf32>
    %96 = arith.addf %93, %95 : vector<128x64xf32>
    %cst_46 = arith.constant 0.000000e+00 : f32
    %97 = vector.broadcast %cst_46 : f32 to vector<128x64xf32>
    %98 = arith.maximumf %96, %97 : vector<128x64xf32>
    %99 = arith.addf %98, %54 : vector<128x64xf32>
    %cst_47 = arith.constant 0.000000e+00 : f32
    %100 = vector.broadcast %cst_47 : f32 to vector<128x64xf32>
    %101 = arith.maximumf %99, %100 : vector<128x64xf32>
    %cst_48 = arith.constant 0.000000e+00 : f32
    %102 = vector.broadcast %cst_48 : f32 to vector<64x64xf32>
    %103 = vector.extract_strided_slice %101 {offsets = [0, 0], sizes = [64, 64], strides = [1, 1]} : vector<128x64xf32> to vector<64x64xf32>
    %104 = tpu.concatenate %102, %103 in 0 : vector<64x64xf32>, vector<64x64xf32> -> vector<128x64xf32>
    %105 = arith.truncf %104 : vector<128x64xf32> to vector<128x64xbf16>
    %c704 = arith.constant 704 : index
    %c0_49 = arith.constant 0 : index
    %106 = vector.load %arg2[%c704, %c0_49] : memref<1088x64xbf16, #tpu.memory_space<vmem>>, vector<64x64xbf16>
    %cst_50 = arith.constant dense<0.000000e+00> : vector<128x64xf32>
    %107 = tpu.matmul %105, %106, %cst_50 {dimension_numbers = #tpu.dot_dimension_numbers<[1], [0], [0], [1], [0, 0, 1, 1], [], []>} : vector<128x64xbf16>, vector<64x64xbf16>, vector<128x64xf32> -> vector<128x64xf32>
    %cst_51 = arith.constant 0.000000e+00 : f32
    %108 = vector.broadcast %cst_51 : f32 to vector<32x64xf32>
    %109 = vector.extract_strided_slice %101 {offsets = [0, 0], sizes = [96, 64], strides = [1, 1]} : vector<128x64xf32> to vector<96x64xf32>
    %110 = tpu.concatenate %108, %109 in 0 : vector<32x64xf32>, vector<96x64xf32> -> vector<128x64xf32>
    %111 = arith.truncf %110 : vector<128x64xf32> to vector<128x64xbf16>
    %c768 = arith.constant 768 : index
    %c0_52 = arith.constant 0 : index
    %112 = vector.load %arg2[%c768, %c0_52] : memref<1088x64xbf16, #tpu.memory_space<vmem>>, vector<64x64xbf16>
    %cst_53 = arith.constant dense<0.000000e+00> : vector<128x64xf32>
    %113 = tpu.matmul %111, %112, %cst_53 {dimension_numbers = #tpu.dot_dimension_numbers<[1], [0], [0], [1], [0, 0, 1, 1], [], []>} : vector<128x64xbf16>, vector<64x64xbf16>, vector<128x64xf32> -> vector<128x64xf32>
    %114 = arith.addf %107, %113 : vector<128x64xf32>
    %115 = arith.truncf %101 : vector<128x64xf32> to vector<128x64xbf16>
    %c832 = arith.constant 832 : index
    %c0_54 = arith.constant 0 : index
    %116 = vector.load %arg2[%c832, %c0_54] : memref<1088x64xbf16, #tpu.memory_space<vmem>>, vector<64x64xbf16>
    %cst_55 = arith.constant dense<0.000000e+00> : vector<128x64xf32>
    %117 = tpu.matmul %115, %116, %cst_55 {dimension_numbers = #tpu.dot_dimension_numbers<[1], [0], [0], [1], [0, 0, 1, 1], [], []>} : vector<128x64xbf16>, vector<64x64xbf16>, vector<128x64xf32> -> vector<128x64xf32>
    %118 = arith.addf %114, %117 : vector<128x64xf32>
    %c5 = arith.constant 5 : index
    %c0_56 = arith.constant 0 : index
    %119 = vector.load %arg3[%c5, %c0_56] : memref<7x64xf32, #tpu.memory_space<vmem>>, vector<1x64xf32>
    %120 = vector.broadcast %119 : vector<1x64xf32> to vector<128x64xf32>
    %121 = arith.addf %118, %120 : vector<128x64xf32>
    %cst_57 = arith.constant 0.000000e+00 : f32
    %122 = vector.broadcast %cst_57 : f32 to vector<128x64xf32>
    %123 = arith.maximumf %121, %122 : vector<128x64xf32>
    %cst_58 = arith.constant 0.000000e+00 : f32
    %124 = vector.broadcast %cst_58 : f32 to vector<64x64xf32>
    %125 = vector.extract_strided_slice %123 {offsets = [0, 0], sizes = [64, 64], strides = [1, 1]} : vector<128x64xf32> to vector<64x64xf32>
    %126 = tpu.concatenate %124, %125 in 0 : vector<64x64xf32>, vector<64x64xf32> -> vector<128x64xf32>
    %127 = arith.truncf %126 : vector<128x64xf32> to vector<128x64xbf16>
    %c896 = arith.constant 896 : index
    %c0_59 = arith.constant 0 : index
    %128 = vector.load %arg2[%c896, %c0_59] : memref<1088x64xbf16, #tpu.memory_space<vmem>>, vector<64x64xbf16>
    %cst_60 = arith.constant dense<0.000000e+00> : vector<128x64xf32>
    %129 = tpu.matmul %127, %128, %cst_60 {dimension_numbers = #tpu.dot_dimension_numbers<[1], [0], [0], [1], [0, 0, 1, 1], [], []>} : vector<128x64xbf16>, vector<64x64xbf16>, vector<128x64xf32> -> vector<128x64xf32>
    %cst_61 = arith.constant 0.000000e+00 : f32
    %130 = vector.broadcast %cst_61 : f32 to vector<32x64xf32>
    %131 = vector.extract_strided_slice %123 {offsets = [0, 0], sizes = [96, 64], strides = [1, 1]} : vector<128x64xf32> to vector<96x64xf32>
    %132 = tpu.concatenate %130, %131 in 0 : vector<32x64xf32>, vector<96x64xf32> -> vector<128x64xf32>
    %133 = arith.truncf %132 : vector<128x64xf32> to vector<128x64xbf16>
    %c960 = arith.constant 960 : index
    %c0_62 = arith.constant 0 : index
    %134 = vector.load %arg2[%c960, %c0_62] : memref<1088x64xbf16, #tpu.memory_space<vmem>>, vector<64x64xbf16>
    %cst_63 = arith.constant dense<0.000000e+00> : vector<128x64xf32>
    %135 = tpu.matmul %133, %134, %cst_63 {dimension_numbers = #tpu.dot_dimension_numbers<[1], [0], [0], [1], [0, 0, 1, 1], [], []>} : vector<128x64xbf16>, vector<64x64xbf16>, vector<128x64xf32> -> vector<128x64xf32>
    %136 = arith.addf %129, %135 : vector<128x64xf32>
    %137 = arith.truncf %123 : vector<128x64xf32> to vector<128x64xbf16>
    %c1024 = arith.constant 1024 : index
    %c0_64 = arith.constant 0 : index
    %138 = vector.load %arg2[%c1024, %c0_64] : memref<1088x64xbf16, #tpu.memory_space<vmem>>, vector<64x64xbf16>
    %cst_65 = arith.constant dense<0.000000e+00> : vector<128x64xf32>
    %139 = tpu.matmul %137, %138, %cst_65 {dimension_numbers = #tpu.dot_dimension_numbers<[1], [0], [0], [1], [0, 0, 1, 1], [], []>} : vector<128x64xbf16>, vector<64x64xbf16>, vector<128x64xf32> -> vector<128x64xf32>
    %140 = arith.addf %136, %139 : vector<128x64xf32>
    %c6 = arith.constant 6 : index
    %c0_66 = arith.constant 0 : index
    %141 = vector.load %arg3[%c6, %c0_66] : memref<7x64xf32, #tpu.memory_space<vmem>>, vector<1x64xf32>
    %142 = vector.broadcast %141 : vector<1x64xf32> to vector<128x64xf32>
    %143 = arith.addf %140, %142 : vector<128x64xf32>
    %cst_67 = arith.constant 0.000000e+00 : f32
    %144 = vector.broadcast %cst_67 : f32 to vector<128x64xf32>
    %145 = arith.maximumf %143, %144 : vector<128x64xf32>
    %146 = arith.addf %145, %101 : vector<128x64xf32>
    %cst_68 = arith.constant 0.000000e+00 : f32
    %147 = vector.broadcast %cst_68 : f32 to vector<128x64xf32>
    %148 = arith.maximumf %146, %147 : vector<128x64xf32>
    %cst_69 = arith.constant 0.000000e+00 : f32
    %149 = vector.broadcast %cst_69 : f32 to vector<8x16xf32>
    %150 = vector.extract_strided_slice %148 {offsets = [0, 0], sizes = [8, 64], strides = [1, 1]} : vector<128x64xf32> to vector<8x64xf32>
    %151 = arith.truncf %150 : vector<8x64xf32> to vector<8x64xbf16>
    %c0_70 = arith.constant 0 : index
    %c0_71 = arith.constant 0 : index
    %c0_72 = arith.constant 0 : index
    %152 = vector.load %arg4[%c0_70, %c0_71, %c0_72] : memref<16x64x16xbf16, #tpu.memory_space<vmem>>, vector<1x64x16xbf16>
    %153 = vector.shape_cast %152 : vector<1x64x16xbf16> to vector<64x16xbf16>
    %cst_73 = arith.constant dense<0.000000e+00> : vector<8x16xf32>
    %154 = tpu.matmul %151, %153, %cst_73 {dimension_numbers = #tpu.dot_dimension_numbers<[1], [0], [0], [1], [0, 0, 1, 1], [], []>} : vector<8x64xbf16>, vector<64x16xbf16>, vector<8x16xf32> -> vector<8x16xf32>
    %155 = arith.addf %149, %154 : vector<8x16xf32>
    %156 = vector.extract_strided_slice %148 {offsets = [8, 0], sizes = [8, 64], strides = [1, 1]} : vector<128x64xf32> to vector<8x64xf32>
    %157 = arith.truncf %156 : vector<8x64xf32> to vector<8x64xbf16>
    %c1_74 = arith.constant 1 : index
    %c0_75 = arith.constant 0 : index
    %c0_76 = arith.constant 0 : index
    %158 = vector.load %arg4[%c1_74, %c0_75, %c0_76] : memref<16x64x16xbf16, #tpu.memory_space<vmem>>, vector<1x64x16xbf16>
    %159 = vector.shape_cast %158 : vector<1x64x16xbf16> to vector<64x16xbf16>
    %cst_77 = arith.constant dense<0.000000e+00> : vector<8x16xf32>
    %160 = tpu.matmul %157, %159, %cst_77 {dimension_numbers = #tpu.dot_dimension_numbers<[1], [0], [0], [1], [0, 0, 1, 1], [], []>} : vector<8x64xbf16>, vector<64x16xbf16>, vector<8x16xf32> -> vector<8x16xf32>
    %161 = arith.addf %155, %160 : vector<8x16xf32>
    %162 = vector.extract_strided_slice %148 {offsets = [16, 0], sizes = [8, 64], strides = [1, 1]} : vector<128x64xf32> to vector<8x64xf32>
    %163 = arith.truncf %162 : vector<8x64xf32> to vector<8x64xbf16>
    %c2_78 = arith.constant 2 : index
    %c0_79 = arith.constant 0 : index
    %c0_80 = arith.constant 0 : index
    %164 = vector.load %arg4[%c2_78, %c0_79, %c0_80] : memref<16x64x16xbf16, #tpu.memory_space<vmem>>, vector<1x64x16xbf16>
    %165 = vector.shape_cast %164 : vector<1x64x16xbf16> to vector<64x16xbf16>
    %cst_81 = arith.constant dense<0.000000e+00> : vector<8x16xf32>
    %166 = tpu.matmul %163, %165, %cst_81 {dimension_numbers = #tpu.dot_dimension_numbers<[1], [0], [0], [1], [0, 0, 1, 1], [], []>} : vector<8x64xbf16>, vector<64x16xbf16>, vector<8x16xf32> -> vector<8x16xf32>
    %167 = arith.addf %161, %166 : vector<8x16xf32>
    %168 = vector.extract_strided_slice %148 {offsets = [24, 0], sizes = [8, 64], strides = [1, 1]} : vector<128x64xf32> to vector<8x64xf32>
    %169 = arith.truncf %168 : vector<8x64xf32> to vector<8x64xbf16>
    %c3_82 = arith.constant 3 : index
    %c0_83 = arith.constant 0 : index
    %c0_84 = arith.constant 0 : index
    %170 = vector.load %arg4[%c3_82, %c0_83, %c0_84] : memref<16x64x16xbf16, #tpu.memory_space<vmem>>, vector<1x64x16xbf16>
    %171 = vector.shape_cast %170 : vector<1x64x16xbf16> to vector<64x16xbf16>
    %cst_85 = arith.constant dense<0.000000e+00> : vector<8x16xf32>
    %172 = tpu.matmul %169, %171, %cst_85 {dimension_numbers = #tpu.dot_dimension_numbers<[1], [0], [0], [1], [0, 0, 1, 1], [], []>} : vector<8x64xbf16>, vector<64x16xbf16>, vector<8x16xf32> -> vector<8x16xf32>
    %173 = arith.addf %167, %172 : vector<8x16xf32>
    %174 = vector.extract_strided_slice %148 {offsets = [32, 0], sizes = [8, 64], strides = [1, 1]} : vector<128x64xf32> to vector<8x64xf32>
    %175 = arith.truncf %174 : vector<8x64xf32> to vector<8x64xbf16>
    %c4_86 = arith.constant 4 : index
    %c0_87 = arith.constant 0 : index
    %c0_88 = arith.constant 0 : index
    %176 = vector.load %arg4[%c4_86, %c0_87, %c0_88] : memref<16x64x16xbf16, #tpu.memory_space<vmem>>, vector<1x64x16xbf16>
    %177 = vector.shape_cast %176 : vector<1x64x16xbf16> to vector<64x16xbf16>
    %cst_89 = arith.constant dense<0.000000e+00> : vector<8x16xf32>
    %178 = tpu.matmul %175, %177, %cst_89 {dimension_numbers = #tpu.dot_dimension_numbers<[1], [0], [0], [1], [0, 0, 1, 1], [], []>} : vector<8x64xbf16>, vector<64x16xbf16>, vector<8x16xf32> -> vector<8x16xf32>
    %179 = arith.addf %173, %178 : vector<8x16xf32>
    %180 = vector.extract_strided_slice %148 {offsets = [40, 0], sizes = [8, 64], strides = [1, 1]} : vector<128x64xf32> to vector<8x64xf32>
    %181 = arith.truncf %180 : vector<8x64xf32> to vector<8x64xbf16>
    %c5_90 = arith.constant 5 : index
    %c0_91 = arith.constant 0 : index
    %c0_92 = arith.constant 0 : index
    %182 = vector.load %arg4[%c5_90, %c0_91, %c0_92] : memref<16x64x16xbf16, #tpu.memory_space<vmem>>, vector<1x64x16xbf16>
    %183 = vector.shape_cast %182 : vector<1x64x16xbf16> to vector<64x16xbf16>
    %cst_93 = arith.constant dense<0.000000e+00> : vector<8x16xf32>
    %184 = tpu.matmul %181, %183, %cst_93 {dimension_numbers = #tpu.dot_dimension_numbers<[1], [0], [0], [1], [0, 0, 1, 1], [], []>} : vector<8x64xbf16>, vector<64x16xbf16>, vector<8x16xf32> -> vector<8x16xf32>
    %185 = arith.addf %179, %184 : vector<8x16xf32>
    %186 = vector.extract_strided_slice %148 {offsets = [48, 0], sizes = [8, 64], strides = [1, 1]} : vector<128x64xf32> to vector<8x64xf32>
    %187 = arith.truncf %186 : vector<8x64xf32> to vector<8x64xbf16>
    %c6_94 = arith.constant 6 : index
    %c0_95 = arith.constant 0 : index
    %c0_96 = arith.constant 0 : index
    %188 = vector.load %arg4[%c6_94, %c0_95, %c0_96] : memref<16x64x16xbf16, #tpu.memory_space<vmem>>, vector<1x64x16xbf16>
    %189 = vector.shape_cast %188 : vector<1x64x16xbf16> to vector<64x16xbf16>
    %cst_97 = arith.constant dense<0.000000e+00> : vector<8x16xf32>
    %190 = tpu.matmul %187, %189, %cst_97 {dimension_numbers = #tpu.dot_dimension_numbers<[1], [0], [0], [1], [0, 0, 1, 1], [], []>} : vector<8x64xbf16>, vector<64x16xbf16>, vector<8x16xf32> -> vector<8x16xf32>
    %191 = arith.addf %185, %190 : vector<8x16xf32>
    %192 = vector.extract_strided_slice %148 {offsets = [56, 0], sizes = [8, 64], strides = [1, 1]} : vector<128x64xf32> to vector<8x64xf32>
    %193 = arith.truncf %192 : vector<8x64xf32> to vector<8x64xbf16>
    %c7 = arith.constant 7 : index
    %c0_98 = arith.constant 0 : index
    %c0_99 = arith.constant 0 : index
    %194 = vector.load %arg4[%c7, %c0_98, %c0_99] : memref<16x64x16xbf16, #tpu.memory_space<vmem>>, vector<1x64x16xbf16>
    %195 = vector.shape_cast %194 : vector<1x64x16xbf16> to vector<64x16xbf16>
    %cst_100 = arith.constant dense<0.000000e+00> : vector<8x16xf32>
    %196 = tpu.matmul %193, %195, %cst_100 {dimension_numbers = #tpu.dot_dimension_numbers<[1], [0], [0], [1], [0, 0, 1, 1], [], []>} : vector<8x64xbf16>, vector<64x16xbf16>, vector<8x16xf32> -> vector<8x16xf32>
    %197 = arith.addf %191, %196 : vector<8x16xf32>
    %198 = vector.extract_strided_slice %148 {offsets = [64, 0], sizes = [8, 64], strides = [1, 1]} : vector<128x64xf32> to vector<8x64xf32>
    %199 = arith.truncf %198 : vector<8x64xf32> to vector<8x64xbf16>
    %c8 = arith.constant 8 : index
    %c0_101 = arith.constant 0 : index
    %c0_102 = arith.constant 0 : index
    %200 = vector.load %arg4[%c8, %c0_101, %c0_102] : memref<16x64x16xbf16, #tpu.memory_space<vmem>>, vector<1x64x16xbf16>
    %201 = vector.shape_cast %200 : vector<1x64x16xbf16> to vector<64x16xbf16>
    %cst_103 = arith.constant dense<0.000000e+00> : vector<8x16xf32>
    %202 = tpu.matmul %199, %201, %cst_103 {dimension_numbers = #tpu.dot_dimension_numbers<[1], [0], [0], [1], [0, 0, 1, 1], [], []>} : vector<8x64xbf16>, vector<64x16xbf16>, vector<8x16xf32> -> vector<8x16xf32>
    %203 = arith.addf %197, %202 : vector<8x16xf32>
    %204 = vector.extract_strided_slice %148 {offsets = [72, 0], sizes = [8, 64], strides = [1, 1]} : vector<128x64xf32> to vector<8x64xf32>
    %205 = arith.truncf %204 : vector<8x64xf32> to vector<8x64xbf16>
    %c9 = arith.constant 9 : index
    %c0_104 = arith.constant 0 : index
    %c0_105 = arith.constant 0 : index
    %206 = vector.load %arg4[%c9, %c0_104, %c0_105] : memref<16x64x16xbf16, #tpu.memory_space<vmem>>, vector<1x64x16xbf16>
    %207 = vector.shape_cast %206 : vector<1x64x16xbf16> to vector<64x16xbf16>
    %cst_106 = arith.constant dense<0.000000e+00> : vector<8x16xf32>
    %208 = tpu.matmul %205, %207, %cst_106 {dimension_numbers = #tpu.dot_dimension_numbers<[1], [0], [0], [1], [0, 0, 1, 1], [], []>} : vector<8x64xbf16>, vector<64x16xbf16>, vector<8x16xf32> -> vector<8x16xf32>
    %209 = arith.addf %203, %208 : vector<8x16xf32>
    %210 = vector.extract_strided_slice %148 {offsets = [80, 0], sizes = [8, 64], strides = [1, 1]} : vector<128x64xf32> to vector<8x64xf32>
    %211 = arith.truncf %210 : vector<8x64xf32> to vector<8x64xbf16>
    %c10 = arith.constant 10 : index
    %c0_107 = arith.constant 0 : index
    %c0_108 = arith.constant 0 : index
    %212 = vector.load %arg4[%c10, %c0_107, %c0_108] : memref<16x64x16xbf16, #tpu.memory_space<vmem>>, vector<1x64x16xbf16>
    %213 = vector.shape_cast %212 : vector<1x64x16xbf16> to vector<64x16xbf16>
    %cst_109 = arith.constant dense<0.000000e+00> : vector<8x16xf32>
    %214 = tpu.matmul %211, %213, %cst_109 {dimension_numbers = #tpu.dot_dimension_numbers<[1], [0], [0], [1], [0, 0, 1, 1], [], []>} : vector<8x64xbf16>, vector<64x16xbf16>, vector<8x16xf32> -> vector<8x16xf32>
    %215 = arith.addf %209, %214 : vector<8x16xf32>
    %216 = vector.extract_strided_slice %148 {offsets = [88, 0], sizes = [8, 64], strides = [1, 1]} : vector<128x64xf32> to vector<8x64xf32>
    %217 = arith.truncf %216 : vector<8x64xf32> to vector<8x64xbf16>
    %c11 = arith.constant 11 : index
    %c0_110 = arith.constant 0 : index
    %c0_111 = arith.constant 0 : index
    %218 = vector.load %arg4[%c11, %c0_110, %c0_111] : memref<16x64x16xbf16, #tpu.memory_space<vmem>>, vector<1x64x16xbf16>
    %219 = vector.shape_cast %218 : vector<1x64x16xbf16> to vector<64x16xbf16>
    %cst_112 = arith.constant dense<0.000000e+00> : vector<8x16xf32>
    %220 = tpu.matmul %217, %219, %cst_112 {dimension_numbers = #tpu.dot_dimension_numbers<[1], [0], [0], [1], [0, 0, 1, 1], [], []>} : vector<8x64xbf16>, vector<64x16xbf16>, vector<8x16xf32> -> vector<8x16xf32>
    %221 = arith.addf %215, %220 : vector<8x16xf32>
    %222 = vector.extract_strided_slice %148 {offsets = [96, 0], sizes = [8, 64], strides = [1, 1]} : vector<128x64xf32> to vector<8x64xf32>
    %223 = arith.truncf %222 : vector<8x64xf32> to vector<8x64xbf16>
    %c12 = arith.constant 12 : index
    %c0_113 = arith.constant 0 : index
    %c0_114 = arith.constant 0 : index
    %224 = vector.load %arg4[%c12, %c0_113, %c0_114] : memref<16x64x16xbf16, #tpu.memory_space<vmem>>, vector<1x64x16xbf16>
    %225 = vector.shape_cast %224 : vector<1x64x16xbf16> to vector<64x16xbf16>
    %cst_115 = arith.constant dense<0.000000e+00> : vector<8x16xf32>
    %226 = tpu.matmul %223, %225, %cst_115 {dimension_numbers = #tpu.dot_dimension_numbers<[1], [0], [0], [1], [0, 0, 1, 1], [], []>} : vector<8x64xbf16>, vector<64x16xbf16>, vector<8x16xf32> -> vector<8x16xf32>
    %227 = arith.addf %221, %226 : vector<8x16xf32>
    %228 = vector.extract_strided_slice %148 {offsets = [104, 0], sizes = [8, 64], strides = [1, 1]} : vector<128x64xf32> to vector<8x64xf32>
    %229 = arith.truncf %228 : vector<8x64xf32> to vector<8x64xbf16>
    %c13 = arith.constant 13 : index
    %c0_116 = arith.constant 0 : index
    %c0_117 = arith.constant 0 : index
    %230 = vector.load %arg4[%c13, %c0_116, %c0_117] : memref<16x64x16xbf16, #tpu.memory_space<vmem>>, vector<1x64x16xbf16>
    %231 = vector.shape_cast %230 : vector<1x64x16xbf16> to vector<64x16xbf16>
    %cst_118 = arith.constant dense<0.000000e+00> : vector<8x16xf32>
    %232 = tpu.matmul %229, %231, %cst_118 {dimension_numbers = #tpu.dot_dimension_numbers<[1], [0], [0], [1], [0, 0, 1, 1], [], []>} : vector<8x64xbf16>, vector<64x16xbf16>, vector<8x16xf32> -> vector<8x16xf32>
    %233 = arith.addf %227, %232 : vector<8x16xf32>
    %234 = vector.extract_strided_slice %148 {offsets = [112, 0], sizes = [8, 64], strides = [1, 1]} : vector<128x64xf32> to vector<8x64xf32>
    %235 = arith.truncf %234 : vector<8x64xf32> to vector<8x64xbf16>
    %c14 = arith.constant 14 : index
    %c0_119 = arith.constant 0 : index
    %c0_120 = arith.constant 0 : index
    %236 = vector.load %arg4[%c14, %c0_119, %c0_120] : memref<16x64x16xbf16, #tpu.memory_space<vmem>>, vector<1x64x16xbf16>
    %237 = vector.shape_cast %236 : vector<1x64x16xbf16> to vector<64x16xbf16>
    %cst_121 = arith.constant dense<0.000000e+00> : vector<8x16xf32>
    %238 = tpu.matmul %235, %237, %cst_121 {dimension_numbers = #tpu.dot_dimension_numbers<[1], [0], [0], [1], [0, 0, 1, 1], [], []>} : vector<8x64xbf16>, vector<64x16xbf16>, vector<8x16xf32> -> vector<8x16xf32>
    %239 = arith.addf %233, %238 : vector<8x16xf32>
    %240 = vector.extract_strided_slice %148 {offsets = [120, 0], sizes = [8, 64], strides = [1, 1]} : vector<128x64xf32> to vector<8x64xf32>
    %241 = arith.truncf %240 : vector<8x64xf32> to vector<8x64xbf16>
    %c15 = arith.constant 15 : index
    %c0_122 = arith.constant 0 : index
    %c0_123 = arith.constant 0 : index
    %242 = vector.load %arg4[%c15, %c0_122, %c0_123] : memref<16x64x16xbf16, #tpu.memory_space<vmem>>, vector<1x64x16xbf16>
    %243 = vector.shape_cast %242 : vector<1x64x16xbf16> to vector<64x16xbf16>
    %cst_124 = arith.constant dense<0.000000e+00> : vector<8x16xf32>
    %244 = tpu.matmul %241, %243, %cst_124 {dimension_numbers = #tpu.dot_dimension_numbers<[1], [0], [0], [1], [0, 0, 1, 1], [], []>} : vector<8x64xbf16>, vector<64x16xbf16>, vector<8x16xf32> -> vector<8x16xf32>
    %245 = arith.addf %239, %244 : vector<8x16xf32>
    %c0_125 = arith.constant 0 : index
    %c0_126 = arith.constant 0 : index
    %246 = vector.load %arg6[%c0_125, %c0_126] : memref<2x128xf32, #tpu.memory_space<vmem>>, vector<1x16xf32>
    %247 = vector.broadcast %246 : vector<1x16xf32> to vector<8x16xf32>
    %248 = arith.addf %245, %247 : vector<8x16xf32>
    %cst_127 = arith.constant 0.000000e+00 : f32
    %249 = vector.broadcast %cst_127 : f32 to vector<8x16xf32>
    %250 = arith.maximumf %248, %249 : vector<8x16xf32>
    %c0_128 = arith.constant 0 : index
    %c0_129 = arith.constant 0 : index
    %251 = vector.load %arg5[%c0_128, %c0_129] : memref<16x128xf32, #tpu.memory_space<vmem>>, vector<16x128xf32>
    %cst_130 = arith.constant dense<0.000000e+00> : vector<8x128xf32>
    %252 = tpu.matmul %250, %251, %cst_130 {dimension_numbers = #tpu.dot_dimension_numbers<[1], [0], [0], [1], [0, 0, 1, 1], [], []>} : vector<8x16xf32>, vector<16x128xf32>, vector<8x128xf32> -> vector<8x128xf32>
    %c1_131 = arith.constant 1 : index
    %c0_132 = arith.constant 0 : index
    %253 = vector.load %arg6[%c1_131, %c0_132] : memref<2x128xf32, #tpu.memory_space<vmem>>, vector<1x128xf32>
    %254 = vector.broadcast %253 : vector<1x128xf32> to vector<8x128xf32>
    %255 = arith.addf %252, %254 : vector<8x128xf32>
    %c0_133 = arith.constant 0 : index
    %c0_134 = arith.constant 0 : index
    %256 = vector.load %arg7[%c0_133, %c0_134] : memref<8x128xf32, #tpu.memory_space<vmem>>, vector<8x128xf32>
    tpu.vector_store %arg7[%c0_133, %c0_134], %255 {strides = array<i32>} : memref<8x128xf32, #tpu.memory_space<vmem>>, vector<8x128xf32>,
    return
  }
  func.func @transform_0(%arg0: i32) -> (i32, i32, i32) {
    %c0_i32 = arith.constant 0 : i32
    %c0_i32_0 = arith.constant 0 : i32
    %c0_i32_1 = arith.constant 0 : i32
    return %arg0, %c0_i32, %c0_i32_0 : i32, i32, i32
  }
  func.func @transform_1(%arg0: i32) -> (i32, i32) {
    %c0_i32 = arith.constant 0 : i32
    %c0_i32_0 = arith.constant 0 : i32
    %c0_i32_1 = arith.constant 0 : i32
    return %c0_i32, %c0_i32_0 : i32, i32
  }
  func.func @transform_2(%arg0: i32) -> (i32, i32) {
    %c0_i32 = arith.constant 0 : i32
    %c0_i32_0 = arith.constant 0 : i32
    %c0_i32_1 = arith.constant 0 : i32
    return %c0_i32, %c0_i32_0 : i32, i32
  }
  func.func @transform_3(%arg0: i32) -> (i32, i32, i32) {
    %c0_i32 = arith.constant 0 : i32
    %c0_i32_0 = arith.constant 0 : i32
    %c0_i32_1 = arith.constant 0 : i32
    %c0_i32_2 = arith.constant 0 : i32
    return %c0_i32, %c0_i32_0, %c0_i32_1 : i32, i32, i32
  }
  func.func @transform_4(%arg0: i32) -> (i32, i32) {
    %c0_i32 = arith.constant 0 : i32
    %c0_i32_0 = arith.constant 0 : i32
    %c0_i32_1 = arith.constant 0 : i32
    return %c0_i32, %c0_i32_0 : i32, i32
  }
  func.func @transform_5(%arg0: i32) -> (i32, i32) {
    %c0_i32 = arith.constant 0 : i32
    %c0_i32_0 = arith.constant 0 : i32
    %c0_i32_1 = arith.constant 0 : i32
    return %c0_i32, %c0_i32_0 : i32, i32
  }
  func.func @transform_6(%arg0: i32) -> (i32, i32) {
    %c0_i32 = arith.constant 0 : i32
    %c0_i32_0 = arith.constant 0 : i32
    return %arg0, %c0_i32 : i32, i32
  }
}

</mosaic_0001>

<llo_original>
// kernel: tpu_custom_call.1
$region0: #{tpu_custom_call.1}
  #allocation0 [shape = 'u32[]', space=smem, size = 0x4, offset = 0x4, fixed_abs, tag = 'smem constant byte address 0x4 - core index']
  #allocation1 [shape = 'u32[72,128]{1,0:T(1,128)}', space=vmem, size = 0x9000, scoped, tag = 'internal scratch']
  %s0 = inlined_call_operand.vmem [shape: f32[2,128,32], index: 0, kind: input, shape index: {}]
  %s1 = inlined_call_operand.vmem [shape: bf16[1088,64], index: 1, kind: input, shape index: {}]
  %s2 = inlined_call_operand.vmem [shape: f32[7,64], index: 2, kind: input, shape index: {}]
  %s3 = inlined_call_operand.vmem [shape: bf16[16,64,16], index: 3, kind: input, shape index: {}]
  %s4 = inlined_call_operand.vmem [shape: f32[16,128], index: 4, kind: input, shape index: {}]
  %s5 = inlined_call_operand.vmem [shape: f32[2,128], index: 5, kind: input, shape index: {}]
  %s6 = inlined_call_operand.hbm [shape: f32[16,128], index: 6, kind: output, shape index: {}]
  %s7 = sld [smem:[#allocation0]]
  $region57: #{tpu_custom_call.1} parent=0
    _
  %s9 = ssub.s32 1, %s7
  %s10 = scalar_select 0, %s9, %s7
  $region1: #{tpu_custom_call.1} parent=0
    #allocation2 [shape = 'u8[8192]{0}', space=vmem, size = 0x2000, scoped, tag = 'output window, operand 0']
    #allocation3 [shape = 's32[2]{0}', space=sflag, size = 0x8, scoped, tag = 'scoped memory for tpu_custom_call.1']
    %11 = vsyncpa [#allocation3], 0
    %s12 = scalar_lea.sflag [#allocation3], 1
    %13 = vsyncpa %s12, 0
    loop: start=0, step=1, limit=4
    $region2: #{tpu_custom_call.1} parent=1 // loop_pre_header
      _
    $region3: #{tpu_custom_call.1} parent=1 // loop_header
      %s15 = sphi 0, %s19
      %p16 = scmp.ge.s32.totalorder %s15, 4
      %s25 = sphi 0, %s27
      %s28 = sphi 0, %s25
      %s29 = sphi 0, %s28
      %s45 = sphi 0, %s29
      %s49 = sphi 0, %s49
      %s51 = sphi 0, %s49
      %s52 = sphi 0, %s51
      %s66 = sphi 0, %s52
      %s70 = sphi 0, %s70
      %s72 = sphi 0, %s70
      %s73 = sphi 0, %s72
      %s87 = sphi 0, %s73
      %s91 = sphi 0, %s91
      %s93 = sphi 0, %s91
      %s94 = sphi 0, %s93
      %s108 = sphi 0, %s94
      %s112 = sphi 0, %s112
      %s114 = sphi 0, %s112
      %s115 = sphi 0, %s114
      %s129 = sphi 0, %s115
      %s133 = sphi 0, %s133
      %s135 = sphi 0, %s133
      %s136 = sphi 0, %s135
      %s150 = sphi 0, %s136
      %s156 = sphi 0, %s158
      %s159 = sphi 0, %s156
      %s160 = sphi 0, %s159
      %s176 = sphi 0, %s160
    $region4: #{tpu_custom_call.1} parent=1 // loop_header_branch
      %18 = sbr.rel (%p16) target = $region8
    $region5: #{tpu_custom_call.1} parent=1 // loop_body
      %s20 = ssub.s32 %s15, 1
      %s21 = ssub.s32 %s15, 2
      %s22 = sadd.s32 %s15, 1
      %s23 = ssub.s32 %s15, %s22
      %p24 = scmp.eq.s32.totalorder %s23, 0
      %s26 = sadd.s32 %s25, 1
      %s27 = scalar_select %p24, %s25, %s26
      %p30 = pneg %p24
      %p31 = scmp.eq.s32.totalorder %s15, 1
      %p32 = por %p30, %p31
      %p33 = scmp.ne.s32.totalorder %s25, %s28
      %p34 = scmp.eq.s32.totalorder %s15, 0
      %p35 = por %p33, %p34
      %p36 = scmp.ne.s32.totalorder %s25, %s28
      %p37 = scmp.eq.s32.totalorder %s20, 1
      %p38 = por %p36, %p37
      %p39 = scmp.ne.s32.totalorder %s28, %s29
      %p40 = scmp.eq.s32.totalorder %s20, 0
      %p41 = por %p39, %p40
      %p42 = scmp.ne.s32.totalorder %s28, %s29
      %p43 = scmp.eq.s32.totalorder %s21, 1
      %p44 = por %p42, %p43
      %p46 = scmp.ne.s32.totalorder %s29, %s45
      %p47 = scmp.eq.s32.totalorder %s21, 0
      %p48 = por %p46, %p47
      %s50 = sadd.s32 %s49, 1
      %p53 = scmp.eq.s32.totalorder %s15, 1
      %p54 = scmp.ne.s32.totalorder %s49, %s51
      %p55 = scmp.eq.s32.totalorder %s15, 0
      %p56 = por %p54, %p55
      %p57 = scmp.ne.s32.totalorder %s49, %s51
      %p58 = scmp.eq.s32.totalorder %s20, 1
      %p59 = por %p57, %p58
      %p60 = scmp.ne.s32.totalorder %s51, %s52
      %p61 = scmp.eq.s32.totalorder %s20, 0
      %p62 = por %p60, %p61
      %p63 = scmp.ne.s32.totalorder %s51, %s52
      %p64 = scmp.eq.s32.totalorder %s21, 1
      %p65 = por %p63, %p64
      %p67 = scmp.ne.s32.totalorder %s52, %s66
      %p68 = scmp.eq.s32.totalorder %s21, 0
      %p69 = por %p67, %p68
      %s71 = sadd.s32 %s70, 1
      %p74 = scmp.eq.s32.totalorder %s15, 1
      %p75 = scmp.ne.s32.totalorder %s70, %s72
      %p76 = scmp.eq.s32.totalorder %s15, 0
      %p77 = por %p75, %p76
      %p78 = scmp.ne.s32.totalorder %s70, %s72
      %p79 = scmp.eq.s32.totalorder %s20, 1
      %p80 = por %p78, %p79
      %p81 = scmp.ne.s32.totalorder %s72, %s73
      %p82 = scmp.eq.s32.totalorder %s20, 0
      %p83 = por %p81, %p82
      %p84 = scmp.ne.s32.totalorder %s72, %s73
      %p85 = scmp.eq.s32.totalorder %s21, 1
      %p86 = por %p84, %p85
      %p88 = scmp.ne.s32.totalorder %s73, %s87
      %p89 = scmp.eq.s32.totalorder %s21, 0
      %p90 = por %p88, %p89
      %s92 = sadd.s32 %s91, 1
      %p95 = scmp.eq.s32.totalorder %s15, 1
      %p96 = scmp.ne.s32.totalorder %s91, %s93
      %p97 = scmp.eq.s32.totalorder %s15, 0
      %p98 = por %p96, %p97
      %p99 = scmp.ne.s32.totalorder %s91, %s93
      %p100 = scmp.eq.s32.totalorder %s20, 1
      %p101 = por %p99, %p100
      %p102 = scmp.ne.s32.totalorder %s93, %s94
      %p103 = scmp.eq.s32.totalorder %s20, 0
      %p104 = por %p102, %p103
      %p105 = scmp.ne.s32.totalorder %s93, %s94
      %p106 = scmp.eq.s32.totalorder %s21, 1
      %p107 = por %p105, %p106
      %p109 = scmp.ne.s32.totalorder %s94, %s108
      %p110 = scmp.eq.s32.totalorder %s21, 0
      %p111 = por %p109, %p110
      %s113 = sadd.s32 %s112, 1
      %p116 = scmp.eq.s32.totalorder %s15, 1
      %p117 = scmp.ne.s32.totalorder %s112, %s114
      %p118 = scmp.eq.s32.totalorder %s15, 0
      %p119 = por %p117, %p118
      %p120 = scmp.ne.s32.totalorder %s112, %s114
      %p121 = scmp.eq.s32.totalorder %s20, 1
      %p122 = por %p120, %p121
      %p123 = scmp.ne.s32.totalorder %s114, %s115
      %p124 = scmp.eq.s32.totalorder %s20, 0
      %p125 = por %p123, %p124
      %p126 = scmp.ne.s32.totalorder %s114, %s115
      %p127 = scmp.eq.s32.totalorder %s21, 1
      %p128 = por %p126, %p127
      %p130 = scmp.ne.s32.totalorder %s115, %s129
      %p131 = scmp.eq.s32.totalorder %s21, 0
      %p132 = por %p130, %p131
      %s134 = sadd.s32 %s133, 1
      %p137 = scmp.eq.s32.totalorder %s15, 1
      %p138 = scmp.ne.s32.totalorder %s133, %s135
      %p139 = scmp.eq.s32.totalorder %s15, 0
      %p140 = por %p138, %p139
      %p141 = scmp.ne.s32.totalorder %s133, %s135
      %p142 = scmp.eq.s32.totalorder %s20, 1
      %p143 = por %p141, %p142
      %p144 = scmp.ne.s32.totalorder %s135, %s136
      %p145 = scmp.eq.s32.totalorder %s20, 0
      %p146 = por %p144, %p145
      %p147 = scmp.ne.s32.totalorder %s135, %s136
      %p148 = scmp.eq.s32.totalorder %s21, 1
      %p149 = por %p147, %p148
      %p151 = scmp.ne.s32.totalorder %s136, %s150
      %p152 = scmp.eq.s32.totalorder %s21, 0
      %p153 = por %p151, %p152
      %s154 = ssub.s32 %s15, %s22
      %p155 = scmp.eq.s32.totalorder %s154, 0
      %s157 = sadd.s32 %s156, 1
      %s158 = scalar_select %p155, %s156, %s157
      %p161 = pneg %p155
      %p162 = scmp.eq.s32.totalorder %s15, 1
      %p163 = por %p161, %p162
      %p164 = scmp.ne.s32.totalorder %s156, %s159
      %p165 = scmp.eq.s32.totalorder %s15, 0
      %p166 = por %p164, %p165
      %p167 = scmp.ne.s32.totalorder %s156, %s159
      %p168 = scmp.eq.s32.totalorder %s20, 1
      %p169 = por %p167, %p168
      %p170 = scmp.ne.s32.totalorder %s159, %s160
      %p171 = scmp.eq.s32.totalorder %s20, 0
      %p172 = por %p170, %p171
      %p173 = scmp.ne.s32.totalorder %s159, %s160
      %p174 = scmp.eq.s32.totalorder %s21, 1
      %p175 = por %p173, %p174
      %p177 = scmp.ne.s32.totalorder %s160, %s176
      %p178 = scmp.eq.s32.totalorder %s21, 0
      %p179 = por %p177, %p178
      %p180 = scmp.le.s32.totalorder 1, %s15
      %p181 = scmp.lt.s32.totalorder %s15, 3
      %p182 = pnand %p180, %p181
      %p183 = pneg %p182
      // Predicated region
      $region9: #{tpu_custom_call.1} parent=5 // pred_check
        _
      $region10: #{tpu_custom_call.1} parent=5 // pred_check_branch
        %185 = sbr.rel (%p182) target = $region12
      $region11: #{tpu_custom_call.1} parent=5 // pred_region
        %s186 = ssub.s32 %s15, 1
        // Predicated region
        $region13: #{tpu_custom_call.1} parent=11 // pred_check
          %p187 = pneg %p62
        $region14: #{tpu_custom_call.1} parent=11 // pred_check_branch
          %189 = sbr.rel (%p187) target = $region16
        $region15: #{tpu_custom_call.1} parent=11 // pred_region
          _
        $region16: #{tpu_custom_call.1} parent=11 // pred_fallthru
          _
        // Predicated region
        $region17: #{tpu_custom_call.1} parent=11 // pred_check
          %p190 = pneg %p83
        $region18: #{tpu_custom_call.1} parent=11 // pred_check_branch
          %192 = sbr.rel (%p190) target = $region20
        $region19: #{tpu_custom_call.1} parent=11 // pred_region
          _
        $region20: #{tpu_custom_call.1} parent=11 // pred_fallthru
          _
        // Predicated region
        $region21: #{tpu_custom_call.1} parent=11 // pred_check
          %p193 = pneg %p104
        $region22: #{tpu_custom_call.1} parent=11 // pred_check_branch
          %195 = sbr.rel (%p193) target = $region24
        $region23: #{tpu_custom_call.1} parent=11 // pred_region
          _
        $region24: #{tpu_custom_call.1} parent=11 // pred_fallthru
          _
        // Predicated region
        $region25: #{tpu_custom_call.1} parent=11 // pred_check
          %p196 = pneg %p125
        $region26: #{tpu_custom_call.1} parent=11 // pred_check_branch
          %198 = sbr.rel (%p196) target = $region28
        $region27: #{tpu_custom_call.1} parent=11 // pred_region
          _
        $region28: #{tpu_custom_call.1} parent=11 // pred_fallthru
          _
        // Predicated region
        $region29: #{tpu_custom_call.1} parent=11 // pred_check
          %p199 = pneg %p146
        $region30: #{tpu_custom_call.1} parent=11 // pred_check_branch
          %201 = sbr.rel (%p199) target = $region32
        $region31: #{tpu_custom_call.1} parent=11 // pred_region
          _
        $region32: #{tpu_custom_call.1} parent=11 // pred_fallthru
          _
      $region12: #{tpu_custom_call.1} parent=5 // pred_fallthru
        _
      %p202 = scmp.lt.s32.totalorder %s15, 2
      // Predicated region
      $region33: #{tpu_custom_call.1} parent=5 // pred_check
        %p203 = pneg %p202
      $region34: #{tpu_custom_call.1} parent=5 // pred_check_branch
        %205 = sbr.rel (%p203) target = $region36
      $region35: #{tpu_custom_call.1} parent=5 // pred_region
        // Predicated region
        $region37: #{tpu_custom_call.1} parent=35 // pred_check
          %p206 = pneg %p35
        $region38: #{tpu_custom_call.1} parent=35 // pred_check_branch
          %208 = sbr.rel (%p206) target = $region40
        $region39: #{tpu_custom_call.1} parent=35 // pred_region
          %p209 = scmp.lt.s32.totalorder %s15, 1
          %s210 = scalar_select %p209, %s15, 1
          %s211 = smul.addr %s210, 16
          %s212 = smul.addr %s211, 8
          %s213 = scalar_lea.vmem %s0, %s212
        $region40: #{tpu_custom_call.1} parent=35 // pred_fallthru
          _
      $region36: #{tpu_custom_call.1} parent=5 // pred_fallthru
        _
      %p214 = scmp.le.s32.totalorder 1, %s15
      %p215 = scmp.lt.s32.totalorder %s15, 3
      %p216 = pnand %p214, %p215
      %p217 = pneg %p216
      // Predicated region
      $region41: #{tpu_custom_call.1} parent=5 // pred_check
        _
      $region42: #{tpu_custom_call.1} parent=5 // pred_check_branch
        %219 = sbr.rel (%p216) target = $region44
      $region43: #{tpu_custom_call.1} parent=5 // pred_region
        %s220 = ssub.s32 %s15, 1
        %p221 = scmp.lt.s32.totalorder %s20, 1
        %s222 = scalar_select %p221, %s20, 1
        %s223 = smul.addr %s222, 16
        %s224 = smul.addr %s223, 8
        %s225 = scalar_lea.vmem %s0, %s224
        %p226 = pneg %p41
        %p227 = pneg %p38
        %p228 = pneg %p62
        %p229 = pneg %p59
        %p230 = pneg %p83
        %p231 = pneg %p80
        %p232 = pneg %p104
        %p233 = pneg %p101
        %p234 = pneg %p125
        %p235 = pneg %p122
        %p236 = pneg %p146
        %p237 = pneg %p143
        %p238 = pneg %p172
        %p239 = pneg %p169
        %s240 = sand.u32 %s159, 1
        %s241 = scalar_lea.sflag [#allocation3], %s240
        %s242 = sand.u32 %s159, 1
        %s243 = smul.addr %s242, 8
        %s244 = scalar_lea.vmem [#allocation2], %s243
        %p245 = scmp.lt.s32.totalorder %s20, 1
        %s246 = scalar_select %p245, %s20, 1
        %s247 = smul.addr %s246, 16
        %s248 = smul.addr %s247, 8
        %s249 = scalar_lea.vmem %s0, %s248
        %v251 = vld [vmem:[%s249] sm:$0xff]
        %v252 = vld [vmem:[%s249 + $0x8] sm:$0xff]
        %v253 = vld [vmem:[%s249 + $0x10] sm:$0xff]
        %v254 = vld [vmem:[%s249 + $0x18] sm:$0xff]
        %v255 = vld [vmem:[%s249 + $0x20] sm:$0xff]
        %v256 = vld [vmem:[%s249 + $0x28] sm:$0xff]
        %v257 = vld [vmem:[%s249 + $0x30] sm:$0xff]
        %v258 = vld [vmem:[%s249 + $0x38] sm:$0xff]
        %v259 = vld [vmem:[%s249 + $0x40] sm:$0xff]
        %v260 = vld [vmem:[%s249 + $0x48] sm:$0xff]
        %v261 = vld [vmem:[%s249 + $0x50] sm:$0xff]
        %v262 = vld [vmem:[%s249 + $0x58] sm:$0xff]
        %v263 = vld [vmem:[%s249 + $0x60] sm:$0xff]
        %v264 = vld [vmem:[%s249 + $0x68] sm:$0xff]
        %v265 = vld [vmem:[%s249 + $0x70] sm:$0xff]
        %v266 = vld [vmem:[%s249 + $0x78] sm:$0xff]
        %v267 = vpack.c.bf16 0.0, 0.0
        %v268 = vpack.c.bf16 %v252, %v251
        %v269 = vpack.c.bf16 %v254, %v253
        %v270 = vpack.c.bf16 %v256, %v255
        %v271 = vpack.c.bf16 %v258, %v257
        %v272 = vpack.c.bf16 %v260, %v259
        %v273 = vpack.c.bf16 %v262, %v261
        %v274 = vpack.c.bf16 %v264, %v263
        %v275 = vld [vmem:[%s1] sm:$0xf]
        %v276 = vld [vmem:[%s1 + $0x4] sm:$0xf]
        %v277 = vld [vmem:[%s1 + $0x8] sm:$0xf]
        %v278 = vld [vmem:[%s1 + $0xc] sm:$0xf]
        %v279 = vpack.c.bf16 %v251, 0.0
        %v280 = vpack.c.bf16 %v253, %v252
        %v281 = vpack.c.bf16 %v255, %v254
        %v282 = vpack.c.bf16 %v257, %v256
        %v283 = vpack.c.bf16 %v259, %v258
        %v284 = vpack.c.bf16 %v261, %v260
        %v285 = vpack.c.bf16 %v263, %v262
        %v286 = vpack.c.bf16 %v265, %v264
        %v287 = vld [vmem:[%s1 + $0x10] sm:$0xf]
        %v288 = vld [vmem:[%s1 + $0x14] sm:$0xf]
        %v289 = vld [vmem:[%s1 + $0x18] sm:$0xf]
        %v290 = vld [vmem:[%s1 + $0x1c] sm:$0xf]
        %v295 = vunpack.c.l.b16 %v287
        %v296 = vunpack.c.l.b16 %v288
        %v297 = vunpack.c.l.b16 %v289
        %v298 = vunpack.c.l.b16 %v290
        %v299 = vpack.c.b16 %v296, %v295
        %v300 = vpack.c.b16 %v298, %v297
        %vm303 = vcmask 261120
        %v305 = vsel %vm303, %v279, 0
        %v308 = vsel %vm303, %v280, 0
        %v311 = vsel %vm303, %v281, 0
        %v314 = vsel %vm303, %v282, 0
        %v317 = vsel %vm303, %v283, 0
        %v320 = vsel %vm303, %v284, 0
        %v323 = vsel %vm303, %v285, 0
        %v326 = vsel %vm303, %v286, 0
        %328 = vmatpush.bf16.msra.mxu0 0
        %329 = vmatpush.bf16.msra.mxu0 0
        %330 = vmatpush.bf16.msra.mxu0 0
        %331 = vmatpush.bf16.msra.mxu0 0
        %332 = vmatpush.bf16.msra.mxu0 0
        %333 = vmatpush.bf16.msra.mxu0 0
        %334 = vmatpush.bf16.msra.mxu0 %v300
        %335 = vmatpush.bf16.msra.mxu0 %v299
        %336 = vmatmul.bf16.gmra.mxu0 %v305
        %v337 = vpop.f32.mrf.mxu0
        %v338 = vadd.f32 0.0, %v337
        %v339 = vpop.f32.mrf.mxu0
        %v340 = vadd.f32 0.0, %v339
        %341 = vmatmul.bf16.gmra.mxu0 %v308
        %v342 = vpop.f32.mrf.mxu0
        %v343 = vadd.f32 0.0, %v342
        %v344 = vpop.f32.mrf.mxu0
        %v345 = vadd.f32 0.0, %v344
        %346 = vmatmul.bf16.gmra.mxu0 %v311
        %v347 = vpop.f32.mrf.mxu0
        %v348 = vadd.f32 0.0, %v347
        %v349 = vpop.f32.mrf.mxu0
        %v350 = vadd.f32 0.0, %v349
        %351 = vmatmul.bf16.gmra.mxu0 %v314
        %v352 = vpop.f32.mrf.mxu0
        %v353 = vadd.f32 0.0, %v352
        %v354 = vpop.f32.mrf.mxu0
        %v355 = vadd.f32 0.0, %v354
        %356 = vmatmul.bf16.gmra.mxu0 %v317
        %v357 = vpop.f32.mrf.mxu0
        %v358 = vadd.f32 0.0, %v357
        %v359 = vpop.f32.mrf.mxu0
        %v360 = vadd.f32 0.0, %v359
        %361 = vmatmul.bf16.gmra.mxu0 %v320
        %v362 = vpop.f32.mrf.mxu0
        %v363 = vadd.f32 0.0, %v362
        %v364 = vpop.f32.mrf.mxu0
        %v365 = vadd.f32 0.0, %v364
        %366 = vmatmul.bf16.gmra.mxu0 %v323
        %v367 = vpop.f32.mrf.mxu0
        %v368 = vadd.f32 0.0, %v367
        %v369 = vpop.f32.mrf.mxu0
        %v370 = vadd.f32 0.0, %v369
        %371 = vmatmul.bf16.gmra.mxu0 %v326
        %v372 = vpop.f32.mrf.mxu0
        %v373 = vadd.f32 0.0, %v372
        %v374 = vpop.f32.mrf.mxu0
        %v375 = vadd.f32 0.0, %v374
        %376 = vdwg.mxu0
        %v381 = vunpack.c.l.b16 %v275
        %v382 = vunpack.c.l.b16 %v276
        %v383 = vunpack.c.l.b16 %v277
        %v384 = vunpack.c.l.b16 %v278
        %v385 = vpack.c.b16 %v382, %v381
        %v386 = vpack.c.b16 %v384, %v383
        %v390 = vsel %vm303, %v267, 0
        %v393 = vsel %vm303, %v268, 0
        %v396 = vsel %vm303, %v269, 0
        %v399 = vsel %vm303, %v270, 0
        %v402 = vsel %vm303, %v271, 0
        %v405 = vsel %vm303, %v272, 0
        %v408 = vsel %vm303, %v273, 0
        %v411 = vsel %vm303, %v274, 0
        %413 = vmatpush.bf16.msra.mxu0 0
        %414 = vmatpush.bf16.msra.mxu0 0
        %415 = vmatpush.bf16.msra.mxu0 0
        %416 = vmatpush.bf16.msra.mxu0 0
        %417 = vmatpush.bf16.msra.mxu0 0
        %418 = vmatpush.bf16.msra.mxu0 0
        %419 = vmatpush.bf16.msra.mxu0 %v386
        %420 = vmatpush.bf16.msra.mxu0 %v385
        %421 = vmatmul.bf16.gmra.mxu0 %v390
        %v422 = vpop.f32.mrf.mxu0
        %v423 = vadd.f32 %v338, %v422
        %v424 = vpop.f32.mrf.mxu0
        %v425 = vadd.f32 %v340, %v424
        %426 = vmatmul.bf16.gmra.mxu0 %v393
        %v427 = vpop.f32.mrf.mxu0
        %v428 = vadd.f32 %v343, %v427
        %v429 = vpop.f32.mrf.mxu0
        %v430 = vadd.f32 %v345, %v429
        %431 = vmatmul.bf16.gmra.mxu0 %v396
        %v432 = vpop.f32.mrf.mxu0
        %v433 = vadd.f32 %v348, %v432
        %v434 = vpop.f32.mrf.mxu0
        %v435 = vadd.f32 %v350, %v434
        %436 = vmatmul.bf16.gmra.mxu0 %v399
        %v437 = vpop.f32.mrf.mxu0
        %v438 = vadd.f32 %v353, %v437
        %v439 = vpop.f32.mrf.mxu0
        %v440 = vadd.f32 %v355, %v439
        %441 = vmatmul.bf16.gmra.mxu0 %v402
        %v442 = vpop.f32.mrf.mxu0
        %v443 = vadd.f32 %v358, %v442
        %v444 = vpop.f32.mrf.mxu0
        %v445 = vadd.f32 %v360, %v444
        %446 = vmatmul.bf16.gmra.mxu0 %v405
        %v447 = vpop.f32.mrf.mxu0
        %v448 = vadd.f32 %v363, %v447
        %v449 = vpop.f32.mrf.mxu0
        %v450 = vadd.f32 %v365, %v449
        %451 = vmatmul.bf16.gmra.mxu0 %v408
        %v452 = vpop.f32.mrf.mxu0
        %v453 = vadd.f32 %v368, %v452
        %v454 = vpop.f32.mrf.mxu0
        %v455 = vadd.f32 %v370, %v454
        %456 = vmatmul.bf16.gmra.mxu0 %v411
        %v457 = vpop.f32.mrf.mxu0
        %v458 = vadd.f32 %v373, %v457
        %v459 = vpop.f32.mrf.mxu0
        %v460 = vadd.f32 %v375, %v459
        %461 = vdwg.mxu0
        %v462 = vpack.c.bf16 %v266, %v265
        %v463 = vld [vmem:[%s1 + $0x20] sm:$0xf]
        %v464 = vld [vmem:[%s1 + $0x24] sm:$0xf]
        %v465 = vld [vmem:[%s1 + $0x28] sm:$0xf]
        %v466 = vld [vmem:[%s1 + $0x2c] sm:$0xf]
        %v471 = vunpack.c.l.b16 %v463
        %v472 = vunpack.c.l.b16 %v464
        %v473 = vunpack.c.l.b16 %v465
        %v474 = vunpack.c.l.b16 %v466
        %v475 = vpack.c.b16 %v472, %v471
        %v476 = vpack.c.b16 %v474, %v473
        %v480 = vsel %vm303, %v462, 0
        %482 = vmatpush.bf16.msra.mxu0 0
        %483 = vmatpush.bf16.msra.mxu0 0
        %484 = vmatpush.bf16.msra.mxu0 0
        %485 = vmatpush.bf16.msra.mxu0 0
        %486 = vmatpush.bf16.msra.mxu0 0
        %487 = vmatpush.bf16.msra.mxu0 0
        %488 = vmatpush.bf16.msra.mxu0 %v476
        %489 = vmatpush.bf16.msra.mxu0 %v475
        %490 = vmatmul.bf16.gmra.mxu0 %v393
        %v491 = vpop.f32.mrf.mxu0
        %v492 = vadd.f32 0.0, %v491
        %v493 = vpop.f32.mrf.mxu0
        %v494 = vadd.f32 0.0, %v493
        %495 = vmatmul.bf16.gmra.mxu0 %v396
        %v496 = vpop.f32.mrf.mxu0
        %v497 = vadd.f32 0.0, %v496
        %v498 = vpop.f32.mrf.mxu0
        %v499 = vadd.f32 0.0, %v498
        %500 = vmatmul.bf16.gmra.mxu0 %v399
        %v501 = vpop.f32.mrf.mxu0
        %v502 = vadd.f32 0.0, %v501
        %v503 = vpop.f32.mrf.mxu0
        %v504 = vadd.f32 0.0, %v503
        %505 = vmatmul.bf16.gmra.mxu0 %v402
        %v506 = vpop.f32.mrf.mxu0
        %v507 = vadd.f32 0.0, %v506
        %v508 = vpop.f32.mrf.mxu0
        %v509 = vadd.f32 0.0, %v508
        %510 = vmatmul.bf16.gmra.mxu0 %v405
        %v511 = vpop.f32.mrf.mxu0
        %v512 = vadd.f32 0.0, %v511
        %v513 = vpop.f32.mrf.mxu0
        %v514 = vadd.f32 0.0, %v513
        %515 = vmatmul.bf16.gmra.mxu0 %v408
        %v516 = vpop.f32.mrf.mxu0
        %v517 = vadd.f32 0.0, %v516
        %v518 = vpop.f32.mrf.mxu0
        %v519 = vadd.f32 0.0, %v518
        %520 = vmatmul.bf16.gmra.mxu0 %v411
        %v521 = vpop.f32.mrf.mxu0
        %v522 = vadd.f32 0.0, %v521
        %v523 = vpop.f32.mrf.mxu0
        %v524 = vadd.f32 0.0, %v523
        %525 = vmatmul.bf16.gmra.mxu0 %v480
        %v526 = vpop.f32.mrf.mxu0
        %v527 = vadd.f32 0.0, %v526
        %v528 = vpop.f32.mrf.mxu0
        %v529 = vadd.f32 0.0, %v528
        %530 = vdwg.mxu0
        %v531 = vadd.f32 %v423, %v492
        %v532 = vadd.f32 %v425, %v494
        %v533 = vadd.f32 %v428, %v497
        %v534 = vadd.f32 %v430, %v499
        %v535 = vadd.f32 %v433, %v502
        %v536 = vadd.f32 %v435, %v504
        %v537 = vadd.f32 %v438, %v507
        %v538 = vadd.f32 %v440, %v509
        %v539 = vadd.f32 %v443, %v512
        %v540 = vadd.f32 %v445, %v514
        %v541 = vadd.f32 %v448, %v517
        %v542 = vadd.f32 %v450, %v519
        %v543 = vadd.f32 %v453, %v522
        %v544 = vadd.f32 %v455, %v524
        %v545 = vadd.f32 %v458, %v527
        %v546 = vadd.f32 %v460, %v529
        %v547 = vld [vmem:[%s2] sm:$0x1]
        %v548 = vperm.slane %v547, 0
        %v549 = vadd.f32 %v531, %v548
        %v550 = vadd.f32 %v532, %v548
        %v551 = vadd.f32 %v533, %v548
        %v552 = vadd.f32 %v534, %v548
        %v553 = vadd.f32 %v535, %v548
        %v554 = vadd.f32 %v536, %v548
        %v555 = vadd.f32 %v537, %v548
        %v556 = vadd.f32 %v538, %v548
        %v557 = vadd.f32 %v539, %v548
        %v558 = vadd.f32 %v540, %v548
        %v559 = vadd.f32 %v541, %v548
        %v560 = vadd.f32 %v542, %v548
        %v561 = vadd.f32 %v543, %v548
        %v562 = vadd.f32 %v544, %v548
        %v563 = vadd.f32 %v545, %v548
        %v564 = vadd.f32 %v546, %v548
        %v565 = vmax.f32 %v549, 0.0
        %v566 = vmax.f32 %v550, 0.0
        %v567 = vmax.f32 %v551, 0.0
        %v568 = vmax.f32 %v552, 0.0
        %v569 = vmax.f32 %v553, 0.0
        %v570 = vmax.f32 %v554, 0.0
        %v571 = vmax.f32 %v555, 0.0
        %v572 = vmax.f32 %v556, 0.0
        %v573 = vmax.f32 %v557, 0.0
        %v574 = vmax.f32 %v558, 0.0
        %v575 = vmax.f32 %v559, 0.0
        %v576 = vmax.f32 %v560, 0.0
        %v577 = vmax.f32 %v561, 0.0
        %v578 = vmax.f32 %v562, 0.0
        %v579 = vmax.f32 %v563, 0.0
        %v580 = vmax.f32 %v564, 0.0
        %v581 = vpack.c.bf16 %v566, %v565
        %v582 = vpack.c.bf16 %v568, %v567
        %v583 = vpack.c.bf16 %v570, %v569
        %v584 = vpack.c.bf16 %v572, %v571
        %v585 = vpack.c.bf16 %v574, %v573
        %v586 = vpack.c.bf16 %v576, %v575
        %v587 = vpack.c.bf16 %v578, %v577
        %v588 = vld [vmem:[%s1 + $0x30] sm:$0xf]
        %v589 = vld [vmem:[%s1 + $0x34] sm:$0xf]
        %v590 = vld [vmem:[%s1 + $0x38] sm:$0xf]
        %v591 = vld [vmem:[%s1 + $0x3c] sm:$0xf]
        %v592 = vld [vmem:[%s1 + $0x40] sm:$0xf]
        %v593 = vld [vmem:[%s1 + $0x44] sm:$0xf]
        %v594 = vld [vmem:[%s1 + $0x48] sm:$0xf]
        %v595 = vld [vmem:[%s1 + $0x4c] sm:$0xf]
        %v596 = vpack.c.bf16 %v565, 0.0
        %v597 = vpack.c.bf16 %v567, %v566
        %v598 = vpack.c.bf16 %v569, %v568
        %v599 = vpack.c.bf16 %v571, %v570
        %v600 = vpack.c.bf16 %v573, %v572
        %v601 = vpack.c.bf16 %v575, %v574
        %v602 = vpack.c.bf16 %v577, %v576
        %v603 = vpack.c.bf16 %v579, %v578
        %v604 = vld [vmem:[%s1 + $0x50] sm:$0xf]
        %v605 = vld [vmem:[%s1 + $0x54] sm:$0xf]
        %v606 = vld [vmem:[%s1 + $0x58] sm:$0xf]
        %v607 = vld [vmem:[%s1 + $0x5c] sm:$0xf]
        %v608 = vld [vmem:[%s1 + $0x60] sm:$0xf]
        %v609 = vld [vmem:[%s1 + $0x64] sm:$0xf]
        %v610 = vld [vmem:[%s1 + $0x68] sm:$0xf]
        %v611 = vld [vmem:[%s1 + $0x6c] sm:$0xf]
        %v620 = vunpack.c.l.b16 %v604
        %v621 = vunpack.c.l.b16 %v605
        %v622 = vunpack.c.l.b16 %v606
        %v623 = vunpack.c.l.b16 %v607
        %v624 = vunpack.c.l.b16 %v608
        %v625 = vunpack.c.l.b16 %v609
        %v626 = vunpack.c.l.b16 %v610
        %v627 = vunpack.c.l.b16 %v611
        %v628 = vpack.c.b16 %v621, %v620
        %v629 = vpack.c.b16 %v623, %v622
        %v630 = vpack.c.b16 %v625, %v624
        %v631 = vpack.c.b16 %v627, %v626
        %vm636 = vcmask 523264
        %v638 = vsel %vm636, %v596, 0
        %v641 = vsel %vm636, %v597, 0
        %v644 = vsel %vm636, %v598, 0
        %v647 = vsel %vm636, %v599, 0
        %v650 = vsel %vm636, %v600, 0
        %v653 = vsel %vm636, %v601, 0
        %v656 = vsel %vm636, %v602, 0
        %v659 = vsel %vm636, %v603, 0
        %661 = vmatpush.bf16.msra.mxu0 0
        %662 = vmatpush.bf16.msra.mxu0 0
        %663 = vmatpush.bf16.msra.mxu0 0
        %664 = vmatpush.bf16.msra.mxu0 0
        %665 = vmatpush.bf16.msra.mxu0 %v631
        %666 = vmatpush.bf16.msra.mxu0 %v630
        %667 = vmatpush.bf16.msra.mxu0 %v629
        %668 = vmatpush.bf16.msra.mxu0 %v628
        %669 = vmatmul.bf16.gmra.mxu0 %v638
        %v670 = vpop.f32.mrf.mxu0
        %v671 = vadd.f32 0.0, %v670
        %v672 = vpop.f32.mrf.mxu0
        %v673 = vadd.f32 0.0, %v672
        %674 = vmatmul.bf16.gmra.mxu0 %v641
        %v675 = vpop.f32.mrf.mxu0
        %v676 = vadd.f32 0.0, %v675
        %v677 = vpop.f32.mrf.mxu0
        %v678 = vadd.f32 0.0, %v677
        %679 = vmatmul.bf16.gmra.mxu0 %v644
        %v680 = vpop.f32.mrf.mxu0
        %v681 = vadd.f32 0.0, %v680
        %v682 = vpop.f32.mrf.mxu0
        %v683 = vadd.f32 0.0, %v682
        %684 = vmatmul.bf16.gmra.mxu0 %v647
        %v685 = vpop.f32.mrf.mxu0
        %v686 = vadd.f32 0.0, %v685
        %v687 = vpop.f32.mrf.mxu0
        %v688 = vadd.f32 0.0, %v687
        %689 = vmatmul.bf16.gmra.mxu0 %v650
        %v690 = vpop.f32.mrf.mxu0
        %v691 = vadd.f32 0.0, %v690
        %v692 = vpop.f32.mrf.mxu0
        %v693 = vadd.f32 0.0, %v692
        %694 = vmatmul.bf16.gmra.mxu0 %v653
        %v695 = vpop.f32.mrf.mxu0
        %v696 = vadd.f32 0.0, %v695
        %v697 = vpop.f32.mrf.mxu0
        %v698 = vadd.f32 0.0, %v697
        %699 = vmatmul.bf16.gmra.mxu0 %v656
        %v700 = vpop.f32.mrf.mxu0
        %v701 = vadd.f32 0.0, %v700
        %v702 = vpop.f32.mrf.mxu0
        %v703 = vadd.f32 0.0, %v702
        %704 = vmatmul.bf16.gmra.mxu0 %v659
        %v705 = vpop.f32.mrf.mxu0
        %v706 = vadd.f32 0.0, %v705
        %v707 = vpop.f32.mrf.mxu0
        %v708 = vadd.f32 0.0, %v707
        %709 = vdwg.mxu0
        %v718 = vunpack.c.l.b16 %v588
        %v719 = vunpack.c.l.b16 %v589
        %v720 = vunpack.c.l.b16 %v590
        %v721 = vunpack.c.l.b16 %v591
        %v722 = vunpack.c.l.b16 %v592
        %v723 = vunpack.c.l.b16 %v593
        %v724 = vunpack.c.l.b16 %v594
        %v725 = vunpack.c.l.b16 %v595
        %v726 = vpack.c.b16 %v719, %v718
        %v727 = vpack.c.b16 %v721, %v720
        %v728 = vpack.c.b16 %v723, %v722
        %v729 = vpack.c.b16 %v725, %v724
        %v734 = vsel %vm636, %v267, 0
        %v737 = vsel %vm636, %v581, 0
        %v740 = vsel %vm636, %v582, 0
        %v743 = vsel %vm636, %v583, 0
        %v746 = vsel %vm636, %v584, 0
        %v749 = vsel %vm636, %v585, 0
        %v752 = vsel %vm636, %v586, 0
        %v755 = vsel %vm636, %v587, 0
        %757 = vmatpush.bf16.msra.mxu0 0
        %758 = vmatpush.bf16.msra.mxu0 0
        %759 = vmatpush.bf16.msra.mxu0 0
        %760 = vmatpush.bf16.msra.mxu0 0
        %761 = vmatpush.bf16.msra.mxu0 %v729
        %762 = vmatpush.bf16.msra.mxu0 %v728
        %763 = vmatpush.bf16.msra.mxu0 %v727
        %764 = vmatpush.bf16.msra.mxu0 %v726
        %765 = vmatmul.bf16.gmra.mxu0 %v734
        %v766 = vpop.f32.mrf.mxu0
        %v767 = vadd.f32 %v671, %v766
        %v768 = vpop.f32.mrf.mxu0
        %v769 = vadd.f32 %v673, %v768
        %770 = vmatmul.bf16.gmra.mxu0 %v737
        %v771 = vpop.f32.mrf.mxu0
        %v772 = vadd.f32 %v676, %v771
        %v773 = vpop.f32.mrf.mxu0
        %v774 = vadd.f32 %v678, %v773
        %775 = vmatmul.bf16.gmra.mxu0 %v740
        %v776 = vpop.f32.mrf.mxu0
        %v777 = vadd.f32 %v681, %v776
        %v778 = vpop.f32.mrf.mxu0
        %v779 = vadd.f32 %v683, %v778
        %780 = vmatmul.bf16.gmra.mxu0 %v743
        %v781 = vpop.f32.mrf.mxu0
        %v782 = vadd.f32 %v686, %v781
        %v783 = vpop.f32.mrf.mxu0
        %v784 = vadd.f32 %v688, %v783
        %785 = vmatmul.bf16.gmra.mxu0 %v746
        %v786 = vpop.f32.mrf.mxu0
        %v787 = vadd.f32 %v691, %v786
        %v788 = vpop.f32.mrf.mxu0
        %v789 = vadd.f32 %v693, %v788
        %790 = vmatmul.bf16.gmra.mxu0 %v749
        %v791 = vpop.f32.mrf.mxu0
        %v792 = vadd.f32 %v696, %v791
        %v793 = vpop.f32.mrf.mxu0
        %v794 = vadd.f32 %v698, %v793
        %795 = vmatmul.bf16.gmra.mxu0 %v752
        %v796 = vpop.f32.mrf.mxu0
        %v797 = vadd.f32 %v701, %v796
        %v798 = vpop.f32.mrf.mxu0
        %v799 = vadd.f32 %v703, %v798
        %800 = vmatmul.bf16.gmra.mxu0 %v755
        %v801 = vpop.f32.mrf.mxu0
        %v802 = vadd.f32 %v706, %v801
        %v803 = vpop.f32.mrf.mxu0
        %v804 = vadd.f32 %v708, %v803
        %805 = vdwg.mxu0
        %v806 = vpack.c.bf16 %v580, %v579
        %v807 = vld [vmem:[%s1 + $0x70] sm:$0xf]
        %v808 = vld [vmem:[%s1 + $0x74] sm:$0xf]
        %v809 = vld [vmem:[%s1 + $0x78] sm:$0xf]
        %v810 = vld [vmem:[%s1 + $0x7c] sm:$0xf]
        %v811 = vld [vmem:[%s1 + $0x80] sm:$0xf]
        %v812 = vld [vmem:[%s1 + $0x84] sm:$0xf]
        %v813 = vld [vmem:[%s1 + $0x88] sm:$0xf]
        %v814 = vld [vmem:[%s1 + $0x8c] sm:$0xf]
        %v823 = vunpack.c.l.b16 %v807
        %v824 = vunpack.c.l.b16 %v808
        %v825 = vunpack.c.l.b16 %v809
        %v826 = vunpack.c.l.b16 %v810
        %v827 = vunpack.c.l.b16 %v811
        %v828 = vunpack.c.l.b16 %v812
        %v829 = vunpack.c.l.b16 %v813
        %v830 = vunpack.c.l.b16 %v814
        %v831 = vpack.c.b16 %v824, %v823
        %v832 = vpack.c.b16 %v826, %v825
        %v833 = vpack.c.b16 %v828, %v827
        %v834 = vpack.c.b16 %v830, %v829
        %v840 = vsel %vm636, %v806, 0
        %842 = vmatpush.bf16.msra.mxu0 0
        %843 = vmatpush.bf16.msra.mxu0 0
        %844 = vmatpush.bf16.msra.mxu0 0
        %845 = vmatpush.bf16.msra.mxu0 0
        %846 = vmatpush.bf16.msra.mxu0 %v834
        %847 = vmatpush.bf16.msra.mxu0 %v833
        %848 = vmatpush.bf16.msra.mxu0 %v832
        %849 = vmatpush.bf16.msra.mxu0 %v831
        %850 = vmatmul.bf16.gmra.mxu0 %v737
        %v851 = vpop.f32.mrf.mxu0
        %v852 = vadd.f32 0.0, %v851
        %v853 = vpop.f32.mrf.mxu0
        %v854 = vadd.f32 0.0, %v853
        %855 = vmatmul.bf16.gmra.mxu0 %v740
        %v856 = vpop.f32.mrf.mxu0
        %v857 = vadd.f32 0.0, %v856
        %v858 = vpop.f32.mrf.mxu0
        %v859 = vadd.f32 0.0, %v858
        %860 = vmatmul.bf16.gmra.mxu0 %v743
        %v861 = vpop.f32.mrf.mxu0
        %v862 = vadd.f32 0.0, %v861
        %v863 = vpop.f32.mrf.mxu0
        %v864 = vadd.f32 0.0, %v863
        %865 = vmatmul.bf16.gmra.mxu0 %v746
        %v866 = vpop.f32.mrf.mxu0
        %v867 = vadd.f32 0.0, %v866
        %v868 = vpop.f32.mrf.mxu0
        %v869 = vadd.f32 0.0, %v868
        %870 = vmatmul.bf16.gmra.mxu0 %v749
        %v871 = vpop.f32.mrf.mxu0
        %v872 = vadd.f32 0.0, %v871
        %v873 = vpop.f32.mrf.mxu0
        %v874 = vadd.f32 0.0, %v873
        %875 = vmatmul.bf16.gmra.mxu0 %v752
        %v876 = vpop.f32.mrf.mxu0
        %v877 = vadd.f32 0.0, %v876
        %v878 = vpop.f32.mrf.mxu0
        %v879 = vadd.f32 0.0, %v878
        %880 = vmatmul.bf16.gmra.mxu0 %v755
        %v881 = vpop.f32.mrf.mxu0
        %v882 = vadd.f32 0.0, %v881
        %v883 = vpop.f32.mrf.mxu0
        %v884 = vadd.f32 0.0, %v883
        %885 = vmatmul.bf16.gmra.mxu0 %v840
        %v886 = vpop.f32.mrf.mxu0
        %v887 = vadd.f32 0.0, %v886
        %v888 = vpop.f32.mrf.mxu0
        %v889 = vadd.f32 0.0, %v888
        %890 = vdwg.mxu0
        %v891 = vadd.f32 %v767, %v852
        %v892 = vadd.f32 %v769, %v854
        %v893 = vadd.f32 %v772, %v857
        %v894 = vadd.f32 %v774, %v859
        %v895 = vadd.f32 %v777, %v862
        %v896 = vadd.f32 %v779, %v864
        %v897 = vadd.f32 %v782, %v867
        %v898 = vadd.f32 %v784, %v869
        %v899 = vadd.f32 %v787, %v872
        %v900 = vadd.f32 %v789, %v874
        %v901 = vadd.f32 %v792, %v877
        %v902 = vadd.f32 %v794, %v879
        %v903 = vadd.f32 %v797, %v882
        %v904 = vadd.f32 %v799, %v884
        %v905 = vadd.f32 %v802, %v887
        %v906 = vadd.f32 %v804, %v889
        %v907 = vld [vmem:[%s2 + $0x1] sm:$0x1]
        %v908 = vperm.slane %v907, 0
        %v909 = vadd.f32 %v891, %v908
        %v910 = vadd.f32 %v892, %v908
        %v911 = vadd.f32 %v893, %v908
        %v912 = vadd.f32 %v894, %v908
        %v913 = vadd.f32 %v895, %v908
        %v914 = vadd.f32 %v896, %v908
        %v915 = vadd.f32 %v897, %v908
        %v916 = vadd.f32 %v898, %v908
        %v917 = vadd.f32 %v899, %v908
        %v918 = vadd.f32 %v900, %v908
        %v919 = vadd.f32 %v901, %v908
        %v920 = vadd.f32 %v902, %v908
        %v921 = vadd.f32 %v903, %v908
        %v922 = vadd.f32 %v904, %v908
        %v923 = vadd.f32 %v905, %v908
        %v924 = vadd.f32 %v906, %v908
        %v925 = vmax.f32 %v909, 0.0
        %v926 = vmax.f32 %v910, 0.0
        %v927 = vmax.f32 %v911, 0.0
        %v928 = vmax.f32 %v912, 0.0
        %v929 = vmax.f32 %v913, 0.0
        %v930 = vmax.f32 %v914, 0.0
        %v931 = vmax.f32 %v915, 0.0
        %v932 = vmax.f32 %v916, 0.0
        %v933 = vmax.f32 %v917, 0.0
        %v934 = vmax.f32 %v918, 0.0
        %v935 = vmax.f32 %v919, 0.0
        %v936 = vmax.f32 %v920, 0.0
        %v937 = vmax.f32 %v921, 0.0
        %v938 = vmax.f32 %v922, 0.0
        %v939 = vmax.f32 %v923, 0.0
        %v940 = vmax.f32 %v924, 0.0
        %v941 = vld [vmem:[%s1 + $0x90] sm:$0xf]
        %v942 = vld [vmem:[%s1 + $0x94] sm:$0xf]
        %v943 = vld [vmem:[%s1 + $0x98] sm:$0xf]
        %v944 = vld [vmem:[%s1 + $0x9c] sm:$0xf]
        %v945 = vld [vmem:[%s2 + $0x2] sm:$0x1]
        %v946 = vperm.slane %v945, 0
        %v951 = vunpack.c.l.b16 %v941
        %v952 = vunpack.c.l.b16 %v942
        %v953 = vunpack.c.l.b16 %v943
        %v954 = vunpack.c.l.b16 %v944
        %v955 = vpack.c.b16 %v952, %v951
        %v956 = vpack.c.b16 %v954, %v953
        %959 = vmatpush.bf16.msra.mxu0 0
        %960 = vmatpush.bf16.msra.mxu0 0
        %961 = vmatpush.bf16.msra.mxu0 0
        %962 = vmatpush.bf16.msra.mxu0 0
        %963 = vmatpush.bf16.msra.mxu0 0
        %964 = vmatpush.bf16.msra.mxu0 0
        %965 = vmatpush.bf16.msra.mxu0 %v956
        %966 = vmatpush.bf16.msra.mxu0 %v955
        %967 = vmatmul.bf16.gmra.mxu0 %v393
        %v968 = vpop.f32.mrf.mxu0
        %v969 = vadd.f32 %v946, %v968
        %v970 = vpop.f32.mrf.mxu0
        %v971 = vadd.f32 %v946, %v970
        %972 = vmatmul.bf16.gmra.mxu0 %v396
        %v973 = vpop.f32.mrf.mxu0
        %v974 = vadd.f32 %v946, %v973
        %v975 = vpop.f32.mrf.mxu0
        %v976 = vadd.f32 %v946, %v975
        %977 = vmatmul.bf16.gmra.mxu0 %v399
        %v978 = vpop.f32.mrf.mxu0
        %v979 = vadd.f32 %v946, %v978
        %v980 = vpop.f32.mrf.mxu0
        %v981 = vadd.f32 %v946, %v980
        %982 = vmatmul.bf16.gmra.mxu0 %v402
        %v983 = vpop.f32.mrf.mxu0
        %v984 = vadd.f32 %v946, %v983
        %v985 = vpop.f32.mrf.mxu0
        %v986 = vadd.f32 %v946, %v985
        %987 = vmatmul.bf16.gmra.mxu0 %v405
        %v988 = vpop.f32.mrf.mxu0
        %v989 = vadd.f32 %v946, %v988
        %v990 = vpop.f32.mrf.mxu0
        %v991 = vadd.f32 %v946, %v990
        %992 = vmatmul.bf16.gmra.mxu0 %v408
        %v993 = vpop.f32.mrf.mxu0
        %v994 = vadd.f32 %v946, %v993
        %v995 = vpop.f32.mrf.mxu0
        %v996 = vadd.f32 %v946, %v995
        %997 = vmatmul.bf16.gmra.mxu0 %v411
        %v998 = vpop.f32.mrf.mxu0
        %v999 = vadd.f32 %v946, %v998
        %v1000 = vpop.f32.mrf.mxu0
        %v1001 = vadd.f32 %v946, %v1000
        %1002 = vmatmul.bf16.gmra.mxu0 %v480
        %v1003 = vpop.f32.mrf.mxu0
        %v1004 = vadd.f32 %v946, %v1003
        %v1005 = vpop.f32.mrf.mxu0
        %v1006 = vadd.f32 %v946, %v1005
        %1007 = vdwg.mxu0
        %v1008 = vadd.f32 %v925, %v969
        %v1009 = vadd.f32 %v926, %v971
        %v1010 = vadd.f32 %v927, %v974
        %v1011 = vadd.f32 %v928, %v976
        %v1012 = vadd.f32 %v929, %v979
        %v1013 = vadd.f32 %v930, %v981
        %v1014 = vadd.f32 %v931, %v984
        %v1015 = vadd.f32 %v932, %v986
        %v1016 = vadd.f32 %v933, %v989
        %v1017 = vadd.f32 %v934, %v991
        %v1018 = vadd.f32 %v935, %v994
        %v1019 = vadd.f32 %v936, %v996
        %v1020 = vadd.f32 %v937, %v999
        %v1021 = vadd.f32 %v938, %v1001
        %v1022 = vadd.f32 %v939, %v1004
        %v1023 = vadd.f32 %v940, %v1006
        %v1024 = vmax.f32 %v1008, 0.0
        %v1025 = vmax.f32 %v1009, 0.0
        %v1026 = vmax.f32 %v1010, 0.0
        %v1027 = vmax.f32 %v1011, 0.0
        %v1028 = vmax.f32 %v1012, 0.0
        %v1029 = vmax.f32 %v1013, 0.0
        %v1030 = vmax.f32 %v1014, 0.0
        %v1031 = vmax.f32 %v1015, 0.0
        %v1032 = vmax.f32 %v1016, 0.0
        %v1033 = vmax.f32 %v1017, 0.0
        %v1034 = vmax.f32 %v1018, 0.0
        %v1035 = vmax.f32 %v1019, 0.0
        %v1036 = vmax.f32 %v1020, 0.0
        %v1037 = vmax.f32 %v1021, 0.0
        %v1038 = vmax.f32 %v1022, 0.0
        %v1039 = vmax.f32 %v1023, 0.0
        %v1040 = vpack.c.bf16 %v1025, %v1024
        %v1041 = vpack.c.bf16 %v1027, %v1026
        %v1042 = vpack.c.bf16 %v1029, %v1028
        %v1043 = vpack.c.bf16 %v1031, %v1030
        %v1044 = vpack.c.bf16 %v1033, %v1032
        %v1045 = vpack.c.bf16 %v1035, %v1034
        %v1046 = vld [vmem:[%s1 + $0xa0] sm:$0xf]
        %v1047 = vld [vmem:[%s1 + $0xa4] sm:$0xf]
        %v1048 = vld [vmem:[%s1 + $0xa8] sm:$0xf]
        %v1049 = vld [vmem:[%s1 + $0xac] sm:$0xf]
        %v1050 = vld [vmem:[%s1 + $0xb0] sm:$0xf]
        %v1051 = vld [vmem:[%s1 + $0xb4] sm:$0xf]
        %v1052 = vld [vmem:[%s1 + $0xb8] sm:$0xf]
        %v1053 = vld [vmem:[%s1 + $0xbc] sm:$0xf]
        %v1054 = vpack.c.bf16 %v1037, %v1036
        %v1055 = vld [vmem:[%s1 + $0xc0] sm:$0xf]
        %v1056 = vld [vmem:[%s1 + $0xc4] sm:$0xf]
        %v1057 = vld [vmem:[%s1 + $0xc8] sm:$0xf]
        %v1058 = vld [vmem:[%s1 + $0xcc] sm:$0xf]
        %v1059 = vld [vmem:[%s1 + $0xd0] sm:$0xf]
        %v1060 = vld [vmem:[%s1 + $0xd4] sm:$0xf]
        %v1061 = vld [vmem:[%s1 + $0xd8] sm:$0xf]
        %v1062 = vld [vmem:[%s1 + $0xdc] sm:$0xf]
        %v1071 = vunpack.c.l.b16 %v1055
        %v1072 = vunpack.c.l.b16 %v1056
        %v1073 = vunpack.c.l.b16 %v1057
        %v1074 = vunpack.c.l.b16 %v1058
        %v1075 = vunpack.c.l.b16 %v1059
        %v1076 = vunpack.c.l.b16 %v1060
        %v1077 = vunpack.c.l.b16 %v1061
        %v1078 = vunpack.c.l.b16 %v1062
        %v1079 = vpack.c.b16 %v1072, %v1071
        %v1080 = vpack.c.b16 %v1074, %v1073
        %v1081 = vpack.c.b16 %v1076, %v1075
        %v1082 = vpack.c.b16 %v1078, %v1077
        %v1088 = vsel %vm636, %v1040, 0
        %v1091 = vsel %vm636, %v1041, 0
        %v1094 = vsel %vm636, %v1042, 0
        %v1097 = vsel %vm636, %v1043, 0
        %v1100 = vsel %vm636, %v1044, 0
        %v1103 = vsel %vm636, %v1045, 0
        %v1106 = vsel %vm636, %v1054, 0
        %1108 = vmatpush.bf16.msra.mxu0 0
        %1109 = vmatpush.bf16.msra.mxu0 0
        %1110 = vmatpush.bf16.msra.mxu0 0
        %1111 = vmatpush.bf16.msra.mxu0 0
        %1112 = vmatpush.bf16.msra.mxu0 %v1082
        %1113 = vmatpush.bf16.msra.mxu0 %v1081
        %1114 = vmatpush.bf16.msra.mxu0 %v1080
        %1115 = vmatpush.bf16.msra.mxu0 %v1079
        %1116 = vmatmul.bf16.gmra.mxu0 %v734
        %v1117 = vpop.f32.mrf.mxu0
        %v1118 = vadd.f32 0.0, %v1117
        %v1119 = vpop.f32.mrf.mxu0
        %v1120 = vadd.f32 0.0, %v1119
        %1121 = vmatmul.bf16.gmra.mxu0 %v1088
        %v1122 = vpop.f32.mrf.mxu0
        %v1123 = vadd.f32 0.0, %v1122
        %v1124 = vpop.f32.mrf.mxu0
        %v1125 = vadd.f32 0.0, %v1124
        %1126 = vmatmul.bf16.gmra.mxu0 %v1091
        %v1127 = vpop.f32.mrf.mxu0
        %v1128 = vadd.f32 0.0, %v1127
        %v1129 = vpop.f32.mrf.mxu0
        %v1130 = vadd.f32 0.0, %v1129
        %1131 = vmatmul.bf16.gmra.mxu0 %v1094
        %v1132 = vpop.f32.mrf.mxu0
        %v1133 = vadd.f32 0.0, %v1132
        %v1134 = vpop.f32.mrf.mxu0
        %v1135 = vadd.f32 0.0, %v1134
        %1136 = vmatmul.bf16.gmra.mxu0 %v1097
        %v1137 = vpop.f32.mrf.mxu0
        %v1138 = vadd.f32 0.0, %v1137
        %v1139 = vpop.f32.mrf.mxu0
        %v1140 = vadd.f32 0.0, %v1139
        %1141 = vmatmul.bf16.gmra.mxu0 %v1100
        %v1142 = vpop.f32.mrf.mxu0
        %v1143 = vadd.f32 0.0, %v1142
        %v1144 = vpop.f32.mrf.mxu0
        %v1145 = vadd.f32 0.0, %v1144
        %1146 = vmatmul.bf16.gmra.mxu0 %v1103
        %v1147 = vpop.f32.mrf.mxu0
        %v1148 = vadd.f32 0.0, %v1147
        %v1149 = vpop.f32.mrf.mxu0
        %v1150 = vadd.f32 0.0, %v1149
        %1151 = vmatmul.bf16.gmra.mxu0 %v1106
        %v1152 = vpop.f32.mrf.mxu0
        %v1153 = vadd.f32 0.0, %v1152
        %v1154 = vpop.f32.mrf.mxu0
        %v1155 = vadd.f32 0.0, %v1154
        %1156 = vdwg.mxu0
        %v1165 = vunpack.c.l.b16 %v1046
        %v1166 = vunpack.c.l.b16 %v1047
        %v1167 = vunpack.c.l.b16 %v1048
        %v1168 = vunpack.c.l.b16 %v1049
        %v1169 = vunpack.c.l.b16 %v1050
        %v1170 = vunpack.c.l.b16 %v1051
        %v1171 = vunpack.c.l.b16 %v1052
        %v1172 = vunpack.c.l.b16 %v1053
        %v1173 = vpack.c.b16 %v1166, %v1165
        %v1174 = vpack.c.b16 %v1168, %v1167
        %v1175 = vpack.c.b16 %v1170, %v1169
        %v1176 = vpack.c.b16 %v1172, %v1171
        %1181 = vmatpush.bf16.msra.mxu0 0
        %1182 = vmatpush.bf16.msra.mxu0 0
        %1183 = vmatpush.bf16.msra.mxu0 0
        %1184 = vmatpush.bf16.msra.mxu0 0
        %1185 = vmatpush.bf16.msra.mxu0 %v1176
        %1186 = vmatpush.bf16.msra.mxu0 %v1175
        %1187 = vmatpush.bf16.msra.mxu0 %v1174
        %1188 = vmatpush.bf16.msra.mxu0 %v1173
        %1189 = vmatmul.bf16.gmra.mxu0 %v734
        %v1190 = vpop.f32.mrf.mxu0
        %v1191 = vadd.f32 %v1118, %v1190
        %v1192 = vpop.f32.mrf.mxu0
        %v1193 = vadd.f32 %v1120, %v1192
        %1194 = vmatmul.bf16.gmra.mxu0 %v734
        %v1195 = vpop.f32.mrf.mxu0
        %v1196 = vadd.f32 %v1123, %v1195
        %v1197 = vpop.f32.mrf.mxu0
        %v1198 = vadd.f32 %v1125, %v1197
        %1199 = vmatmul.bf16.gmra.mxu0 %v1088
        %v1200 = vpop.f32.mrf.mxu0
        %v1201 = vadd.f32 %v1128, %v1200
        %v1202 = vpop.f32.mrf.mxu0
        %v1203 = vadd.f32 %v1130, %v1202
        %1204 = vmatmul.bf16.gmra.mxu0 %v1091
        %v1205 = vpop.f32.mrf.mxu0
        %v1206 = vadd.f32 %v1133, %v1205
        %v1207 = vpop.f32.mrf.mxu0
        %v1208 = vadd.f32 %v1135, %v1207
        %1209 = vmatmul.bf16.gmra.mxu0 %v1094
        %v1210 = vpop.f32.mrf.mxu0
        %v1211 = vadd.f32 %v1138, %v1210
        %v1212 = vpop.f32.mrf.mxu0
        %v1213 = vadd.f32 %v1140, %v1212
        %1214 = vmatmul.bf16.gmra.mxu0 %v1097
        %v1215 = vpop.f32.mrf.mxu0
        %v1216 = vadd.f32 %v1143, %v1215
        %v1217 = vpop.f32.mrf.mxu0
        %v1218 = vadd.f32 %v1145, %v1217
        %1219 = vmatmul.bf16.gmra.mxu0 %v1100
        %v1220 = vpop.f32.mrf.mxu0
        %v1221 = vadd.f32 %v1148, %v1220
        %v1222 = vpop.f32.mrf.mxu0
        %v1223 = vadd.f32 %v1150, %v1222
        %1224 = vmatmul.bf16.gmra.mxu0 %v1103
        %v1225 = vpop.f32.mrf.mxu0
        %v1226 = vadd.f32 %v1153, %v1225
        %v1227 = vpop.f32.mrf.mxu0
        %v1228 = vadd.f32 %v1155, %v1227
        %1229 = vdwg.mxu0
        %v1230 = vpack.c.bf16 %v1039, %v1038
        %v1231 = vld [vmem:[%s1 + $0xe0] sm:$0xf]
        %v1232 = vld [vmem:[%s1 + $0xe4] sm:$0xf]
        %v1233 = vld [vmem:[%s1 + $0xe8] sm:$0xf]
        %v1234 = vld [vmem:[%s1 + $0xec] sm:$0xf]
        %v1235 = vld [vmem:[%s1 + $0xf0] sm:$0xf]
        %v1236 = vld [vmem:[%s1 + $0xf4] sm:$0xf]
        %v1237 = vld [vmem:[%s1 + $0xf8] sm:$0xf]
        %v1238 = vld [vmem:[%s1 + $0xfc] sm:$0xf]
        %v1247 = vunpack.c.l.b16 %v1231
        %v1248 = vunpack.c.l.b16 %v1232
        %v1249 = vunpack.c.l.b16 %v1233
        %v1250 = vunpack.c.l.b16 %v1234
        %v1251 = vunpack.c.l.b16 %v1235
        %v1252 = vunpack.c.l.b16 %v1236
        %v1253 = vunpack.c.l.b16 %v1237
        %v1254 = vunpack.c.l.b16 %v1238
        %v1255 = vpack.c.b16 %v1248, %v1247
        %v1256 = vpack.c.b16 %v1250, %v1249
        %v1257 = vpack.c.b16 %v1252, %v1251
        %v1258 = vpack.c.b16 %v1254, %v1253
        %v1264 = vsel %vm636, %v1230, 0
        %1266 = vmatpush.bf16.msra.mxu0 0
        %1267 = vmatpush.bf16.msra.mxu0 0
        %1268 = vmatpush.bf16.msra.mxu0 0
        %1269 = vmatpush.bf16.msra.mxu0 0
        %1270 = vmatpush.bf16.msra.mxu0 %v1258
        %1271 = vmatpush.bf16.msra.mxu0 %v1257
        %1272 = vmatpush.bf16.msra.mxu0 %v1256
        %1273 = vmatpush.bf16.msra.mxu0 %v1255
        %1274 = vmatmul.bf16.gmra.mxu0 %v1088
        %v1275 = vpop.f32.mrf.mxu0
        %v1276 = vadd.f32 0.0, %v1275
        %v1277 = vpop.f32.mrf.mxu0
        %v1278 = vadd.f32 0.0, %v1277
        %1279 = vmatmul.bf16.gmra.mxu0 %v1091
        %v1280 = vpop.f32.mrf.mxu0
        %v1281 = vadd.f32 0.0, %v1280
        %v1282 = vpop.f32.mrf.mxu0
        %v1283 = vadd.f32 0.0, %v1282
        %1284 = vmatmul.bf16.gmra.mxu0 %v1094
        %v1285 = vpop.f32.mrf.mxu0
        %v1286 = vadd.f32 0.0, %v1285
        %v1287 = vpop.f32.mrf.mxu0
        %v1288 = vadd.f32 0.0, %v1287
        %1289 = vmatmul.bf16.gmra.mxu0 %v1097
        %v1290 = vpop.f32.mrf.mxu0
        %v1291 = vadd.f32 0.0, %v1290
        %v1292 = vpop.f32.mrf.mxu0
        %v1293 = vadd.f32 0.0, %v1292
        %1294 = vmatmul.bf16.gmra.mxu0 %v1100
        %v1295 = vpop.f32.mrf.mxu0
        %v1296 = vadd.f32 0.0, %v1295
        %v1297 = vpop.f32.mrf.mxu0
        %v1298 = vadd.f32 0.0, %v1297
        %1299 = vmatmul.bf16.gmra.mxu0 %v1103
        %v1300 = vpop.f32.mrf.mxu0
        %v1301 = vadd.f32 0.0, %v1300
        %v1302 = vpop.f32.mrf.mxu0
        %v1303 = vadd.f32 0.0, %v1302
        %1304 = vmatmul.bf16.gmra.mxu0 %v1106
        %v1305 = vpop.f32.mrf.mxu0
        %v1306 = vadd.f32 0.0, %v1305
        %v1307 = vpop.f32.mrf.mxu0
        %v1308 = vadd.f32 0.0, %v1307
        %1309 = vmatmul.bf16.gmra.mxu0 %v1264
        %v1310 = vpop.f32.mrf.mxu0
        %v1311 = vadd.f32 0.0, %v1310
        %v1312 = vpop.f32.mrf.mxu0
        %v1313 = vadd.f32 0.0, %v1312
        %1314 = vdwg.mxu0
        %v1315 = vadd.f32 %v1191, %v1276
        %v1316 = vadd.f32 %v1193, %v1278
        %v1317 = vadd.f32 %v1196, %v1281
        %v1318 = vadd.f32 %v1198, %v1283
        %v1319 = vadd.f32 %v1201, %v1286
        %v1320 = vadd.f32 %v1203, %v1288
        %v1321 = vadd.f32 %v1206, %v1291
        %v1322 = vadd.f32 %v1208, %v1293
        %v1323 = vadd.f32 %v1211, %v1296
        %v1324 = vadd.f32 %v1213, %v1298
        %v1325 = vadd.f32 %v1216, %v1301
        %v1326 = vadd.f32 %v1218, %v1303
        %v1327 = vadd.f32 %v1221, %v1306
        %v1328 = vadd.f32 %v1223, %v1308
        %v1329 = vadd.f32 %v1226, %v1311
        %v1330 = vadd.f32 %v1228, %v1313
        %v1331 = vld [vmem:[%s2 + $0x3] sm:$0x1]
        %v1332 = vperm.slane %v1331, 0
        %v1333 = vadd.f32 %v1315, %v1332
        %v1334 = vadd.f32 %v1316, %v1332
        %v1335 = vadd.f32 %v1317, %v1332
        %v1336 = vadd.f32 %v1318, %v1332
        %v1337 = vadd.f32 %v1319, %v1332
        %v1338 = vadd.f32 %v1320, %v1332
        %v1339 = vadd.f32 %v1321, %v1332
        %v1340 = vadd.f32 %v1322, %v1332
        %v1341 = vadd.f32 %v1323, %v1332
        %v1342 = vadd.f32 %v1324, %v1332
        %v1343 = vadd.f32 %v1325, %v1332
        %v1344 = vadd.f32 %v1326, %v1332
        %v1345 = vadd.f32 %v1327, %v1332
        %v1346 = vadd.f32 %v1328, %v1332
        %v1347 = vadd.f32 %v1329, %v1332
        %v1348 = vadd.f32 %v1330, %v1332
        %v1349 = vmax.f32 %v1333, 0.0
        %v1350 = vmax.f32 %v1334, 0.0
        %v1351 = vmax.f32 %v1335, 0.0
        %v1352 = vmax.f32 %v1336, 0.0
        %v1353 = vmax.f32 %v1337, 0.0
        %v1354 = vmax.f32 %v1338, 0.0
        %v1355 = vmax.f32 %v1339, 0.0
        %v1356 = vmax.f32 %v1340, 0.0
        %v1357 = vmax.f32 %v1341, 0.0
        %v1358 = vmax.f32 %v1342, 0.0
        %v1359 = vmax.f32 %v1343, 0.0
        %v1360 = vmax.f32 %v1344, 0.0
        %v1361 = vmax.f32 %v1345, 0.0
        %v1362 = vmax.f32 %v1346, 0.0
        %v1363 = vmax.f32 %v1347, 0.0
        %v1364 = vmax.f32 %v1348, 0.0
        %v1365 = vpack.c.bf16 %v1350, %v1349
        %v1366 = vpack.c.bf16 %v1352, %v1351
        %v1367 = vpack.c.bf16 %v1354, %v1353
        %v1368 = vpack.c.bf16 %v1356, %v1355
        %v1369 = vpack.c.bf16 %v1358, %v1357
        %v1370 = vpack.c.bf16 %v1360, %v1359
        %v1371 = vld [vmem:[%s1 + $0x100] sm:$0xf]
        %v1372 = vld [vmem:[%s1 + $0x104] sm:$0xf]
        %v1373 = vld [vmem:[%s1 + $0x108] sm:$0xf]
        %v1374 = vld [vmem:[%s1 + $0x10c] sm:$0xf]
        %v1375 = vld [vmem:[%s1 + $0x110] sm:$0xf]
        %v1376 = vld [vmem:[%s1 + $0x114] sm:$0xf]
        %v1377 = vld [vmem:[%s1 + $0x118] sm:$0xf]
        %v1378 = vld [vmem:[%s1 + $0x11c] sm:$0xf]
        %v1379 = vpack.c.bf16 %v1362, %v1361
        %v1380 = vld [vmem:[%s1 + $0x120] sm:$0xf]
        %v1381 = vld [vmem:[%s1 + $0x124] sm:$0xf]
        %v1382 = vld [vmem:[%s1 + $0x128] sm:$0xf]
        %v1383 = vld [vmem:[%s1 + $0x12c] sm:$0xf]
        %v1384 = vld [vmem:[%s1 + $0x130] sm:$0xf]
        %v1385 = vld [vmem:[%s1 + $0x134] sm:$0xf]
        %v1386 = vld [vmem:[%s1 + $0x138] sm:$0xf]
        %v1387 = vld [vmem:[%s1 + $0x13c] sm:$0xf]
        %v1396 = vunpack.c.l.b16 %v1380
        %v1397 = vunpack.c.l.b16 %v1381
        %v1398 = vunpack.c.l.b16 %v1382
        %v1399 = vunpack.c.l.b16 %v1383
        %v1400 = vunpack.c.l.b16 %v1384
        %v1401 = vunpack.c.l.b16 %v1385
        %v1402 = vunpack.c.l.b16 %v1386
        %v1403 = vunpack.c.l.b16 %v1387
        %v1404 = vpack.c.b16 %v1397, %v1396
        %v1405 = vpack.c.b16 %v1399, %v1398
        %v1406 = vpack.c.b16 %v1401, %v1400
        %v1407 = vpack.c.b16 %v1403, %v1402
        %v1413 = vsel %vm636, %v1365, 0
        %v1416 = vsel %vm636, %v1366, 0
        %v1419 = vsel %vm636, %v1367, 0
        %v1422 = vsel %vm636, %v1368, 0
        %v1425 = vsel %vm636, %v1369, 0
        %v1428 = vsel %vm636, %v1370, 0
        %v1431 = vsel %vm636, %v1379, 0
        %1433 = vmatpush.bf16.msra.mxu0 0
        %1434 = vmatpush.bf16.msra.mxu0 0
        %1435 = vmatpush.bf16.msra.mxu0 0
        %1436 = vmatpush.bf16.msra.mxu0 0
        %1437 = vmatpush.bf16.msra.mxu0 %v1407
        %1438 = vmatpush.bf16.msra.mxu0 %v1406
        %1439 = vmatpush.bf16.msra.mxu0 %v1405
        %1440 = vmatpush.bf16.msra.mxu0 %v1404
        %1441 = vmatmul.bf16.gmra.mxu0 %v734
        %v1442 = vpop.f32.mrf.mxu0
        %v1443 = vadd.f32 0.0, %v1442
        %v1444 = vpop.f32.mrf.mxu0
        %v1445 = vadd.f32 0.0, %v1444
        %1446 = vmatmul.bf16.gmra.mxu0 %v1413
        %v1447 = vpop.f32.mrf.mxu0
        %v1448 = vadd.f32 0.0, %v1447
        %v1449 = vpop.f32.mrf.mxu0
        %v1450 = vadd.f32 0.0, %v1449
        %1451 = vmatmul.bf16.gmra.mxu0 %v1416
        %v1452 = vpop.f32.mrf.mxu0
        %v1453 = vadd.f32 0.0, %v1452
        %v1454 = vpop.f32.mrf.mxu0
        %v1455 = vadd.f32 0.0, %v1454
        %1456 = vmatmul.bf16.gmra.mxu0 %v1419
        %v1457 = vpop.f32.mrf.mxu0
        %v1458 = vadd.f32 0.0, %v1457
        %v1459 = vpop.f32.mrf.mxu0
        %v1460 = vadd.f32 0.0, %v1459
        %1461 = vmatmul.bf16.gmra.mxu0 %v1422
        %v1462 = vpop.f32.mrf.mxu0
        %v1463 = vadd.f32 0.0, %v1462
        %v1464 = vpop.f32.mrf.mxu0
        %v1465 = vadd.f32 0.0, %v1464
        %1466 = vmatmul.bf16.gmra.mxu0 %v1425
        %v1467 = vpop.f32.mrf.mxu0
        %v1468 = vadd.f32 0.0, %v1467
        %v1469 = vpop.f32.mrf.mxu0
        %v1470 = vadd.f32 0.0, %v1469
        %1471 = vmatmul.bf16.gmra.mxu0 %v1428
        %v1472 = vpop.f32.mrf.mxu0
        %v1473 = vadd.f32 0.0, %v1472
        %v1474 = vpop.f32.mrf.mxu0
        %v1475 = vadd.f32 0.0, %v1474
        %1476 = vmatmul.bf16.gmra.mxu0 %v1431
        %v1477 = vpop.f32.mrf.mxu0
        %v1478 = vadd.f32 0.0, %v1477
        %v1479 = vpop.f32.mrf.mxu0
        %v1480 = vadd.f32 0.0, %v1479
        %1481 = vdwg.mxu0
        %v1490 = vunpack.c.l.b16 %v1371
        %v1491 = vunpack.c.l.b16 %v1372
        %v1492 = vunpack.c.l.b16 %v1373
        %v1493 = vunpack.c.l.b16 %v1374
        %v1494 = vunpack.c.l.b16 %v1375
        %v1495 = vunpack.c.l.b16 %v1376
        %v1496 = vunpack.c.l.b16 %v1377
        %v1497 = vunpack.c.l.b16 %v1378
        %v1498 = vpack.c.b16 %v1491, %v1490
        %v1499 = vpack.c.b16 %v1493, %v1492
        %v1500 = vpack.c.b16 %v1495, %v1494
        %v1501 = vpack.c.b16 %v1497, %v1496
        %1506 = vmatpush.bf16.msra.mxu0 0
        %1507 = vmatpush.bf16.msra.mxu0 0
        %1508 = vmatpush.bf16.msra.mxu0 0
        %1509 = vmatpush.bf16.msra.mxu0 0
        %1510 = vmatpush.bf16.msra.mxu0 %v1501
        %1511 = vmatpush.bf16.msra.mxu0 %v1500
        %1512 = vmatpush.bf16.msra.mxu0 %v1499
        %1513 = vmatpush.bf16.msra.mxu0 %v1498
        %1514 = vmatmul.bf16.gmra.mxu0 %v734
        %v1515 = vpop.f32.mrf.mxu0
        %v1516 = vadd.f32 %v1443, %v1515
        %v1517 = vpop.f32.mrf.mxu0
        %v1518 = vadd.f32 %v1445, %v1517
        %1519 = vmatmul.bf16.gmra.mxu0 %v734
        %v1520 = vpop.f32.mrf.mxu0
        %v1521 = vadd.f32 %v1448, %v1520
        %v1522 = vpop.f32.mrf.mxu0
        %v1523 = vadd.f32 %v1450, %v1522
        %1524 = vmatmul.bf16.gmra.mxu0 %v1413
        %v1525 = vpop.f32.mrf.mxu0
        %v1526 = vadd.f32 %v1453, %v1525
        %v1527 = vpop.f32.mrf.mxu0
        %v1528 = vadd.f32 %v1455, %v1527
        %1529 = vmatmul.bf16.gmra.mxu0 %v1416
        %v1530 = vpop.f32.mrf.mxu0
        %v1531 = vadd.f32 %v1458, %v1530
        %v1532 = vpop.f32.mrf.mxu0
        %v1533 = vadd.f32 %v1460, %v1532
        %1534 = vmatmul.bf16.gmra.mxu0 %v1419
        %v1535 = vpop.f32.mrf.mxu0
        %v1536 = vadd.f32 %v1463, %v1535
        %v1537 = vpop.f32.mrf.mxu0
        %v1538 = vadd.f32 %v1465, %v1537
        %1539 = vmatmul.bf16.gmra.mxu0 %v1422
        %v1540 = vpop.f32.mrf.mxu0
        %v1541 = vadd.f32 %v1468, %v1540
        %v1542 = vpop.f32.mrf.mxu0
        %v1543 = vadd.f32 %v1470, %v1542
        %1544 = vmatmul.bf16.gmra.mxu0 %v1425
        %v1545 = vpop.f32.mrf.mxu0
        %v1546 = vadd.f32 %v1473, %v1545
        %v1547 = vpop.f32.mrf.mxu0
        %v1548 = vadd.f32 %v1475, %v1547
        %1549 = vmatmul.bf16.gmra.mxu0 %v1428
        %v1550 = vpop.f32.mrf.mxu0
        %v1551 = vadd.f32 %v1478, %v1550
        %v1552 = vpop.f32.mrf.mxu0
        %v1553 = vadd.f32 %v1480, %v1552
        %1554 = vdwg.mxu0
        %v1555 = vpack.c.bf16 %v1364, %v1363
        %v1556 = vld [vmem:[%s1 + $0x140] sm:$0xf]
        %v1557 = vld [vmem:[%s1 + $0x144] sm:$0xf]
        %v1558 = vld [vmem:[%s1 + $0x148] sm:$0xf]
        %v1559 = vld [vmem:[%s1 + $0x14c] sm:$0xf]
        %v1560 = vld [vmem:[%s1 + $0x150] sm:$0xf]
        %v1561 = vld [vmem:[%s1 + $0x154] sm:$0xf]
        %v1562 = vld [vmem:[%s1 + $0x158] sm:$0xf]
        %v1563 = vld [vmem:[%s1 + $0x15c] sm:$0xf]
        %v1572 = vunpack.c.l.b16 %v1556
        %v1573 = vunpack.c.l.b16 %v1557
        %v1574 = vunpack.c.l.b16 %v1558
        %v1575 = vunpack.c.l.b16 %v1559
        %v1576 = vunpack.c.l.b16 %v1560
        %v1577 = vunpack.c.l.b16 %v1561
        %v1578 = vunpack.c.l.b16 %v1562
        %v1579 = vunpack.c.l.b16 %v1563
        %v1580 = vpack.c.b16 %v1573, %v1572
        %v1581 = vpack.c.b16 %v1575, %v1574
        %v1582 = vpack.c.b16 %v1577, %v1576
        %v1583 = vpack.c.b16 %v1579, %v1578
        %v1589 = vsel %vm636, %v1555, 0
        %1591 = vmatpush.bf16.msra.mxu0 0
        %1592 = vmatpush.bf16.msra.mxu0 0
        %1593 = vmatpush.bf16.msra.mxu0 0
        %1594 = vmatpush.bf16.msra.mxu0 0
        %1595 = vmatpush.bf16.msra.mxu0 %v1583
        %1596 = vmatpush.bf16.msra.mxu0 %v1582
        %1597 = vmatpush.bf16.msra.mxu0 %v1581
        %1598 = vmatpush.bf16.msra.mxu0 %v1580
        %1599 = vmatmul.bf16.gmra.mxu0 %v1413
        %v1600 = vpop.f32.mrf.mxu0
        %v1601 = vadd.f32 0.0, %v1600
        %v1602 = vpop.f32.mrf.mxu0
        %v1603 = vadd.f32 0.0, %v1602
        %1604 = vmatmul.bf16.gmra.mxu0 %v1416
        %v1605 = vpop.f32.mrf.mxu0
        %v1606 = vadd.f32 0.0, %v1605
        %v1607 = vpop.f32.mrf.mxu0
        %v1608 = vadd.f32 0.0, %v1607
        %1609 = vmatmul.bf16.gmra.mxu0 %v1419
        %v1610 = vpop.f32.mrf.mxu0
        %v1611 = vadd.f32 0.0, %v1610
        %v1612 = vpop.f32.mrf.mxu0
        %v1613 = vadd.f32 0.0, %v1612
        %1614 = vmatmul.bf16.gmra.mxu0 %v1422
        %v1615 = vpop.f32.mrf.mxu0
        %v1616 = vadd.f32 0.0, %v1615
        %v1617 = vpop.f32.mrf.mxu0
        %v1618 = vadd.f32 0.0, %v1617
        %1619 = vmatmul.bf16.gmra.mxu0 %v1425
        %v1620 = vpop.f32.mrf.mxu0
        %v1621 = vadd.f32 0.0, %v1620
        %v1622 = vpop.f32.mrf.mxu0
        %v1623 = vadd.f32 0.0, %v1622
        %1624 = vmatmul.bf16.gmra.mxu0 %v1428
        %v1625 = vpop.f32.mrf.mxu0
        %v1626 = vadd.f32 0.0, %v1625
        %v1627 = vpop.f32.mrf.mxu0
        %v1628 = vadd.f32 0.0, %v1627
        %1629 = vmatmul.bf16.gmra.mxu0 %v1431
        %v1630 = vpop.f32.mrf.mxu0
        %v1631 = vadd.f32 0.0, %v1630
        %v1632 = vpop.f32.mrf.mxu0
        %v1633 = vadd.f32 0.0, %v1632
        %1634 = vmatmul.bf16.gmra.mxu0 %v1589
        %v1635 = vpop.f32.mrf.mxu0
        %v1636 = vadd.f32 0.0, %v1635
        %v1637 = vpop.f32.mrf.mxu0
        %v1638 = vadd.f32 0.0, %v1637
        %1639 = vdwg.mxu0
        %v1640 = vadd.f32 %v1516, %v1601
        %v1641 = vadd.f32 %v1518, %v1603
        %v1642 = vadd.f32 %v1521, %v1606
        %v1643 = vadd.f32 %v1523, %v1608
        %v1644 = vadd.f32 %v1526, %v1611
        %v1645 = vadd.f32 %v1528, %v1613
        %v1646 = vadd.f32 %v1531, %v1616
        %v1647 = vadd.f32 %v1533, %v1618
        %v1648 = vadd.f32 %v1536, %v1621
        %v1649 = vadd.f32 %v1538, %v1623
        %v1650 = vadd.f32 %v1541, %v1626
        %v1651 = vadd.f32 %v1543, %v1628
        %v1652 = vadd.f32 %v1546, %v1631
        %v1653 = vadd.f32 %v1548, %v1633
        %v1654 = vadd.f32 %v1551, %v1636
        %v1655 = vadd.f32 %v1553, %v1638
        %v1656 = vld [vmem:[%s2 + $0x4] sm:$0x1]
        %v1657 = vperm.slane %v1656, 0
        %v1658 = vadd.f32 %v1640, %v1657
        %v1659 = vadd.f32 %v1641, %v1657
        %v1660 = vadd.f32 %v1642, %v1657
        %v1661 = vadd.f32 %v1643, %v1657
        %v1662 = vadd.f32 %v1644, %v1657
        %v1663 = vadd.f32 %v1645, %v1657
        %v1664 = vadd.f32 %v1646, %v1657
        %v1665 = vadd.f32 %v1647, %v1657
        %v1666 = vadd.f32 %v1648, %v1657
        %v1667 = vadd.f32 %v1649, %v1657
        %v1668 = vadd.f32 %v1650, %v1657
        %v1669 = vadd.f32 %v1651, %v1657
        %v1670 = vadd.f32 %v1652, %v1657
        %v1671 = vadd.f32 %v1653, %v1657
        %v1672 = vadd.f32 %v1654, %v1657
        %v1673 = vadd.f32 %v1655, %v1657
        %v1674 = vmax.f32 %v1658, 0.0
        %v1675 = vmax.f32 %v1659, 0.0
        %v1676 = vmax.f32 %v1660, 0.0
        %v1677 = vmax.f32 %v1661, 0.0
        %v1678 = vmax.f32 %v1662, 0.0
        %v1679 = vmax.f32 %v1663, 0.0
        %v1680 = vmax.f32 %v1664, 0.0
        %v1681 = vmax.f32 %v1665, 0.0
        %v1682 = vmax.f32 %v1666, 0.0
        %v1683 = vmax.f32 %v1667, 0.0
        %v1684 = vmax.f32 %v1668, 0.0
        %v1685 = vmax.f32 %v1669, 0.0
        %v1686 = vmax.f32 %v1670, 0.0
        %v1687 = vmax.f32 %v1671, 0.0
        %v1688 = vmax.f32 %v1672, 0.0
        %v1689 = vmax.f32 %v1673, 0.0
        %v1690 = vadd.f32 %v1674, %v1024
        %v1691 = vadd.f32 %v1675, %v1025
        %v1692 = vadd.f32 %v1676, %v1026
        %v1693 = vadd.f32 %v1677, %v1027
        %v1694 = vadd.f32 %v1678, %v1028
        %v1695 = vadd.f32 %v1679, %v1029
        %v1696 = vadd.f32 %v1680, %v1030
        %v1697 = vadd.f32 %v1681, %v1031
        %v1698 = vadd.f32 %v1682, %v1032
        %v1699 = vadd.f32 %v1683, %v1033
        %v1700 = vadd.f32 %v1684, %v1034
        %v1701 = vadd.f32 %v1685, %v1035
        %v1702 = vadd.f32 %v1686, %v1036
        %v1703 = vadd.f32 %v1687, %v1037
        %v1704 = vadd.f32 %v1688, %v1038
        %v1705 = vadd.f32 %v1689, %v1039
        %v1706 = vmax.f32 %v1690, 0.0
        %v1707 = vmax.f32 %v1691, 0.0
        %v1708 = vmax.f32 %v1692, 0.0
        %v1709 = vmax.f32 %v1693, 0.0
        %v1710 = vmax.f32 %v1694, 0.0
        %v1711 = vmax.f32 %v1695, 0.0
        %v1712 = vmax.f32 %v1696, 0.0
        %v1713 = vmax.f32 %v1697, 0.0
        %v1714 = vmax.f32 %v1698, 0.0
        %v1715 = vmax.f32 %v1699, 0.0
        %v1716 = vmax.f32 %v1700, 0.0
        %v1717 = vmax.f32 %v1701, 0.0
        %v1718 = vmax.f32 %v1702, 0.0
        %v1719 = vmax.f32 %v1703, 0.0
        %v1720 = vmax.f32 %v1704, 0.0
        %v1721 = vmax.f32 %v1705, 0.0
        %v1722 = vpack.c.bf16 %v1707, %v1706
        %v1723 = vpack.c.bf16 %v1709, %v1708
        %v1724 = vpack.c.bf16 %v1711, %v1710
        %v1725 = vpack.c.bf16 %v1713, %v1712
        %v1726 = vld [vmem:[%s1 + $0x160] sm:$0xf]
        %v1727 = vld [vmem:[%s1 + $0x164] sm:$0xf]
        %v1728 = vld [vmem:[%s1 + $0x168] sm:$0xf]
        %v1729 = vld [vmem:[%s1 + $0x16c] sm:$0xf]
        %v1730 = vld [vmem:[%s1 + $0x170] sm:$0xf]
        %v1731 = vld [vmem:[%s1 + $0x174] sm:$0xf]
        %v1732 = vld [vmem:[%s1 + $0x178] sm:$0xf]
        %v1733 = vld [vmem:[%s1 + $0x17c] sm:$0xf]
        %v1734 = vpack.c.bf16 %v1715, %v1714
        %v1735 = vpack.c.bf16 %v1717, %v1716
        %v1736 = vld [vmem:[%s1 + $0x180] sm:$0xf]
        %v1737 = vld [vmem:[%s1 + $0x184] sm:$0xf]
        %v1738 = vld [vmem:[%s1 + $0x188] sm:$0xf]
        %v1739 = vld [vmem:[%s1 + $0x18c] sm:$0xf]
        %v1740 = vld [vmem:[%s1 + $0x190] sm:$0xf]
        %v1741 = vld [vmem:[%s1 + $0x194] sm:$0xf]
        %v1742 = vld [vmem:[%s1 + $0x198] sm:$0xf]
        %v1743 = vld [vmem:[%s1 + $0x19c] sm:$0xf]
        %v1752 = vunpack.c.l.b16 %v1736
        %v1753 = vunpack.c.l.b16 %v1737
        %v1754 = vunpack.c.l.b16 %v1738
        %v1755 = vunpack.c.l.b16 %v1739
        %v1756 = vunpack.c.l.b16 %v1740
        %v1757 = vunpack.c.l.b16 %v1741
        %v1758 = vunpack.c.l.b16 %v1742
        %v1759 = vunpack.c.l.b16 %v1743
        %v1760 = vpack.c.b16 %v1753, %v1752
        %v1761 = vpack.c.b16 %v1755, %v1754
        %v1762 = vpack.c.b16 %v1757, %v1756
        %v1763 = vpack.c.b16 %v1759, %v1758
        %v1769 = vsel %vm636, %v1722, 0
        %v1772 = vsel %vm636, %v1723, 0
        %v1775 = vsel %vm636, %v1724, 0
        %v1778 = vsel %vm636, %v1725, 0
        %v1781 = vsel %vm636, %v1734, 0
        %v1784 = vsel %vm636, %v1735, 0
        %1786 = vmatpush.bf16.msra.mxu0 0
        %1787 = vmatpush.bf16.msra.mxu0 0
        %1788 = vmatpush.bf16.msra.mxu0 0
        %1789 = vmatpush.bf16.msra.mxu0 0
        %1790 = vmatpush.bf16.msra.mxu0 %v1763
        %1791 = vmatpush.bf16.msra.mxu0 %v1762
        %1792 = vmatpush.bf16.msra.mxu0 %v1761
        %1793 = vmatpush.bf16.msra.mxu0 %v1760
        %1794 = vmatmul.bf16.gmra.mxu0 %v734
        %v1795 = vpop.f32.mrf.mxu0
        %v1796 = vadd.f32 0.0, %v1795
        %v1797 = vpop.f32.mrf.mxu0
        %v1798 = vadd.f32 0.0, %v1797
        %1799 = vmatmul.bf16.gmra.mxu0 %v734
        %v1800 = vpop.f32.mrf.mxu0
        %v1801 = vadd.f32 0.0, %v1800
        %v1802 = vpop.f32.mrf.mxu0
        %v1803 = vadd.f32 0.0, %v1802
        %1804 = vmatmul.bf16.gmra.mxu0 %v1769
        %v1805 = vpop.f32.mrf.mxu0
        %v1806 = vadd.f32 0.0, %v1805
        %v1807 = vpop.f32.mrf.mxu0
        %v1808 = vadd.f32 0.0, %v1807
        %1809 = vmatmul.bf16.gmra.mxu0 %v1772
        %v1810 = vpop.f32.mrf.mxu0
        %v1811 = vadd.f32 0.0, %v1810
        %v1812 = vpop.f32.mrf.mxu0
        %v1813 = vadd.f32 0.0, %v1812
        %1814 = vmatmul.bf16.gmra.mxu0 %v1775
        %v1815 = vpop.f32.mrf.mxu0
        %v1816 = vadd.f32 0.0, %v1815
        %v1817 = vpop.f32.mrf.mxu0
        %v1818 = vadd.f32 0.0, %v1817
        %1819 = vmatmul.bf16.gmra.mxu0 %v1778
        %v1820 = vpop.f32.mrf.mxu0
        %v1821 = vadd.f32 0.0, %v1820
        %v1822 = vpop.f32.mrf.mxu0
        %v1823 = vadd.f32 0.0, %v1822
        %1824 = vmatmul.bf16.gmra.mxu0 %v1781
        %v1825 = vpop.f32.mrf.mxu0
        %v1826 = vadd.f32 0.0, %v1825
        %v1827 = vpop.f32.mrf.mxu0
        %v1828 = vadd.f32 0.0, %v1827
        %1829 = vmatmul.bf16.gmra.mxu0 %v1784
        %v1830 = vpop.f32.mrf.mxu0
        %v1831 = vadd.f32 0.0, %v1830
        %v1832 = vpop.f32.mrf.mxu0
        %v1833 = vadd.f32 0.0, %v1832
        %1834 = vdwg.mxu0
        %v1843 = vunpack.c.l.b16 %v1726
        %v1844 = vunpack.c.l.b16 %v1727
        %v1845 = vunpack.c.l.b16 %v1728
        %v1846 = vunpack.c.l.b16 %v1729
        %v1847 = vunpack.c.l.b16 %v1730
        %v1848 = vunpack.c.l.b16 %v1731
        %v1849 = vunpack.c.l.b16 %v1732
        %v1850 = vunpack.c.l.b16 %v1733
        %v1851 = vpack.c.b16 %v1844, %v1843
        %v1852 = vpack.c.b16 %v1846, %v1845
        %v1853 = vpack.c.b16 %v1848, %v1847
        %v1854 = vpack.c.b16 %v1850, %v1849
        %1859 = vmatpush.bf16.msra.mxu0 0
        %1860 = vmatpush.bf16.msra.mxu0 0
        %1861 = vmatpush.bf16.msra.mxu0 0
        %1862 = vmatpush.bf16.msra.mxu0 0
        %1863 = vmatpush.bf16.msra.mxu0 %v1854
        %1864 = vmatpush.bf16.msra.mxu0 %v1853
        %1865 = vmatpush.bf16.msra.mxu0 %v1852
        %1866 = vmatpush.bf16.msra.mxu0 %v1851
        %1867 = vmatmul.bf16.gmra.mxu0 %v734
        %v1868 = vpop.f32.mrf.mxu0
        %v1869 = vadd.f32 %v1796, %v1868
        %v1870 = vpop.f32.mrf.mxu0
        %v1871 = vadd.f32 %v1798, %v1870
        %1872 = vmatmul.bf16.gmra.mxu0 %v734
        %v1873 = vpop.f32.mrf.mxu0
        %v1874 = vadd.f32 %v1801, %v1873
        %v1875 = vpop.f32.mrf.mxu0
        %v1876 = vadd.f32 %v1803, %v1875
        %1877 = vmatmul.bf16.gmra.mxu0 %v734
        %v1878 = vpop.f32.mrf.mxu0
        %v1879 = vadd.f32 %v1806, %v1878
        %v1880 = vpop.f32.mrf.mxu0
        %v1881 = vadd.f32 %v1808, %v1880
        %1882 = vmatmul.bf16.gmra.mxu0 %v734
        %v1883 = vpop.f32.mrf.mxu0
        %v1884 = vadd.f32 %v1811, %v1883
        %v1885 = vpop.f32.mrf.mxu0
        %v1886 = vadd.f32 %v1813, %v1885
        %1887 = vmatmul.bf16.gmra.mxu0 %v1769
        %v1888 = vpop.f32.mrf.mxu0
        %v1889 = vadd.f32 %v1816, %v1888
        %v1890 = vpop.f32.mrf.mxu0
        %v1891 = vadd.f32 %v1818, %v1890
        %1892 = vmatmul.bf16.gmra.mxu0 %v1772
        %v1893 = vpop.f32.mrf.mxu0
        %v1894 = vadd.f32 %v1821, %v1893
        %v1895 = vpop.f32.mrf.mxu0
        %v1896 = vadd.f32 %v1823, %v1895
        %1897 = vmatmul.bf16.gmra.mxu0 %v1775
        %v1898 = vpop.f32.mrf.mxu0
        %v1899 = vadd.f32 %v1826, %v1898
        %v1900 = vpop.f32.mrf.mxu0
        %v1901 = vadd.f32 %v1828, %v1900
        %1902 = vmatmul.bf16.gmra.mxu0 %v1778
        %v1903 = vpop.f32.mrf.mxu0
        %v1904 = vadd.f32 %v1831, %v1903
        %v1905 = vpop.f32.mrf.mxu0
        %v1906 = vadd.f32 %v1833, %v1905
        %1907 = vdwg.mxu0
        %v1908 = vpack.c.bf16 %v1719, %v1718
        %v1909 = vpack.c.bf16 %v1721, %v1720
        %v1910 = vld [vmem:[%s1 + $0x1a0] sm:$0xf]
        %v1911 = vld [vmem:[%s1 + $0x1a4] sm:$0xf]
        %v1912 = vld [vmem:[%s1 + $0x1a8] sm:$0xf]
        %v1913 = vld [vmem:[%s1 + $0x1ac] sm:$0xf]
        %v1914 = vld [vmem:[%s1 + $0x1b0] sm:$0xf]
        %v1915 = vld [vmem:[%s1 + $0x1b4] sm:$0xf]
        %v1916 = vld [vmem:[%s1 + $0x1b8] sm:$0xf]
        %v1917 = vld [vmem:[%s1 + $0x1bc] sm:$0xf]
        %v1926 = vunpack.c.l.b16 %v1910
        %v1927 = vunpack.c.l.b16 %v1911
        %v1928 = vunpack.c.l.b16 %v1912
        %v1929 = vunpack.c.l.b16 %v1913
        %v1930 = vunpack.c.l.b16 %v1914
        %v1931 = vunpack.c.l.b16 %v1915
        %v1932 = vunpack.c.l.b16 %v1916
        %v1933 = vunpack.c.l.b16 %v1917
        %v1934 = vpack.c.b16 %v1927, %v1926
        %v1935 = vpack.c.b16 %v1929, %v1928
        %v1936 = vpack.c.b16 %v1931, %v1930
        %v1937 = vpack.c.b16 %v1933, %v1932
        %v1943 = vsel %vm636, %v1908, 0
        %v1946 = vsel %vm636, %v1909, 0
        %1948 = vmatpush.bf16.msra.mxu0 0
        %1949 = vmatpush.bf16.msra.mxu0 0
        %1950 = vmatpush.bf16.msra.mxu0 0
        %1951 = vmatpush.bf16.msra.mxu0 0
        %1952 = vmatpush.bf16.msra.mxu0 %v1937
        %1953 = vmatpush.bf16.msra.mxu0 %v1936
        %1954 = vmatpush.bf16.msra.mxu0 %v1935
        %1955 = vmatpush.bf16.msra.mxu0 %v1934
        %1956 = vmatmul.bf16.gmra.mxu0 %v1769
        %v1957 = vpop.f32.mrf.mxu0
        %v1958 = vadd.f32 0.0, %v1957
        %v1959 = vpop.f32.mrf.mxu0
        %v1960 = vadd.f32 0.0, %v1959
        %1961 = vmatmul.bf16.gmra.mxu0 %v1772
        %v1962 = vpop.f32.mrf.mxu0
        %v1963 = vadd.f32 0.0, %v1962
        %v1964 = vpop.f32.mrf.mxu0
        %v1965 = vadd.f32 0.0, %v1964
        %1966 = vmatmul.bf16.gmra.mxu0 %v1775
        %v1967 = vpop.f32.mrf.mxu0
        %v1968 = vadd.f32 0.0, %v1967
        %v1969 = vpop.f32.mrf.mxu0
        %v1970 = vadd.f32 0.0, %v1969
        %1971 = vmatmul.bf16.gmra.mxu0 %v1778
        %v1972 = vpop.f32.mrf.mxu0
        %v1973 = vadd.f32 0.0, %v1972
        %v1974 = vpop.f32.mrf.mxu0
        %v1975 = vadd.f32 0.0, %v1974
        %1976 = vmatmul.bf16.gmra.mxu0 %v1781
        %v1977 = vpop.f32.mrf.mxu0
        %v1978 = vadd.f32 0.0, %v1977
        %v1979 = vpop.f32.mrf.mxu0
        %v1980 = vadd.f32 0.0, %v1979
        %1981 = vmatmul.bf16.gmra.mxu0 %v1784
        %v1982 = vpop.f32.mrf.mxu0
        %v1983 = vadd.f32 0.0, %v1982
        %v1984 = vpop.f32.mrf.mxu0
        %v1985 = vadd.f32 0.0, %v1984
        %1986 = vmatmul.bf16.gmra.mxu0 %v1943
        %v1987 = vpop.f32.mrf.mxu0
        %v1988 = vadd.f32 0.0, %v1987
        %v1989 = vpop.f32.mrf.mxu0
        %v1990 = vadd.f32 0.0, %v1989
        %1991 = vmatmul.bf16.gmra.mxu0 %v1946
        %v1992 = vpop.f32.mrf.mxu0
        %v1993 = vadd.f32 0.0, %v1992
        %v1994 = vpop.f32.mrf.mxu0
        %v1995 = vadd.f32 0.0, %v1994
        %1996 = vdwg.mxu0
        %v1997 = vadd.f32 %v1869, %v1958
        %v1998 = vadd.f32 %v1871, %v1960
        %v1999 = vadd.f32 %v1874, %v1963
        %v2000 = vadd.f32 %v1876, %v1965
        %v2001 = vadd.f32 %v1879, %v1968
        %v2002 = vadd.f32 %v1881, %v1970
        %v2003 = vadd.f32 %v1884, %v1973
        %v2004 = vadd.f32 %v1886, %v1975
        %v2005 = vadd.f32 %v1889, %v1978
        %v2006 = vadd.f32 %v1891, %v1980
        %v2007 = vadd.f32 %v1894, %v1983
        %v2008 = vadd.f32 %v1896, %v1985
        %v2009 = vadd.f32 %v1899, %v1988
        %v2010 = vadd.f32 %v1901, %v1990
        %v2011 = vadd.f32 %v1904, %v1993
        %v2012 = vadd.f32 %v1906, %v1995
        %v2013 = vld [vmem:[%s2 + $0x5] sm:$0x1]
        %v2014 = vperm.slane %v2013, 0
        %v2015 = vadd.f32 %v1997, %v2014
        %v2016 = vadd.f32 %v1998, %v2014
        %v2017 = vadd.f32 %v1999, %v2014
        %v2018 = vadd.f32 %v2000, %v2014
        %v2019 = vadd.f32 %v2001, %v2014
        %v2020 = vadd.f32 %v2002, %v2014
        %v2021 = vadd.f32 %v2003, %v2014
        %v2022 = vadd.f32 %v2004, %v2014
        %v2023 = vadd.f32 %v2005, %v2014
        %v2024 = vadd.f32 %v2006, %v2014
        %v2025 = vadd.f32 %v2007, %v2014
        %v2026 = vadd.f32 %v2008, %v2014
        %v2027 = vadd.f32 %v2009, %v2014
        %v2028 = vadd.f32 %v2010, %v2014
        %v2029 = vadd.f32 %v2011, %v2014
        %v2030 = vadd.f32 %v2012, %v2014
        %v2031 = vmax.f32 %v2015, 0.0
        %v2032 = vmax.f32 %v2016, 0.0
        %v2033 = vmax.f32 %v2017, 0.0
        %v2034 = vmax.f32 %v2018, 0.0
        %v2035 = vmax.f32 %v2019, 0.0
        %v2036 = vmax.f32 %v2020, 0.0
        %v2037 = vmax.f32 %v2021, 0.0
        %v2038 = vmax.f32 %v2022, 0.0
        %v2039 = vmax.f32 %v2023, 0.0
        %v2040 = vmax.f32 %v2024, 0.0
        %v2041 = vmax.f32 %v2025, 0.0
        %v2042 = vmax.f32 %v2026, 0.0
        %v2043 = vmax.f32 %v2027, 0.0
        %v2044 = vmax.f32 %v2028, 0.0
        %v2045 = vmax.f32 %v2029, 0.0
        %v2046 = vmax.f32 %v2030, 0.0
        %v2047 = vpack.c.bf16 %v2032, %v2031
        %v2048 = vpack.c.bf16 %v2034, %v2033
        %v2049 = vpack.c.bf16 %v2036, %v2035
        %v2050 = vpack.c.bf16 %v2038, %v2037
        %v2051 = vld [vmem:[%s1 + $0x1c0] sm:$0xf]
        %v2052 = vld [vmem:[%s1 + $0x1c4] sm:$0xf]
        %v2053 = vld [vmem:[%s1 + $0x1c8] sm:$0xf]
        %v2054 = vld [vmem:[%s1 + $0x1cc] sm:$0xf]
        %v2055 = vld [vmem:[%s1 + $0x1d0] sm:$0xf]
        %v2056 = vld [vmem:[%s1 + $0x1d4] sm:$0xf]
        %v2057 = vld [vmem:[%s1 + $0x1d8] sm:$0xf]
        %v2058 = vld [vmem:[%s1 + $0x1dc] sm:$0xf]
        %v2059 = vpack.c.bf16 %v2040, %v2039
        %v2060 = vpack.c.bf16 %v2042, %v2041
        %v2061 = vld [vmem:[%s1 + $0x1e0] sm:$0xf]
        %v2062 = vld [vmem:[%s1 + $0x1e4] sm:$0xf]
        %v2063 = vld [vmem:[%s1 + $0x1e8] sm:$0xf]
        %v2064 = vld [vmem:[%s1 + $0x1ec] sm:$0xf]
        %v2065 = vld [vmem:[%s1 + $0x1f0] sm:$0xf]
        %v2066 = vld [vmem:[%s1 + $0x1f4] sm:$0xf]
        %v2067 = vld [vmem:[%s1 + $0x1f8] sm:$0xf]
        %v2068 = vld [vmem:[%s1 + $0x1fc] sm:$0xf]
        %v2077 = vunpack.c.l.b16 %v2061
        %v2078 = vunpack.c.l.b16 %v2062
        %v2079 = vunpack.c.l.b16 %v2063
        %v2080 = vunpack.c.l.b16 %v2064
        %v2081 = vunpack.c.l.b16 %v2065
        %v2082 = vunpack.c.l.b16 %v2066
        %v2083 = vunpack.c.l.b16 %v2067
        %v2084 = vunpack.c.l.b16 %v2068
        %v2085 = vpack.c.b16 %v2078, %v2077
        %v2086 = vpack.c.b16 %v2080, %v2079
        %v2087 = vpack.c.b16 %v2082, %v2081
        %v2088 = vpack.c.b16 %v2084, %v2083
        %v2094 = vsel %vm636, %v2047, 0
        %v2097 = vsel %vm636, %v2048, 0
        %v2100 = vsel %vm636, %v2049, 0
        %v2103 = vsel %vm636, %v2050, 0
        %v2106 = vsel %vm636, %v2059, 0
        %v2109 = vsel %vm636, %v2060, 0
        %2111 = vmatpush.bf16.msra.mxu0 0
        %2112 = vmatpush.bf16.msra.mxu0 0
        %2113 = vmatpush.bf16.msra.mxu0 0
        %2114 = vmatpush.bf16.msra.mxu0 0
        %2115 = vmatpush.bf16.msra.mxu0 %v2088
        %2116 = vmatpush.bf16.msra.mxu0 %v2087
        %2117 = vmatpush.bf16.msra.mxu0 %v2086
        %2118 = vmatpush.bf16.msra.mxu0 %v2085
        %2119 = vmatmul.bf16.gmra.mxu0 %v734
        %v2120 = vpop.f32.mrf.mxu0
        %v2121 = vadd.f32 0.0, %v2120
        %v2122 = vpop.f32.mrf.mxu0
        %v2123 = vadd.f32 0.0, %v2122
        %2124 = vmatmul.bf16.gmra.mxu0 %v734
        %v2125 = vpop.f32.mrf.mxu0
        %v2126 = vadd.f32 0.0, %v2125
        %v2127 = vpop.f32.mrf.mxu0
        %v2128 = vadd.f32 0.0, %v2127
        %2129 = vmatmul.bf16.gmra.mxu0 %v2094
        %v2130 = vpop.f32.mrf.mxu0
        %v2131 = vadd.f32 0.0, %v2130
        %v2132 = vpop.f32.mrf.mxu0
        %v2133 = vadd.f32 0.0, %v2132
        %2134 = vmatmul.bf16.gmra.mxu0 %v2097
        %v2135 = vpop.f32.mrf.mxu0
        %v2136 = vadd.f32 0.0, %v2135
        %v2137 = vpop.f32.mrf.mxu0
        %v2138 = vadd.f32 0.0, %v2137
        %2139 = vmatmul.bf16.gmra.mxu0 %v2100
        %v2140 = vpop.f32.mrf.mxu0
        %v2141 = vadd.f32 0.0, %v2140
        %v2142 = vpop.f32.mrf.mxu0
        %v2143 = vadd.f32 0.0, %v2142
        %2144 = vmatmul.bf16.gmra.mxu0 %v2103
        %v2145 = vpop.f32.mrf.mxu0
        %v2146 = vadd.f32 0.0, %v2145
        %v2147 = vpop.f32.mrf.mxu0
        %v2148 = vadd.f32 0.0, %v2147
        %2149 = vmatmul.bf16.gmra.mxu0 %v2106
        %v2150 = vpop.f32.mrf.mxu0
        %v2151 = vadd.f32 0.0, %v2150
        %v2152 = vpop.f32.mrf.mxu0
        %v2153 = vadd.f32 0.0, %v2152
        %2154 = vmatmul.bf16.gmra.mxu0 %v2109
        %v2155 = vpop.f32.mrf.mxu0
        %v2156 = vadd.f32 0.0, %v2155
        %v2157 = vpop.f32.mrf.mxu0
        %v2158 = vadd.f32 0.0, %v2157
        %2159 = vdwg.mxu0
        %v2168 = vunpack.c.l.b16 %v2051
        %v2169 = vunpack.c.l.b16 %v2052
        %v2170 = vunpack.c.l.b16 %v2053
        %v2171 = vunpack.c.l.b16 %v2054
        %v2172 = vunpack.c.l.b16 %v2055
        %v2173 = vunpack.c.l.b16 %v2056
        %v2174 = vunpack.c.l.b16 %v2057
        %v2175 = vunpack.c.l.b16 %v2058
        %v2176 = vpack.c.b16 %v2169, %v2168
        %v2177 = vpack.c.b16 %v2171, %v2170
        %v2178 = vpack.c.b16 %v2173, %v2172
        %v2179 = vpack.c.b16 %v2175, %v2174
        %2184 = vmatpush.bf16.msra.mxu0 0
        %2185 = vmatpush.bf16.msra.mxu0 0
        %2186 = vmatpush.bf16.msra.mxu0 0
        %2187 = vmatpush.bf16.msra.mxu0 0
        %2188 = vmatpush.bf16.msra.mxu0 %v2179
        %2189 = vmatpush.bf16.msra.mxu0 %v2178
        %2190 = vmatpush.bf16.msra.mxu0 %v2177
        %2191 = vmatpush.bf16.msra.mxu0 %v2176
        %2192 = vmatmul.bf16.gmra.mxu0 %v734
        %v2193 = vpop.f32.mrf.mxu0
        %v2194 = vadd.f32 %v2121, %v2193
        %v2195 = vpop.f32.mrf.mxu0
        %v2196 = vadd.f32 %v2123, %v2195
        %2197 = vmatmul.bf16.gmra.mxu0 %v734
        %v2198 = vpop.f32.mrf.mxu0
        %v2199 = vadd.f32 %v2126, %v2198
        %v2200 = vpop.f32.mrf.mxu0
        %v2201 = vadd.f32 %v2128, %v2200
        %2202 = vmatmul.bf16.gmra.mxu0 %v734
        %v2203 = vpop.f32.mrf.mxu0
        %v2204 = vadd.f32 %v2131, %v2203
        %v2205 = vpop.f32.mrf.mxu0
        %v2206 = vadd.f32 %v2133, %v2205
        %2207 = vmatmul.bf16.gmra.mxu0 %v734
        %v2208 = vpop.f32.mrf.mxu0
        %v2209 = vadd.f32 %v2136, %v2208
        %v2210 = vpop.f32.mrf.mxu0
        %v2211 = vadd.f32 %v2138, %v2210
        %2212 = vmatmul.bf16.gmra.mxu0 %v2094
        %v2213 = vpop.f32.mrf.mxu0
        %v2214 = vadd.f32 %v2141, %v2213
        %v2215 = vpop.f32.mrf.mxu0
        %v2216 = vadd.f32 %v2143, %v2215
        %2217 = vmatmul.bf16.gmra.mxu0 %v2097
        %v2218 = vpop.f32.mrf.mxu0
        %v2219 = vadd.f32 %v2146, %v2218
        %v2220 = vpop.f32.mrf.mxu0
        %v2221 = vadd.f32 %v2148, %v2220
        %2222 = vmatmul.bf16.gmra.mxu0 %v2100
        %v2223 = vpop.f32.mrf.mxu0
        %v2224 = vadd.f32 %v2151, %v2223
        %v2225 = vpop.f32.mrf.mxu0
        %v2226 = vadd.f32 %v2153, %v2225
        %2227 = vmatmul.bf16.gmra.mxu0 %v2103
        %v2228 = vpop.f32.mrf.mxu0
        %v2229 = vadd.f32 %v2156, %v2228
        %v2230 = vpop.f32.mrf.mxu0
        %v2231 = vadd.f32 %v2158, %v2230
        %2232 = vdwg.mxu0
        %v2233 = vpack.c.bf16 %v2044, %v2043
        %v2234 = vpack.c.bf16 %v2046, %v2045
        %v2235 = vld [vmem:[%s1 + $0x200] sm:$0xf]
        %v2236 = vld [vmem:[%s1 + $0x204] sm:$0xf]
        %v2237 = vld [vmem:[%s1 + $0x208] sm:$0xf]
        %v2238 = vld [vmem:[%s1 + $0x20c] sm:$0xf]
        %v2239 = vld [vmem:[%s1 + $0x210] sm:$0xf]
        %v2240 = vld [vmem:[%s1 + $0x214] sm:$0xf]
        %v2241 = vld [vmem:[%s1 + $0x218] sm:$0xf]
        %v2242 = vld [vmem:[%s1 + $0x21c] sm:$0xf]
        %v2251 = vunpack.c.l.b16 %v2235
        %v2252 = vunpack.c.l.b16 %v2236
        %v2253 = vunpack.c.l.b16 %v2237
        %v2254 = vunpack.c.l.b16 %v2238
        %v2255 = vunpack.c.l.b16 %v2239
        %v2256 = vunpack.c.l.b16 %v2240
        %v2257 = vunpack.c.l.b16 %v2241
        %v2258 = vunpack.c.l.b16 %v2242
        %v2259 = vpack.c.b16 %v2252, %v2251
        %v2260 = vpack.c.b16 %v2254, %v2253
        %v2261 = vpack.c.b16 %v2256, %v2255
        %v2262 = vpack.c.b16 %v2258, %v2257
        %v2268 = vsel %vm636, %v2233, 0
        %v2271 = vsel %vm636, %v2234, 0
        %2273 = vmatpush.bf16.msra.mxu0 0
        %2274 = vmatpush.bf16.msra.mxu0 0
        %2275 = vmatpush.bf16.msra.mxu0 0
        %2276 = vmatpush.bf16.msra.mxu0 0
        %2277 = vmatpush.bf16.msra.mxu0 %v2262
        %2278 = vmatpush.bf16.msra.mxu0 %v2261
        %2279 = vmatpush.bf16.msra.mxu0 %v2260
        %2280 = vmatpush.bf16.msra.mxu0 %v2259
        %2281 = vmatmul.bf16.gmra.mxu0 %v2094
        %v2282 = vpop.f32.mrf.mxu0
        %v2283 = vadd.f32 0.0, %v2282
        %v2284 = vpop.f32.mrf.mxu0
        %v2285 = vadd.f32 0.0, %v2284
        %2286 = vmatmul.bf16.gmra.mxu0 %v2097
        %v2287 = vpop.f32.mrf.mxu0
        %v2288 = vadd.f32 0.0, %v2287
        %v2289 = vpop.f32.mrf.mxu0
        %v2290 = vadd.f32 0.0, %v2289
        %2291 = vmatmul.bf16.gmra.mxu0 %v2100
        %v2292 = vpop.f32.mrf.mxu0
        %v2293 = vadd.f32 0.0, %v2292
        %v2294 = vpop.f32.mrf.mxu0
        %v2295 = vadd.f32 0.0, %v2294
        %2296 = vmatmul.bf16.gmra.mxu0 %v2103
        %v2297 = vpop.f32.mrf.mxu0
        %v2298 = vadd.f32 0.0, %v2297
        %v2299 = vpop.f32.mrf.mxu0
        %v2300 = vadd.f32 0.0, %v2299
        %2301 = vmatmul.bf16.gmra.mxu0 %v2106
        %v2302 = vpop.f32.mrf.mxu0
        %v2303 = vadd.f32 0.0, %v2302
        %v2304 = vpop.f32.mrf.mxu0
        %v2305 = vadd.f32 0.0, %v2304
        %2306 = vmatmul.bf16.gmra.mxu0 %v2109
        %v2307 = vpop.f32.mrf.mxu0
        %v2308 = vadd.f32 0.0, %v2307
        %v2309 = vpop.f32.mrf.mxu0
        %v2310 = vadd.f32 0.0, %v2309
        %2311 = vmatmul.bf16.gmra.mxu0 %v2268
        %v2312 = vpop.f32.mrf.mxu0
        %v2313 = vadd.f32 0.0, %v2312
        %v2314 = vpop.f32.mrf.mxu0
        %v2315 = vadd.f32 0.0, %v2314
        %2316 = vmatmul.bf16.gmra.mxu0 %v2271
        %v2317 = vpop.f32.mrf.mxu0
        %v2318 = vadd.f32 0.0, %v2317
        %v2319 = vpop.f32.mrf.mxu0
        %v2320 = vadd.f32 0.0, %v2319
        %2321 = vdwg.mxu0
        %v2322 = vadd.f32 %v2194, %v2283
        %v2323 = vadd.f32 %v2196, %v2285
        %v2324 = vadd.f32 %v2199, %v2288
        %v2325 = vadd.f32 %v2201, %v2290
        %v2326 = vadd.f32 %v2204, %v2293
        %v2327 = vadd.f32 %v2206, %v2295
        %v2328 = vadd.f32 %v2209, %v2298
        %v2329 = vadd.f32 %v2211, %v2300
        %v2330 = vadd.f32 %v2214, %v2303
        %v2331 = vadd.f32 %v2216, %v2305
        %v2332 = vadd.f32 %v2219, %v2308
        %v2333 = vadd.f32 %v2221, %v2310
        %v2334 = vadd.f32 %v2224, %v2313
        %v2335 = vadd.f32 %v2226, %v2315
        %v2336 = vadd.f32 %v2229, %v2318
        %v2337 = vadd.f32 %v2231, %v2320
        %v2338 = vld [vmem:[%s2 + $0x6] sm:$0x1]
        %v2339 = vperm.slane %v2338, 0
        %v2340 = vadd.f32 %v2322, %v2339
        %v2341 = vadd.f32 %v2323, %v2339
        %v2342 = vadd.f32 %v2324, %v2339
        %v2343 = vadd.f32 %v2325, %v2339
        %v2344 = vadd.f32 %v2326, %v2339
        %v2345 = vadd.f32 %v2327, %v2339
        %v2346 = vadd.f32 %v2328, %v2339
        %v2347 = vadd.f32 %v2329, %v2339
        %v2348 = vadd.f32 %v2330, %v2339
        %v2349 = vadd.f32 %v2331, %v2339
        %v2350 = vadd.f32 %v2332, %v2339
        %v2351 = vadd.f32 %v2333, %v2339
        %v2352 = vadd.f32 %v2334, %v2339
        %v2353 = vadd.f32 %v2335, %v2339
        %v2354 = vadd.f32 %v2336, %v2339
        %v2355 = vadd.f32 %v2337, %v2339
        %v2356 = vmax.f32 %v2340, 0.0
        %v2357 = vmax.f32 %v2341, 0.0
        %v2358 = vmax.f32 %v2342, 0.0
        %v2359 = vmax.f32 %v2343, 0.0
        %v2360 = vmax.f32 %v2344, 0.0
        %v2361 = vmax.f32 %v2345, 0.0
        %v2362 = vmax.f32 %v2346, 0.0
        %v2363 = vmax.f32 %v2347, 0.0
        %v2364 = vmax.f32 %v2348, 0.0
        %v2365 = vmax.f32 %v2349, 0.0
        %v2366 = vmax.f32 %v2350, 0.0
        %v2367 = vmax.f32 %v2351, 0.0
        %v2368 = vmax.f32 %v2352, 0.0
        %v2369 = vmax.f32 %v2353, 0.0
        %v2370 = vmax.f32 %v2354, 0.0
        %v2371 = vmax.f32 %v2355, 0.0
        %v2372 = vadd.f32 %v2356, %v1706
        %v2373 = vadd.f32 %v2357, %v1707
        %v2374 = vadd.f32 %v2358, %v1708
        %v2375 = vadd.f32 %v2359, %v1709
        %v2376 = vadd.f32 %v2360, %v1710
        %v2377 = vadd.f32 %v2361, %v1711
        %v2378 = vadd.f32 %v2362, %v1712
        %v2379 = vadd.f32 %v2363, %v1713
        %v2380 = vadd.f32 %v2364, %v1714
        %v2381 = vadd.f32 %v2365, %v1715
        %v2382 = vadd.f32 %v2366, %v1716
        %v2383 = vadd.f32 %v2367, %v1717
        %v2384 = vadd.f32 %v2368, %v1718
        %v2385 = vadd.f32 %v2369, %v1719
        %v2386 = vadd.f32 %v2370, %v1720
        %v2387 = vadd.f32 %v2371, %v1721
        %v2388 = vmax.f32 %v2372, 0.0
        %v2389 = vmax.f32 %v2373, 0.0
        %v2390 = vmax.f32 %v2374, 0.0
        %v2391 = vmax.f32 %v2375, 0.0
        %v2392 = vmax.f32 %v2376, 0.0
        %v2393 = vmax.f32 %v2377, 0.0
        %v2394 = vmax.f32 %v2378, 0.0
        %v2395 = vmax.f32 %v2379, 0.0
        %v2396 = vmax.f32 %v2380, 0.0
        %v2397 = vmax.f32 %v2381, 0.0
        %v2398 = vmax.f32 %v2382, 0.0
        %v2399 = vmax.f32 %v2383, 0.0
        %v2400 = vmax.f32 %v2384, 0.0
        %v2401 = vmax.f32 %v2385, 0.0
        %v2402 = vmax.f32 %v2386, 0.0
        %v2403 = vmax.f32 %v2387, 0.0
        %v2404 = vpack.c.bf16 %v2388, %v2388
        %v2405 = vld [vmem:[%s3] sm:$0xf]
        %v2406 = vld [vmem:[%s3 + $0x4] sm:$0xf]
        %v2407 = vld [vmem:[%s3 + $0x8] sm:$0xf]
        %v2408 = vld [vmem:[%s3 + $0xc] sm:$0xf]
        %v2409 = vld [vmem:[%s3 + $0x10] sm:$0xf]
        %v2410 = vld [vmem:[%s3 + $0x14] sm:$0xf]
        %v2411 = vld [vmem:[%s3 + $0x18] sm:$0xf]
        %v2412 = vld [vmem:[%s3 + $0x1c] sm:$0xf]
        %v2413 = vpack.c.bf16 %v2389, %v2389
        %s2414 = scalar_lea.vmem %s3, 32
        %v2415 = vld [vmem:[%s2414] sm:$0xf]
        %v2416 = vld [vmem:[%s2414 + $0x4] sm:$0xf]
        %v2417 = vld [vmem:[%s2414 + $0x8] sm:$0xf]
        %v2418 = vld [vmem:[%s2414 + $0xc] sm:$0xf]
        %v2419 = vld [vmem:[%s2414 + $0x10] sm:$0xf]
        %v2420 = vld [vmem:[%s2414 + $0x14] sm:$0xf]
        %v2421 = vld [vmem:[%s2414 + $0x18] sm:$0xf]
        %v2422 = vld [vmem:[%s2414 + $0x1c] sm:$0xf]
        %v2431 = vunpack.c.l.b16 %v2415
        %v2432 = vunpack.c.l.b16 %v2416
        %v2433 = vunpack.c.l.b16 %v2417
        %v2434 = vunpack.c.l.b16 %v2418
        %v2435 = vunpack.c.l.b16 %v2419
        %v2436 = vunpack.c.l.b16 %v2420
        %v2437 = vunpack.c.l.b16 %v2421
        %v2438 = vunpack.c.l.b16 %v2422
        %v2439 = vpack.c.b16 %v2432, %v2431
        %v2440 = vpack.c.b16 %v2434, %v2433
        %v2441 = vpack.c.b16 %v2436, %v2435
        %v2442 = vpack.c.b16 %v2438, %v2437
        %v2448 = vsel %vm636, %v2413, 0
        %2450 = vmatpush.bf16.msra.mxu0 0
        %2451 = vmatpush.bf16.msra.mxu0 0
        %2452 = vmatpush.bf16.msra.mxu0 0
        %2453 = vmatpush.bf16.msra.mxu0 0
        %2454 = vmatpush.bf16.msra.mxu0 %v2442
        %2455 = vmatpush.bf16.msra.mxu0 %v2441
        %2456 = vmatpush.bf16.msra.mxu0 %v2440
        %2457 = vmatpush.bf16.msra.mxu0 %v2439
        %2458 = vmatmul.bf16.gmra.mxu0 %v2448
        %v2459 = vpop.f32.mrf.mxu0
        %v2460 = vadd.f32 0.0, %v2459
        %v2461 = vpop.f32.mrf.mxu0
        %2462 = vdwg.mxu0
        %v2471 = vunpack.c.l.b16 %v2405
        %v2472 = vunpack.c.l.b16 %v2406
        %v2473 = vunpack.c.l.b16 %v2407
        %v2474 = vunpack.c.l.b16 %v2408
        %v2475 = vunpack.c.l.b16 %v2409
        %v2476 = vunpack.c.l.b16 %v2410
        %v2477 = vunpack.c.l.b16 %v2411
        %v2478 = vunpack.c.l.b16 %v2412
        %v2479 = vpack.c.b16 %v2472, %v2471
        %v2480 = vpack.c.b16 %v2474, %v2473
        %v2481 = vpack.c.b16 %v2476, %v2475
        %v2482 = vpack.c.b16 %v2478, %v2477
        %v2488 = vsel %vm636, %v2404, 0
        %2490 = vmatpush.bf16.msra.mxu0 0
        %2491 = vmatpush.bf16.msra.mxu0 0
        %2492 = vmatpush.bf16.msra.mxu0 0
        %2493 = vmatpush.bf16.msra.mxu0 0
        %2494 = vmatpush.bf16.msra.mxu0 %v2482
        %2495 = vmatpush.bf16.msra.mxu0 %v2481
        %2496 = vmatpush.bf16.msra.mxu0 %v2480
        %2497 = vmatpush.bf16.msra.mxu0 %v2479
        %2498 = vmatmul.bf16.gmra.mxu0 %v2488
        %v2499 = vpop.f32.mrf.mxu0
        %v2500 = vadd.f32 %v2460, %v2499
        %v2501 = vpop.f32.mrf.mxu0
        %2502 = vdwg.mxu0
        %v2503 = vpack.c.bf16 %v2390, %v2390
        %s2504 = scalar_lea.vmem %s3, 64
        %v2505 = vld [vmem:[%s2504] sm:$0xf]
        %v2506 = vld [vmem:[%s2504 + $0x4] sm:$0xf]
        %v2507 = vld [vmem:[%s2504 + $0x8] sm:$0xf]
        %v2508 = vld [vmem:[%s2504 + $0xc] sm:$0xf]
        %v2509 = vld [vmem:[%s2504 + $0x10] sm:$0xf]
        %v2510 = vld [vmem:[%s2504 + $0x14] sm:$0xf]
        %v2511 = vld [vmem:[%s2504 + $0x18] sm:$0xf]
        %v2512 = vld [vmem:[%s2504 + $0x1c] sm:$0xf]
        %v2521 = vunpack.c.l.b16 %v2505
        %v2522 = vunpack.c.l.b16 %v2506
        %v2523 = vunpack.c.l.b16 %v2507
        %v2524 = vunpack.c.l.b16 %v2508
        %v2525 = vunpack.c.l.b16 %v2509
        %v2526 = vunpack.c.l.b16 %v2510
        %v2527 = vunpack.c.l.b16 %v2511
        %v2528 = vunpack.c.l.b16 %v2512
        %v2529 = vpack.c.b16 %v2522, %v2521
        %v2530 = vpack.c.b16 %v2524, %v2523
        %v2531 = vpack.c.b16 %v2526, %v2525
        %v2532 = vpack.c.b16 %v2528, %v2527
        %v2538 = vsel %vm636, %v2503, 0
        %2540 = vmatpush.bf16.msra.mxu0 0
        %2541 = vmatpush.bf16.msra.mxu0 0
        %2542 = vmatpush.bf16.msra.mxu0 0
        %2543 = vmatpush.bf16.msra.mxu0 0
        %2544 = vmatpush.bf16.msra.mxu0 %v2532
        %2545 = vmatpush.bf16.msra.mxu0 %v2531
        %2546 = vmatpush.bf16.msra.mxu0 %v2530
        %2547 = vmatpush.bf16.msra.mxu0 %v2529
        %2548 = vmatmul.bf16.gmra.mxu0 %v2538
        %v2549 = vpop.f32.mrf.mxu0
        %v2550 = vadd.f32 0.0, %v2549
        %v2551 = vpop.f32.mrf.mxu0
        %2552 = vdwg.mxu0
        %v2553 = vadd.f32 %v2500, %v2550
        %v2554 = vpack.c.bf16 %v2391, %v2391
        %s2555 = scalar_lea.vmem %s3, 96
        %v2556 = vld [vmem:[%s2555] sm:$0xf]
        %v2557 = vld [vmem:[%s2555 + $0x4] sm:$0xf]
        %v2558 = vld [vmem:[%s2555 + $0x8] sm:$0xf]
        %v2559 = vld [vmem:[%s2555 + $0xc] sm:$0xf]
        %v2560 = vld [vmem:[%s2555 + $0x10] sm:$0xf]
        %v2561 = vld [vmem:[%s2555 + $0x14] sm:$0xf]
        %v2562 = vld [vmem:[%s2555 + $0x18] sm:$0xf]
        %v2563 = vld [vmem:[%s2555 + $0x1c] sm:$0xf]
        %v2572 = vunpack.c.l.b16 %v2556
        %v2573 = vunpack.c.l.b16 %v2557
        %v2574 = vunpack.c.l.b16 %v2558
        %v2575 = vunpack.c.l.b16 %v2559
        %v2576 = vunpack.c.l.b16 %v2560
        %v2577 = vunpack.c.l.b16 %v2561
        %v2578 = vunpack.c.l.b16 %v2562
        %v2579 = vunpack.c.l.b16 %v2563
        %v2580 = vpack.c.b16 %v2573, %v2572
        %v2581 = vpack.c.b16 %v2575, %v2574
        %v2582 = vpack.c.b16 %v2577, %v2576
        %v2583 = vpack.c.b16 %v2579, %v2578
        %v2589 = vsel %vm636, %v2554, 0
        %2591 = vmatpush.bf16.msra.mxu0 0
        %2592 = vmatpush.bf16.msra.mxu0 0
        %2593 = vmatpush.bf16.msra.mxu0 0
        %2594 = vmatpush.bf16.msra.mxu0 0
        %2595 = vmatpush.bf16.msra.mxu0 %v2583
        %2596 = vmatpush.bf16.msra.mxu0 %v2582
        %2597 = vmatpush.bf16.msra.mxu0 %v2581
        %2598 = vmatpush.bf16.msra.mxu0 %v2580
        %2599 = vmatmul.bf16.gmra.mxu0 %v2589
        %v2600 = vpop.f32.mrf.mxu0
        %v2601 = vadd.f32 0.0, %v2600
        %v2602 = vpop.f32.mrf.mxu0
        %2603 = vdwg.mxu0
        %v2604 = vadd.f32 %v2553, %v2601
        %v2605 = vpack.c.bf16 %v2392, %v2392
        %s2606 = scalar_lea.vmem %s3, 128
        %v2607 = vld [vmem:[%s2606] sm:$0xf]
        %v2608 = vld [vmem:[%s2606 + $0x4] sm:$0xf]
        %v2609 = vld [vmem:[%s2606 + $0x8] sm:$0xf]
        %v2610 = vld [vmem:[%s2606 + $0xc] sm:$0xf]
        %v2611 = vld [vmem:[%s2606 + $0x10] sm:$0xf]
        %v2612 = vld [vmem:[%s2606 + $0x14] sm:$0xf]
        %v2613 = vld [vmem:[%s2606 + $0x18] sm:$0xf]
        %v2614 = vld [vmem:[%s2606 + $0x1c] sm:$0xf]
        %v2623 = vunpack.c.l.b16 %v2607
        %v2624 = vunpack.c.l.b16 %v2608
        %v2625 = vunpack.c.l.b16 %v2609
        %v2626 = vunpack.c.l.b16 %v2610
        %v2627 = vunpack.c.l.b16 %v2611
        %v2628 = vunpack.c.l.b16 %v2612
        %v2629 = vunpack.c.l.b16 %v2613
        %v2630 = vunpack.c.l.b16 %v2614
        %v2631 = vpack.c.b16 %v2624, %v2623
        %v2632 = vpack.c.b16 %v2626, %v2625
        %v2633 = vpack.c.b16 %v2628, %v2627
        %v2634 = vpack.c.b16 %v2630, %v2629
        %v2640 = vsel %vm636, %v2605, 0
        %2642 = vmatpush.bf16.msra.mxu0 0
        %2643 = vmatpush.bf16.msra.mxu0 0
        %2644 = vmatpush.bf16.msra.mxu0 0
        %2645 = vmatpush.bf16.msra.mxu0 0
        %2646 = vmatpush.bf16.msra.mxu0 %v2634
        %2647 = vmatpush.bf16.msra.mxu0 %v2633
        %2648 = vmatpush.bf16.msra.mxu0 %v2632
        %2649 = vmatpush.bf16.msra.mxu0 %v2631
        %2650 = vmatmul.bf16.gmra.mxu0 %v2640
        %v2651 = vpop.f32.mrf.mxu0
        %v2652 = vadd.f32 0.0, %v2651
        %v2653 = vpop.f32.mrf.mxu0
        %2654 = vdwg.mxu0
        %v2655 = vadd.f32 %v2604, %v2652
        %v2656 = vpack.c.bf16 %v2393, %v2393
        %s2657 = scalar_lea.vmem %s3, 160
        %v2658 = vld [vmem:[%s2657] sm:$0xf]
        %v2659 = vld [vmem:[%s2657 + $0x4] sm:$0xf]
        %v2660 = vld [vmem:[%s2657 + $0x8] sm:$0xf]
        %v2661 = vld [vmem:[%s2657 + $0xc] sm:$0xf]
        %v2662 = vld [vmem:[%s2657 + $0x10] sm:$0xf]
        %v2663 = vld [vmem:[%s2657 + $0x14] sm:$0xf]
        %v2664 = vld [vmem:[%s2657 + $0x18] sm:$0xf]
        %v2665 = vld [vmem:[%s2657 + $0x1c] sm:$0xf]
        %v2674 = vunpack.c.l.b16 %v2658
        %v2675 = vunpack.c.l.b16 %v2659
        %v2676 = vunpack.c.l.b16 %v2660
        %v2677 = vunpack.c.l.b16 %v2661
        %v2678 = vunpack.c.l.b16 %v2662
        %v2679 = vunpack.c.l.b16 %v2663
        %v2680 = vunpack.c.l.b16 %v2664
        %v2681 = vunpack.c.l.b16 %v2665
        %v2682 = vpack.c.b16 %v2675, %v2674
        %v2683 = vpack.c.b16 %v2677, %v2676
        %v2684 = vpack.c.b16 %v2679, %v2678
        %v2685 = vpack.c.b16 %v2681, %v2680
        %v2691 = vsel %vm636, %v2656, 0
        %2693 = vmatpush.bf16.msra.mxu0 0
        %2694 = vmatpush.bf16.msra.mxu0 0
        %2695 = vmatpush.bf16.msra.mxu0 0
        %2696 = vmatpush.bf16.msra.mxu0 0
        %2697 = vmatpush.bf16.msra.mxu0 %v2685
        %2698 = vmatpush.bf16.msra.mxu0 %v2684
        %2699 = vmatpush.bf16.msra.mxu0 %v2683
        %2700 = vmatpush.bf16.msra.mxu0 %v2682
        %2701 = vmatmul.bf16.gmra.mxu0 %v2691
        %v2702 = vpop.f32.mrf.mxu0
        %v2703 = vadd.f32 0.0, %v2702
        %v2704 = vpop.f32.mrf.mxu0
        %2705 = vdwg.mxu0
        %v2706 = vadd.f32 %v2655, %v2703
        %v2707 = vpack.c.bf16 %v2394, %v2394
        %s2708 = scalar_lea.vmem %s3, 192
        %v2709 = vld [vmem:[%s2708] sm:$0xf]
        %v2710 = vld [vmem:[%s2708 + $0x4] sm:$0xf]
        %v2711 = vld [vmem:[%s2708 + $0x8] sm:$0xf]
        %v2712 = vld [vmem:[%s2708 + $0xc] sm:$0xf]
        %v2713 = vld [vmem:[%s2708 + $0x10] sm:$0xf]
        %v2714 = vld [vmem:[%s2708 + $0x14] sm:$0xf]
        %v2715 = vld [vmem:[%s2708 + $0x18] sm:$0xf]
        %v2716 = vld [vmem:[%s2708 + $0x1c] sm:$0xf]
        %v2725 = vunpack.c.l.b16 %v2709
        %v2726 = vunpack.c.l.b16 %v2710
        %v2727 = vunpack.c.l.b16 %v2711
        %v2728 = vunpack.c.l.b16 %v2712
        %v2729 = vunpack.c.l.b16 %v2713
        %v2730 = vunpack.c.l.b16 %v2714
        %v2731 = vunpack.c.l.b16 %v2715
        %v2732 = vunpack.c.l.b16 %v2716
        %v2733 = vpack.c.b16 %v2726, %v2725
        %v2734 = vpack.c.b16 %v2728, %v2727
        %v2735 = vpack.c.b16 %v2730, %v2729
        %v2736 = vpack.c.b16 %v2732, %v2731
        %v2742 = vsel %vm636, %v2707, 0
        %2744 = vmatpush.bf16.msra.mxu0 0
        %2745 = vmatpush.bf16.msra.mxu0 0
        %2746 = vmatpush.bf16.msra.mxu0 0
        %2747 = vmatpush.bf16.msra.mxu0 0
        %2748 = vmatpush.bf16.msra.mxu0 %v2736
        %2749 = vmatpush.bf16.msra.mxu0 %v2735
        %2750 = vmatpush.bf16.msra.mxu0 %v2734
        %2751 = vmatpush.bf16.msra.mxu0 %v2733
        %2752 = vmatmul.bf16.gmra.mxu0 %v2742
        %v2753 = vpop.f32.mrf.mxu0
        %v2754 = vadd.f32 0.0, %v2753
        %v2755 = vpop.f32.mrf.mxu0
        %2756 = vdwg.mxu0
        %v2757 = vadd.f32 %v2706, %v2754
        %v2758 = vpack.c.bf16 %v2395, %v2395
        %s2759 = scalar_lea.vmem %s3, 224
        %v2760 = vld [vmem:[%s2759] sm:$0xf]
        %v2761 = vld [vmem:[%s2759 + $0x4] sm:$0xf]
        %v2762 = vld [vmem:[%s2759 + $0x8] sm:$0xf]
        %v2763 = vld [vmem:[%s2759 + $0xc] sm:$0xf]
        %v2764 = vld [vmem:[%s2759 + $0x10] sm:$0xf]
        %v2765 = vld [vmem:[%s2759 + $0x14] sm:$0xf]
        %v2766 = vld [vmem:[%s2759 + $0x18] sm:$0xf]
        %v2767 = vld [vmem:[%s2759 + $0x1c] sm:$0xf]
        %v2776 = vunpack.c.l.b16 %v2760
        %v2777 = vunpack.c.l.b16 %v2761
        %v2778 = vunpack.c.l.b16 %v2762
        %v2779 = vunpack.c.l.b16 %v2763
        %v2780 = vunpack.c.l.b16 %v2764
        %v2781 = vunpack.c.l.b16 %v2765
        %v2782 = vunpack.c.l.b16 %v2766
        %v2783 = vunpack.c.l.b16 %v2767
        %v2784 = vpack.c.b16 %v2777, %v2776
        %v2785 = vpack.c.b16 %v2779, %v2778
        %v2786 = vpack.c.b16 %v2781, %v2780
        %v2787 = vpack.c.b16 %v2783, %v2782
        %v2793 = vsel %vm636, %v2758, 0
        %2795 = vmatpush.bf16.msra.mxu0 0
        %2796 = vmatpush.bf16.msra.mxu0 0
        %2797 = vmatpush.bf16.msra.mxu0 0
        %2798 = vmatpush.bf16.msra.mxu0 0
        %2799 = vmatpush.bf16.msra.mxu0 %v2787
        %2800 = vmatpush.bf16.msra.mxu0 %v2786
        %2801 = vmatpush.bf16.msra.mxu0 %v2785
        %2802 = vmatpush.bf16.msra.mxu0 %v2784
        %2803 = vmatmul.bf16.gmra.mxu0 %v2793
        %v2804 = vpop.f32.mrf.mxu0
        %v2805 = vadd.f32 0.0, %v2804
        %v2806 = vpop.f32.mrf.mxu0
        %2807 = vdwg.mxu0
        %v2808 = vadd.f32 %v2757, %v2805
        %v2809 = vpack.c.bf16 %v2396, %v2396
        %s2810 = scalar_lea.vmem %s3, 256
        %v2811 = vld [vmem:[%s2810] sm:$0xf]
        %v2812 = vld [vmem:[%s2810 + $0x4] sm:$0xf]
        %v2813 = vld [vmem:[%s2810 + $0x8] sm:$0xf]
        %v2814 = vld [vmem:[%s2810 + $0xc] sm:$0xf]
        %v2815 = vld [vmem:[%s2810 + $0x10] sm:$0xf]
        %v2816 = vld [vmem:[%s2810 + $0x14] sm:$0xf]
        %v2817 = vld [vmem:[%s2810 + $0x18] sm:$0xf]
        %v2818 = vld [vmem:[%s2810 + $0x1c] sm:$0xf]
        %v2827 = vunpack.c.l.b16 %v2811
        %v2828 = vunpack.c.l.b16 %v2812
        %v2829 = vunpack.c.l.b16 %v2813
        %v2830 = vunpack.c.l.b16 %v2814
        %v2831 = vunpack.c.l.b16 %v2815
        %v2832 = vunpack.c.l.b16 %v2816
        %v2833 = vunpack.c.l.b16 %v2817
        %v2834 = vunpack.c.l.b16 %v2818
        %v2835 = vpack.c.b16 %v2828, %v2827
        %v2836 = vpack.c.b16 %v2830, %v2829
        %v2837 = vpack.c.b16 %v2832, %v2831
        %v2838 = vpack.c.b16 %v2834, %v2833
        %v2844 = vsel %vm636, %v2809, 0
        %2846 = vmatpush.bf16.msra.mxu0 0
        %2847 = vmatpush.bf16.msra.mxu0 0
        %2848 = vmatpush.bf16.msra.mxu0 0
        %2849 = vmatpush.bf16.msra.mxu0 0
        %2850 = vmatpush.bf16.msra.mxu0 %v2838
        %2851 = vmatpush.bf16.msra.mxu0 %v2837
        %2852 = vmatpush.bf16.msra.mxu0 %v2836
        %2853 = vmatpush.bf16.msra.mxu0 %v2835
        %2854 = vmatmul.bf16.gmra.mxu0 %v2844
        %v2855 = vpop.f32.mrf.mxu0
        %v2856 = vadd.f32 0.0, %v2855
        %v2857 = vpop.f32.mrf.mxu0
        %2858 = vdwg.mxu0
        %v2859 = vadd.f32 %v2808, %v2856
        %v2860 = vpack.c.bf16 %v2397, %v2397
        %s2861 = scalar_lea.vmem %s3, 288
        %v2862 = vld [vmem:[%s2861] sm:$0xf]
        %v2863 = vld [vmem:[%s2861 + $0x4] sm:$0xf]
        %v2864 = vld [vmem:[%s2861 + $0x8] sm:$0xf]
        %v2865 = vld [vmem:[%s2861 + $0xc] sm:$0xf]
        %v2866 = vld [vmem:[%s2861 + $0x10] sm:$0xf]
        %v2867 = vld [vmem:[%s2861 + $0x14] sm:$0xf]
        %v2868 = vld [vmem:[%s2861 + $0x18] sm:$0xf]
        %v2869 = vld [vmem:[%s2861 + $0x1c] sm:$0xf]
        %v2878 = vunpack.c.l.b16 %v2862
        %v2879 = vunpack.c.l.b16 %v2863
        %v2880 = vunpack.c.l.b16 %v2864
        %v2881 = vunpack.c.l.b16 %v2865
        %v2882 = vunpack.c.l.b16 %v2866
        %v2883 = vunpack.c.l.b16 %v2867
        %v2884 = vunpack.c.l.b16 %v2868
        %v2885 = vunpack.c.l.b16 %v2869
        %v2886 = vpack.c.b16 %v2879, %v2878
        %v2887 = vpack.c.b16 %v2881, %v2880
        %v2888 = vpack.c.b16 %v2883, %v2882
        %v2889 = vpack.c.b16 %v2885, %v2884
        %v2895 = vsel %vm636, %v2860, 0
        %2897 = vmatpush.bf16.msra.mxu0 0
        %2898 = vmatpush.bf16.msra.mxu0 0
        %2899 = vmatpush.bf16.msra.mxu0 0
        %2900 = vmatpush.bf16.msra.mxu0 0
        %2901 = vmatpush.bf16.msra.mxu0 %v2889
        %2902 = vmatpush.bf16.msra.mxu0 %v2888
        %2903 = vmatpush.bf16.msra.mxu0 %v2887
        %2904 = vmatpush.bf16.msra.mxu0 %v2886
        %2905 = vmatmul.bf16.gmra.mxu0 %v2895
        %v2906 = vpop.f32.mrf.mxu0
        %v2907 = vadd.f32 0.0, %v2906
        %v2908 = vpop.f32.mrf.mxu0
        %2909 = vdwg.mxu0
        %v2910 = vadd.f32 %v2859, %v2907
        %v2911 = vpack.c.bf16 %v2398, %v2398
        %s2912 = scalar_lea.vmem %s3, 320
        %v2913 = vld [vmem:[%s2912] sm:$0xf]
        %v2914 = vld [vmem:[%s2912 + $0x4] sm:$0xf]
        %v2915 = vld [vmem:[%s2912 + $0x8] sm:$0xf]
        %v2916 = vld [vmem:[%s2912 + $0xc] sm:$0xf]
        %v2917 = vld [vmem:[%s2912 + $0x10] sm:$0xf]
        %v2918 = vld [vmem:[%s2912 + $0x14] sm:$0xf]
        %v2919 = vld [vmem:[%s2912 + $0x18] sm:$0xf]
        %v2920 = vld [vmem:[%s2912 + $0x1c] sm:$0xf]
        %v2929 = vunpack.c.l.b16 %v2913
        %v2930 = vunpack.c.l.b16 %v2914
        %v2931 = vunpack.c.l.b16 %v2915
        %v2932 = vunpack.c.l.b16 %v2916
        %v2933 = vunpack.c.l.b16 %v2917
        %v2934 = vunpack.c.l.b16 %v2918
        %v2935 = vunpack.c.l.b16 %v2919
        %v2936 = vunpack.c.l.b16 %v2920
        %v2937 = vpack.c.b16 %v2930, %v2929
        %v2938 = vpack.c.b16 %v2932, %v2931
        %v2939 = vpack.c.b16 %v2934, %v2933
        %v2940 = vpack.c.b16 %v2936, %v2935
        %v2946 = vsel %vm636, %v2911, 0
        %2948 = vmatpush.bf16.msra.mxu0 0
        %2949 = vmatpush.bf16.msra.mxu0 0
        %2950 = vmatpush.bf16.msra.mxu0 0
        %2951 = vmatpush.bf16.msra.mxu0 0
        %2952 = vmatpush.bf16.msra.mxu0 %v2940
        %2953 = vmatpush.bf16.msra.mxu0 %v2939
        %2954 = vmatpush.bf16.msra.mxu0 %v2938
        %2955 = vmatpush.bf16.msra.mxu0 %v2937
        %2956 = vmatmul.bf16.gmra.mxu0 %v2946
        %v2957 = vpop.f32.mrf.mxu0
        %v2958 = vadd.f32 0.0, %v2957
        %v2959 = vpop.f32.mrf.mxu0
        %2960 = vdwg.mxu0
        %v2961 = vadd.f32 %v2910, %v2958
        %v2962 = vpack.c.bf16 %v2399, %v2399
        %s2963 = scalar_lea.vmem %s3, 352
        %v2964 = vld [vmem:[%s2963] sm:$0xf]
        %v2965 = vld [vmem:[%s2963 + $0x4] sm:$0xf]
        %v2966 = vld [vmem:[%s2963 + $0x8] sm:$0xf]
        %v2967 = vld [vmem:[%s2963 + $0xc] sm:$0xf]
        %v2968 = vld [vmem:[%s2963 + $0x10] sm:$0xf]
        %v2969 = vld [vmem:[%s2963 + $0x14] sm:$0xf]
        %v2970 = vld [vmem:[%s2963 + $0x18] sm:$0xf]
        %v2971 = vld [vmem:[%s2963 + $0x1c] sm:$0xf]
        %v2980 = vunpack.c.l.b16 %v2964
        %v2981 = vunpack.c.l.b16 %v2965
        %v2982 = vunpack.c.l.b16 %v2966
        %v2983 = vunpack.c.l.b16 %v2967
        %v2984 = vunpack.c.l.b16 %v2968
        %v2985 = vunpack.c.l.b16 %v2969
        %v2986 = vunpack.c.l.b16 %v2970
        %v2987 = vunpack.c.l.b16 %v2971
        %v2988 = vpack.c.b16 %v2981, %v2980
        %v2989 = vpack.c.b16 %v2983, %v2982
        %v2990 = vpack.c.b16 %v2985, %v2984
        %v2991 = vpack.c.b16 %v2987, %v2986
        %v2997 = vsel %vm636, %v2962, 0
        %2999 = vmatpush.bf16.msra.mxu0 0
        %3000 = vmatpush.bf16.msra.mxu0 0
        %3001 = vmatpush.bf16.msra.mxu0 0
        %3002 = vmatpush.bf16.msra.mxu0 0
        %3003 = vmatpush.bf16.msra.mxu0 %v2991
        %3004 = vmatpush.bf16.msra.mxu0 %v2990
        %3005 = vmatpush.bf16.msra.mxu0 %v2989
        %3006 = vmatpush.bf16.msra.mxu0 %v2988
        %3007 = vmatmul.bf16.gmra.mxu0 %v2997
        %v3008 = vpop.f32.mrf.mxu0
        %v3009 = vadd.f32 0.0, %v3008
        %v3010 = vpop.f32.mrf.mxu0
        %3011 = vdwg.mxu0
        %v3012 = vadd.f32 %v2961, %v3009
        %v3013 = vpack.c.bf16 %v2400, %v2400
        %s3014 = scalar_lea.vmem %s3, 384
        %v3015 = vld [vmem:[%s3014] sm:$0xf]
        %v3016 = vld [vmem:[%s3014 + $0x4] sm:$0xf]
        %v3017 = vld [vmem:[%s3014 + $0x8] sm:$0xf]
        %v3018 = vld [vmem:[%s3014 + $0xc] sm:$0xf]
        %v3019 = vld [vmem:[%s3014 + $0x10] sm:$0xf]
        %v3020 = vld [vmem:[%s3014 + $0x14] sm:$0xf]
        %v3021 = vld [vmem:[%s3014 + $0x18] sm:$0xf]
        %v3022 = vld [vmem:[%s3014 + $0x1c] sm:$0xf]
        %v3031 = vunpack.c.l.b16 %v3015
        %v3032 = vunpack.c.l.b16 %v3016
        %v3033 = vunpack.c.l.b16 %v3017
        %v3034 = vunpack.c.l.b16 %v3018
        %v3035 = vunpack.c.l.b16 %v3019
        %v3036 = vunpack.c.l.b16 %v3020
        %v3037 = vunpack.c.l.b16 %v3021
        %v3038 = vunpack.c.l.b16 %v3022
        %v3039 = vpack.c.b16 %v3032, %v3031
        %v3040 = vpack.c.b16 %v3034, %v3033
        %v3041 = vpack.c.b16 %v3036, %v3035
        %v3042 = vpack.c.b16 %v3038, %v3037
        %v3048 = vsel %vm636, %v3013, 0
        %3050 = vmatpush.bf16.msra.mxu0 0
        %3051 = vmatpush.bf16.msra.mxu0 0
        %3052 = vmatpush.bf16.msra.mxu0 0
        %3053 = vmatpush.bf16.msra.mxu0 0
        %3054 = vmatpush.bf16.msra.mxu0 %v3042
        %3055 = vmatpush.bf16.msra.mxu0 %v3041
        %3056 = vmatpush.bf16.msra.mxu0 %v3040
        %3057 = vmatpush.bf16.msra.mxu0 %v3039
        %3058 = vmatmul.bf16.gmra.mxu0 %v3048
        %v3059 = vpop.f32.mrf.mxu0
        %v3060 = vadd.f32 0.0, %v3059
        %v3061 = vpop.f32.mrf.mxu0
        %3062 = vdwg.mxu0
        %v3063 = vadd.f32 %v3012, %v3060
        %v3064 = vpack.c.bf16 %v2401, %v2401
        %s3065 = scalar_lea.vmem %s3, 416
        %v3066 = vld [vmem:[%s3065] sm:$0xf]
        %v3067 = vld [vmem:[%s3065 + $0x4] sm:$0xf]
        %v3068 = vld [vmem:[%s3065 + $0x8] sm:$0xf]
        %v3069 = vld [vmem:[%s3065 + $0xc] sm:$0xf]
        %v3070 = vld [vmem:[%s3065 + $0x10] sm:$0xf]
        %v3071 = vld [vmem:[%s3065 + $0x14] sm:$0xf]
        %v3072 = vld [vmem:[%s3065 + $0x18] sm:$0xf]
        %v3073 = vld [vmem:[%s3065 + $0x1c] sm:$0xf]
        %v3082 = vunpack.c.l.b16 %v3066
        %v3083 = vunpack.c.l.b16 %v3067
        %v3084 = vunpack.c.l.b16 %v3068
        %v3085 = vunpack.c.l.b16 %v3069
        %v3086 = vunpack.c.l.b16 %v3070
        %v3087 = vunpack.c.l.b16 %v3071
        %v3088 = vunpack.c.l.b16 %v3072
        %v3089 = vunpack.c.l.b16 %v3073
        %v3090 = vpack.c.b16 %v3083, %v3082
        %v3091 = vpack.c.b16 %v3085, %v3084
        %v3092 = vpack.c.b16 %v3087, %v3086
        %v3093 = vpack.c.b16 %v3089, %v3088
        %v3099 = vsel %vm636, %v3064, 0
        %3101 = vmatpush.bf16.msra.mxu0 0
        %3102 = vmatpush.bf16.msra.mxu0 0
        %3103 = vmatpush.bf16.msra.mxu0 0
        %3104 = vmatpush.bf16.msra.mxu0 0
        %3105 = vmatpush.bf16.msra.mxu0 %v3093
        %3106 = vmatpush.bf16.msra.mxu0 %v3092
        %3107 = vmatpush.bf16.msra.mxu0 %v3091
        %3108 = vmatpush.bf16.msra.mxu0 %v3090
        %3109 = vmatmul.bf16.gmra.mxu0 %v3099
        %v3110 = vpop.f32.mrf.mxu0
        %v3111 = vadd.f32 0.0, %v3110
        %v3112 = vpop.f32.mrf.mxu0
        %3113 = vdwg.mxu0
        %v3114 = vadd.f32 %v3063, %v3111
        %v3115 = vpack.c.bf16 %v2402, %v2402
        %s3116 = scalar_lea.vmem %s3, 448
        %v3117 = vld [vmem:[%s3116] sm:$0xf]
        %v3118 = vld [vmem:[%s3116 + $0x4] sm:$0xf]
        %v3119 = vld [vmem:[%s3116 + $0x8] sm:$0xf]
        %v3120 = vld [vmem:[%s3116 + $0xc] sm:$0xf]
        %v3121 = vld [vmem:[%s3116 + $0x10] sm:$0xf]
        %v3122 = vld [vmem:[%s3116 + $0x14] sm:$0xf]
        %v3123 = vld [vmem:[%s3116 + $0x18] sm:$0xf]
        %v3124 = vld [vmem:[%s3116 + $0x1c] sm:$0xf]
        %v3133 = vunpack.c.l.b16 %v3117
        %v3134 = vunpack.c.l.b16 %v3118
        %v3135 = vunpack.c.l.b16 %v3119
        %v3136 = vunpack.c.l.b16 %v3120
        %v3137 = vunpack.c.l.b16 %v3121
        %v3138 = vunpack.c.l.b16 %v3122
        %v3139 = vunpack.c.l.b16 %v3123
        %v3140 = vunpack.c.l.b16 %v3124
        %v3141 = vpack.c.b16 %v3134, %v3133
        %v3142 = vpack.c.b16 %v3136, %v3135
        %v3143 = vpack.c.b16 %v3138, %v3137
        %v3144 = vpack.c.b16 %v3140, %v3139
        %v3150 = vsel %vm636, %v3115, 0
        %3152 = vmatpush.bf16.msra.mxu0 0
        %3153 = vmatpush.bf16.msra.mxu0 0
        %3154 = vmatpush.bf16.msra.mxu0 0
        %3155 = vmatpush.bf16.msra.mxu0 0
        %3156 = vmatpush.bf16.msra.mxu0 %v3144
        %3157 = vmatpush.bf16.msra.mxu0 %v3143
        %3158 = vmatpush.bf16.msra.mxu0 %v3142
        %3159 = vmatpush.bf16.msra.mxu0 %v3141
        %3160 = vmatmul.bf16.gmra.mxu0 %v3150
        %v3161 = vpop.f32.mrf.mxu0
        %v3162 = vadd.f32 0.0, %v3161
        %v3163 = vpop.f32.mrf.mxu0
        %3164 = vdwg.mxu0
        %v3165 = vadd.f32 %v3114, %v3162
        %v3166 = vpack.c.bf16 %v2403, %v2403
        %s3167 = scalar_lea.vmem %s3, 480
        %v3168 = vld [vmem:[%s3167] sm:$0xf]
        %v3169 = vld [vmem:[%s3167 + $0x4] sm:$0xf]
        %v3170 = vld [vmem:[%s3167 + $0x8] sm:$0xf]
        %v3171 = vld [vmem:[%s3167 + $0xc] sm:$0xf]
        %v3172 = vld [vmem:[%s3167 + $0x10] sm:$0xf]
        %v3173 = vld [vmem:[%s3167 + $0x14] sm:$0xf]
        %v3174 = vld [vmem:[%s3167 + $0x18] sm:$0xf]
        %v3175 = vld [vmem:[%s3167 + $0x1c] sm:$0xf]
        %v3184 = vunpack.c.l.b16 %v3168
        %v3185 = vunpack.c.l.b16 %v3169
        %v3186 = vunpack.c.l.b16 %v3170
        %v3187 = vunpack.c.l.b16 %v3171
        %v3188 = vunpack.c.l.b16 %v3172
        %v3189 = vunpack.c.l.b16 %v3173
        %v3190 = vunpack.c.l.b16 %v3174
        %v3191 = vunpack.c.l.b16 %v3175
        %v3192 = vpack.c.b16 %v3185, %v3184
        %v3193 = vpack.c.b16 %v3187, %v3186
        %v3194 = vpack.c.b16 %v3189, %v3188
        %v3195 = vpack.c.b16 %v3191, %v3190
        %v3201 = vsel %vm636, %v3166, 0
        %3203 = vmatpush.bf16.msra.mxu0 0
        %3204 = vmatpush.bf16.msra.mxu0 0
        %3205 = vmatpush.bf16.msra.mxu0 0
        %3206 = vmatpush.bf16.msra.mxu0 0
        %3207 = vmatpush.bf16.msra.mxu0 %v3195
        %3208 = vmatpush.bf16.msra.mxu0 %v3194
        %3209 = vmatpush.bf16.msra.mxu0 %v3193
        %3210 = vmatpush.bf16.msra.mxu0 %v3192
        %3211 = vmatmul.bf16.gmra.mxu0 %v3201
        %v3212 = vpop.f32.mrf.mxu0
        %v3213 = vadd.f32 0.0, %v3212
        %v3214 = vpop.f32.mrf.mxu0
        %3215 = vdwg.mxu0
        %v3216 = vadd.f32 %v3165, %v3213
        %v3217 = vld [vmem:[%s5] sm:$0x1]
        %v3218 = vperm.slane %v3217, 0
        %v3219 = vadd.f32 %v3216, %v3218
        %v3220 = vmax.f32 %v3219, 0.0
        %v3221 = vld [vmem:[%s4] sm:$0xff]
        %v3222 = vld [vmem:[%s4 + $0x8] sm:$0xff]
        %v3223 = vld [vmem:[%s5 + $0x1] sm:$0x1]
        %v3224 = vperm.slane %v3223, 0
        %vm3225 = vcmask 130048
        %v3227 = vsel %vm3225, %v3220, 0
        %3229 = vmatpush.msra.mxu0 0.0
        %3230 = vmatpush.msra.mxu0 0.0
        %3231 = vmatpush.msra.mxu0 0.0
        %3232 = vmatpush.msra.mxu0 0.0
        %3233 = vmatpush.msra.mxu0 0.0
        %3234 = vmatpush.msra.mxu0 0.0
        %3235 = vmatpush.msra.mxu0 0.0
        %3236 = vmatpush.msra.mxu0 0.0
        %3237 = vmatpush.msra.mxu0 0.0
        %3238 = vmatpush.msra.mxu0 0.0
        %3239 = vmatpush.msra.mxu0 0.0
        %3240 = vmatpush.msra.mxu0 0.0
        %3241 = vmatpush.msra.mxu0 0.0
        %3242 = vmatpush.msra.mxu0 0.0
        %3243 = vmatpush.msra.mxu0 %v3222
        %3244 = vmatpush.msra.mxu0 %v3221
        %3245 = vmatmul.f32.gmra.mxu0 %v3227
        %v3246 = vpop.f32.mrf.mxu0
        %v3247 = vadd.f32 %v3224, %v3246
        %3248 = vdwg.mxu0
        %3249 = vst [vmem:[%s244] sm:$0xff] %v3247
        %s3250 = sand.u32 %s159, 1
        %s3251 = scalar_lea.sflag [#allocation3], %s3250
        %s3252 = sand.u32 %s159, 1
        %s3253 = smul.addr %s3252, 8
        %s3254 = scalar_lea.vmem [#allocation2], %s3253
        // Predicated region
        $region45: #{tpu_custom_call.1} parent=43 // pred_check
          %p3255 = pneg %p169
        $region46: #{tpu_custom_call.1} parent=43 // pred_check_branch
          %3257 = sbr.rel (%p3255) target = $region48
        $region47: #{tpu_custom_call.1} parent=43 // pred_region
          %3259 = vsyncadd %s3251, 0
          %s3260 = smul.addr %s20, 8
          %s3261 = scalar_lea.hbm %s6, %s3260
          %s3263 = sshll.u32 %s3254, 4
          %s3264 = int_to_ptr.vmem [resolvable:$true] %s3263
          %s3265 = sshll.u32 %s3261, 4
          %s3266 = int_to_ptr.hbm [resolvable:$true] %s3265
          %3268 = dma.vmem_to_hbm [thread:$0]  %s3264, 128, %s3266, %s3251
        $region48: #{tpu_custom_call.1} parent=43 // pred_fallthru
          _
      $region44: #{tpu_custom_call.1} parent=5 // pred_fallthru
        _
      %p3269 = scmp.le.s32.totalorder 2, %s15
      // Predicated region
      $region49: #{tpu_custom_call.1} parent=5 // pred_check
        %p3270 = pneg %p3269
      $region50: #{tpu_custom_call.1} parent=5 // pred_check_branch
        %3272 = sbr.rel (%p3270) target = $region52
      $region51: #{tpu_custom_call.1} parent=5 // pred_region
        %s3273 = ssub.s32 %s15, 2
        // Predicated region
        $region53: #{tpu_custom_call.1} parent=51 // pred_check
          %p3274 = pneg %p175
        $region54: #{tpu_custom_call.1} parent=51 // pred_check_branch
          %3276 = sbr.rel (%p3274) target = $region56
        $region55: #{tpu_custom_call.1} parent=51 // pred_region
          %s3277 = sand.u32 %s160, 1
          %s3278 = scalar_lea.sflag [#allocation3], %s3277
          %s3279 = sand.u32 %s160, 1
          %s3280 = smul.addr %s3279, 8
          %s3281 = scalar_lea.vmem [#allocation2], %s3280
          %3283 = dma.done %s3278, 128
        $region56: #{tpu_custom_call.1} parent=51 // pred_fallthru
          _
      $region52: #{tpu_custom_call.1} parent=5 // pred_fallthru
        _
    $region6: #{tpu_custom_call.1} parent=1 // loop_footer
      %s19 = sadd.s32 1, %s15
    $region7: #{tpu_custom_call.1} parent=1 // loop_footer_branch
      %14 = sbr.rel target = $region3
    $region8: #{tpu_custom_call.1} parent=1 // loop_exit
      _
    %3284 = vsyncpa [#allocation3], 1
    %s3285 = scalar_lea.sflag [#allocation3], 1
    %3286 = vsyncpa %s3285, 1

</llo_original>
